<compile_context>
chip_gen: v7x
topology: tpu7x:2x2x1
jax: 0.10.0
libtpu: 0.0.40
codegen_flags: <defaults>
</compile_context>

<pallas_src>
import functools

import jax
import jax.numpy as jnp
from jax.experimental import pallas as pl
from jax.experimental.pallas import tpu as pltpu


# ---------------------------------------------------------------------------
# Pallas kernel: full DGCNN forward for a tile of TN points (transposed layout).
# ---------------------------------------------------------------------------
def dgcnn_kernel(x_ref,                 # (1, 1, 3, K*TN)  compute dtype
                 w1t, b1,               # (32, 3),  (32, 1)
                 w2t, b2,               # (32, 32), (32, 1)
                 w3t, b3,               # (64, 32), (64, 1)
                 w4t, b4,               # (128, 64), (128, 1)
                 w5t, b5,               # (E, 256), (E, 1)
                 o_ref,                 # (1, E, TN) f32
                 *, k, tn):
    cdt = x_ref.dtype
    x = x_ref[0, 0]                                            # (3, K*TN)

    def layer(h, wt_ref, b_ref):
        # W^T (Cout,Cin) @ H^T (Cin, K*TN): Cout is the MXU M dim, K*TN the N dim.
        y = jnp.dot(wt_ref[...], h, preferred_element_type=jnp.float32)
        y = y + b_ref[...]                                     # bias + relu in f32
        return jnp.maximum(y, 0.0).astype(cdt)                 # single cast per layer

    def kmax(h):
        # K-axis max pool: K-1 elementwise maxes over lane-aligned TN-wide slabs.
        m = h[:, 0:tn]
        for j in range(1, k):
            m = jnp.maximum(m, h[:, j * tn:(j + 1) * tn])
        return m                                               # (C, TN)

    h1 = layer(x, w1t, b1)                                     # (32, K*TN)
    x1 = kmax(h1)
    h2 = layer(h1, w2t, b2)                                    # (32, K*TN)
    x2 = kmax(h2)
    h3 = layer(h2, w3t, b3)                                    # (64, K*TN)
    x3 = kmax(h3)
    h4 = layer(h3, w4t, b4)                                    # (128, K*TN)
    x4 = kmax(h4)

    # Layer 5: one fused dot, contraction = 256 (sublane-aligned concat of pooled feats).
    x_cat = jnp.concatenate([x1, x2, x3, x4], axis=0)          # (256, TN)
    out = jnp.dot(w5t[...], x_cat, preferred_element_type=jnp.float32) + b5[...]
    o_ref[0] = jnp.maximum(out, 0.0).astype(o_ref.dtype)       # (E, TN), lane-dense


# ---------------------------------------------------------------------------
# dtype / tile-size / VMEM budgeting
# ---------------------------------------------------------------------------
def _compute_dtype():
    # bf16 operands (f32 accumulation) on the MXU when actually running on TPU;
    # the CPU interpret backend rejects BF16xBF16->F32 dots, so fall back to f32.
    return jnp.bfloat16 if jax.default_backend() == "tpu" else jnp.float32


def _default_vmem_budget_bytes():
    # Generation-aware: ~1/3 of physical VMEM (v5e/v6e: 128 MiB -> ~42 MiB,
    # v7x: 64 MiB -> ~21 MiB); conservative 24 MiB if the query is unavailable.
    try:
        vmem = pltpu.get_tpu_info().vmem_capacity_bytes
        return max(16 * 2**20, min(vmem // 3, 48 * 2**20))
    except Exception:
        return 24 * 2**20


def _vmem_bytes_per_step(tn, K, emb, act_bytes):
    L = K * tn
    in_block = 2 * 8 * L * act_bytes                 # (3 -> 8 sublane-padded) x L lanes, dbl-buffered
    out_block = 2 * emb * tn * 4                     # f32 output tile, dbl-buffered
    hidden = (32 + 32 + 64 + 128) * L * act_bytes    # h1..h4 (conservative: all live)
    acc = 128 * L * 4                                # largest f32 MXU accumulator
    pooled = 2 * 256 * tn * act_bytes                # x1..x4 + concat copy
    weights = 2 * ((32 * 3 + 32 * 32 + 64 * 32 + 128 * 64 + emb * 256) * act_bytes
                   + (32 + 32 + 64 + 128 + emb) * 128 * 4)     # biases pad to 128 lanes
    return in_block + out_block + hidden + acc + pooled + weights


def _choose_tn(B, N, K, emb, budget_bytes, act_bytes):
    # Prefer lane-dense tiles (multiples of 128) that divide N and fit the budget,
    # and keep at least 2 grid steps so both v7x TensorCores get work.
    cands = [c for c in (2048, 1024, 512, 384, 256, 128) if N % c == 0]
    cands = [c for c in cands
             if _vmem_bytes_per_step(c, K, emb, act_bytes) <= budget_bytes]
    for c in cands:
        if B * (N // c) >= 2:
            return c
    if cands:
        return cands[0]
    return N  # tiny / oddly-shaped N: single tile along the point axis


# ---------------------------------------------------------------------------
# Wrapper
# ---------------------------------------------------------------------------
def dgcnn_forward(x_bcnk, params, *, tn=None, vmem_budget_bytes=None,
                  compute_dtype=None):
    """x_bcnk: [B, 3, N, K] float32  ->  [B, emb_dims, N] float32."""
    B, C, N, K = x_bcnk.shape
    assert C == 3
    emb = params["w5"].shape[1]
    cdt = _compute_dtype() if compute_dtype is None else compute_dtype
    act_bytes = jnp.dtype(cdt).itemsize
    budget = _default_vmem_budget_bytes() if vmem_budget_bytes is None else vmem_budget_bytes
    if tn is None:
        tn = _choose_tn(B, N, K, emb, budget, act_bytes)
    assert N % tn == 0, (N, tn)
    nb = N // tn

    # Pre-block the input so each grid step sees a lane-dense (3, K*TN) slab with
    # (K outer, TN inner) ordering.  [B,3,N,K] -> [B, NB, 3, K*TN].
    x = jnp.transpose(x_bcnk, (0, 1, 3, 2))                    # [B, 3, K, N]
    x = x.reshape(B, 3, K, nb, tn)
    x = jnp.transpose(x, (0, 3, 1, 2, 4))                      # [B, NB, 3, K, TN]
    x = x.reshape(B, nb, 3, K * tn).astype(cdt)

    f32 = jnp.float32
    weight_args = []
    for idx in range(1, 6):
        weight_args.append(params[f"w{idx}"].T.astype(cdt))    # (cout, cin)
        weight_args.append(params[f"b{idx}"].T.astype(f32))    # (cout, 1)

    in_specs = [pl.BlockSpec((1, 1, 3, K * tn), lambda b, i: (b, i, 0, 0))]
    for p in weight_args:
        in_specs.append(pl.BlockSpec(p.shape, lambda b, i: (0, 0)))

    step_bytes = _vmem_bytes_per_step(tn, K, emb, act_bytes)
    vmem_limit = int(min(budget + 8 * 2**20, max(16 * 2**20, 2 * step_bytes)))

    kernel = functools.partial(dgcnn_kernel, k=K, tn=tn)
    return pl.pallas_call(
        kernel,
        out_shape=jax.ShapeDtypeStruct((B, emb, N), jnp.float32),
        grid_spec=pltpu.PrefetchScalarGridSpec(
            num_scalar_prefetch=0,
            grid=(B, nb),
            in_specs=in_specs,
            out_specs=pl.BlockSpec((1, emb, tn), lambda b, i: (b, 0, i)),
        ),
        compiler_params=pltpu.CompilerParams(
            dimension_semantics=("parallel", "parallel"),
            vmem_limit_bytes=vmem_limit,
        ),
    )(x, *weight_args)


# ---------------------------------------------------------------------------
# Deterministic parameters: 1x1-conv weights with eval-mode BatchNorm folded in
# (y = gamma*(x-mean)/sqrt(var+eps)+beta  ->  per-out-channel scale + bias).
# ---------------------------------------------------------------------------
def make_params(key, emb_dims):
    dims = [(3, 32), (32, 32), (32, 64), (64, 128), (256, emb_dims)]
    params = {}
    keys = jax.random.split(key, 5 * 5)
    eps = 1e-5
    for idx, (cin, cout) in enumerate(dims):
        kw, kg, kb, km, kv = keys[5 * idx:5 * idx + 5]
        w = jax.random.normal(kw, (cin, cout), jnp.float32) * (1.0 / jnp.sqrt(cin))
        gamma = 1.0 + 0.1 * jax.random.normal(kg, (cout,), jnp.float32)
        beta = 0.1 * jax.random.normal(kb, (cout,), jnp.float32)
        mean = 0.1 * jax.random.normal(km, (cout,), jnp.float32)
        var = jnp.abs(1.0 + 0.1 * jax.random.normal(kv, (cout,), jnp.float32))
        scale = gamma / jnp.sqrt(var + eps)
        bias = beta - mean * scale
        params[f"w{idx + 1}"] = w * scale[None, :]
        params[f"b{idx + 1}"] = bias[None, :]
    return params


# ---------------------------------------------------------------------------
# Pure-JAX reference, mirroring the kernel's cast points.
# ---------------------------------------------------------------------------
def dgcnn_reference(x_bcnk, params, compute_dtype):
    f32 = jnp.float32
    h = x_bcnk.astype(compute_dtype)                           # [B, 3, N, K]

    def layer(h, w, b):
        y = jnp.einsum("bcnk,cd->bdnk", h, w.astype(compute_dtype),
                       preferred_element_type=f32)
        y = y + b[0][None, :, None, None]
        return jnp.maximum(y, 0.0).astype(compute_dtype)

    h1 = layer(h, params["w1"], params["b1"]); x1 = h1.max(axis=-1)
    h2 = layer(h1, params["w2"], params["b2"]); x2 = h2.max(axis=-1)
    h3 = layer(h2, params["w3"], params["b3"]); x3 = h3.max(axis=-1)
    h4 = layer(h3, params["w4"], params["b4"]); x4 = h4.max(axis=-1)

    x_cat = jnp.concatenate([x1, x2, x3, x4], axis=1)          # [B, 256, N]
    out = jnp.einsum("bcn,cd->bdn", x_cat, params["w5"].astype(compute_dtype),
                     preferred_element_type=f32) + params["b5"][0][None, :, None]
    return jnp.maximum(out, 0.0)                               # [B, E, N]


if __name__ == "__main__":
    # Small demo shapes: EMB multiple of 128 (lane-dense output), K=8 neighbors.
    B, N, K, EMB = 2, 256, 8, 128
    key = jax.random.PRNGKey(0)
    kx, kp = jax.random.split(key)

    x = jax.random.normal(kx, (B, 3, N, K), jnp.float32)       # [B, 3, N, K]
    params = make_params(kp, EMB)

    out = jax.block_until_ready(dgcnn_forward(x, params))

    ref = dgcnn_reference(x, params, _compute_dtype())
    assert out.shape == (B, EMB, N), out.shape
    assert jnp.allclose(out, ref, atol=2e-2, rtol=2e-2), (
        float(jnp.max(jnp.abs(out - ref))))

    print("KERNEL_OK")
</pallas_src>

<mosaic_0001>
module attributes {stable_mosaic.version = 11 : i64} {
  func.func @dgcnn_kernel(%arg0: i32, %arg1: i32, %arg2: memref<1x1x3x2048xf32, #tpu.memory_space<vmem>>, %arg3: memref<32x3xf32, #tpu.memory_space<vmem>>, %arg4: memref<32x1xf32, #tpu.memory_space<vmem>>, %arg5: memref<32x32xf32, #tpu.memory_space<vmem>>, %arg6: memref<32x1xf32, #tpu.memory_space<vmem>>, %arg7: memref<64x32xf32, #tpu.memory_space<vmem>>, %arg8: memref<64x1xf32, #tpu.memory_space<vmem>>, %arg9: memref<128x64xf32, #tpu.memory_space<vmem>>, %arg10: memref<128x1xf32, #tpu.memory_space<vmem>>, %arg11: memref<128x256xf32, #tpu.memory_space<vmem>>, %arg12: memref<128x1xf32, #tpu.memory_space<vmem>>, %arg13: memref<1x128x256xf32, #tpu.memory_space<vmem>>) attributes {dimension_semantics = [#tpu.dimension_semantics<parallel>, #tpu.dimension_semantics<parallel>], iteration_bounds = array<i64: 2, 1>, scalar_prefetch = 0 : i64, scratch_operands = 0 : i64, tpu.core_type = #tpu.core_type<tc>, window_params = [{transform_indices = @transform_0, window_bounds = array<i64: 1, 1, 3, 2048>}, {pipeline_mode = #tpu.pipeline_mode<synchronous>, transform_indices = @transform_1, window_bounds = array<i64: 32, 3>}, {pipeline_mode = #tpu.pipeline_mode<synchronous>, transform_indices = @transform_2, window_bounds = array<i64: 32, 1>}, {pipeline_mode = #tpu.pipeline_mode<synchronous>, transform_indices = @transform_3, window_bounds = array<i64: 32, 32>}, {pipeline_mode = #tpu.pipeline_mode<synchronous>, transform_indices = @transform_4, window_bounds = array<i64: 32, 1>}, {pipeline_mode = #tpu.pipeline_mode<synchronous>, transform_indices = @transform_5, window_bounds = array<i64: 64, 32>}, {pipeline_mode = #tpu.pipeline_mode<synchronous>, transform_indices = @transform_6, window_bounds = array<i64: 64, 1>}, {pipeline_mode = #tpu.pipeline_mode<synchronous>, transform_indices = @transform_7, window_bounds = array<i64: 128, 64>}, {pipeline_mode = #tpu.pipeline_mode<synchronous>, transform_indices = @transform_8, window_bounds = array<i64: 128, 1>}, {pipeline_mode = #tpu.pipeline_mode<synchronous>, transform_indices = @transform_9, window_bounds = array<i64: 128, 256>}, {pipeline_mode = #tpu.pipeline_mode<synchronous>, transform_indices = @transform_10, window_bounds = array<i64: 128, 1>}, {transform_indices = @transform_11, window_bounds = array<i64: 1, 128, 256>}]} {
    %c0 = arith.constant 0 : index
    %c0_0 = arith.constant 0 : index
    %c0_1 = arith.constant 0 : index
    %c0_2 = arith.constant 0 : index
    %0 = vector.load %arg2[%c0, %c0_0, %c0_1, %c0_2] : memref<1x1x3x2048xf32, #tpu.memory_space<vmem>>, vector<1x1x3x2048xf32>
    %1 = vector.shape_cast %0 : vector<1x1x3x2048xf32> to vector<3x2048xf32>
    %c0_3 = arith.constant 0 : index
    %c0_4 = arith.constant 0 : index
    %2 = vector.load %arg3[%c0_3, %c0_4] : memref<32x3xf32, #tpu.memory_space<vmem>>, vector<32x3xf32>
    %cst = arith.constant dense<0.000000e+00> : vector<32x2048xf32>
    %3 = tpu.matmul %2, %1, %cst {dimension_numbers = #tpu.dot_dimension_numbers<[1], [0], [0], [1], [0, 0, 1, 1], [], []>} : vector<32x3xf32>, vector<3x2048xf32>, vector<32x2048xf32> -> vector<32x2048xf32>
    %c0_5 = arith.constant 0 : index
    %c0_6 = arith.constant 0 : index
    %4 = vector.load %arg4[%c0_5, %c0_6] : memref<32x1xf32, #tpu.memory_space<vmem>>, vector<32x1xf32>
    %5 = vector.broadcast %4 : vector<32x1xf32> to vector<32x2048xf32>
    %6 = arith.addf %3, %5 : vector<32x2048xf32>
    %cst_7 = arith.constant 0.000000e+00 : f32
    %7 = vector.broadcast %cst_7 : f32 to vector<32x2048xf32>
    %8 = arith.maximumf %6, %7 : vector<32x2048xf32>
    %9 = vector.extract_strided_slice %8 {offsets = [0, 0], sizes = [32, 256], strides = [1, 1]} : vector<32x2048xf32> to vector<32x256xf32>
    %10 = vector.extract_strided_slice %8 {offsets = [0, 256], sizes = [32, 256], strides = [1, 1]} : vector<32x2048xf32> to vector<32x256xf32>
    %11 = arith.maximumf %9, %10 : vector<32x256xf32>
    %12 = vector.extract_strided_slice %8 {offsets = [0, 512], sizes = [32, 256], strides = [1, 1]} : vector<32x2048xf32> to vector<32x256xf32>
    %13 = arith.maximumf %11, %12 : vector<32x256xf32>
    %14 = vector.extract_strided_slice %8 {offsets = [0, 768], sizes = [32, 256], strides = [1, 1]} : vector<32x2048xf32> to vector<32x256xf32>
    %15 = arith.maximumf %13, %14 : vector<32x256xf32>
    %16 = vector.extract_strided_slice %8 {offsets = [0, 1024], sizes = [32, 256], strides = [1, 1]} : vector<32x2048xf32> to vector<32x256xf32>
    %17 = arith.maximumf %15, %16 : vector<32x256xf32>
    %18 = vector.extract_strided_slice %8 {offsets = [0, 1280], sizes = [32, 256], strides = [1, 1]} : vector<32x2048xf32> to vector<32x256xf32>
    %19 = arith.maximumf %17, %18 : vector<32x256xf32>
    %20 = vector.extract_strided_slice %8 {offsets = [0, 1536], sizes = [32, 256], strides = [1, 1]} : vector<32x2048xf32> to vector<32x256xf32>
    %21 = arith.maximumf %19, %20 : vector<32x256xf32>
    %22 = vector.extract_strided_slice %8 {offsets = [0, 1792], sizes = [32, 256], strides = [1, 1]} : vector<32x2048xf32> to vector<32x256xf32>
    %23 = arith.maximumf %21, %22 : vector<32x256xf32>
    %c0_8 = arith.constant 0 : index
    %c0_9 = arith.constant 0 : index
    %24 = vector.load %arg5[%c0_8, %c0_9] : memref<32x32xf32, #tpu.memory_space<vmem>>, vector<32x32xf32>
    %cst_10 = arith.constant dense<0.000000e+00> : vector<32x2048xf32>
    %25 = tpu.matmul %24, %8, %cst_10 {dimension_numbers = #tpu.dot_dimension_numbers<[1], [0], [0], [1], [0, 0, 1, 1], [], []>} : vector<32x32xf32>, vector<32x2048xf32>, vector<32x2048xf32> -> vector<32x2048xf32>
    %c0_11 = arith.constant 0 : index
    %c0_12 = arith.constant 0 : index
    %26 = vector.load %arg6[%c0_11, %c0_12] : memref<32x1xf32, #tpu.memory_space<vmem>>, vector<32x1xf32>
    %27 = vector.broadcast %26 : vector<32x1xf32> to vector<32x2048xf32>
    %28 = arith.addf %25, %27 : vector<32x2048xf32>
    %cst_13 = arith.constant 0.000000e+00 : f32
    %29 = vector.broadcast %cst_13 : f32 to vector<32x2048xf32>
    %30 = arith.maximumf %28, %29 : vector<32x2048xf32>
    %31 = vector.extract_strided_slice %30 {offsets = [0, 0], sizes = [32, 256], strides = [1, 1]} : vector<32x2048xf32> to vector<32x256xf32>
    %32 = vector.extract_strided_slice %30 {offsets = [0, 256], sizes = [32, 256], strides = [1, 1]} : vector<32x2048xf32> to vector<32x256xf32>
    %33 = arith.maximumf %31, %32 : vector<32x256xf32>
    %34 = vector.extract_strided_slice %30 {offsets = [0, 512], sizes = [32, 256], strides = [1, 1]} : vector<32x2048xf32> to vector<32x256xf32>
    %35 = arith.maximumf %33, %34 : vector<32x256xf32>
    %36 = vector.extract_strided_slice %30 {offsets = [0, 768], sizes = [32, 256], strides = [1, 1]} : vector<32x2048xf32> to vector<32x256xf32>
    %37 = arith.maximumf %35, %36 : vector<32x256xf32>
    %38 = vector.extract_strided_slice %30 {offsets = [0, 1024], sizes = [32, 256], strides = [1, 1]} : vector<32x2048xf32> to vector<32x256xf32>
    %39 = arith.maximumf %37, %38 : vector<32x256xf32>
    %40 = vector.extract_strided_slice %30 {offsets = [0, 1280], sizes = [32, 256], strides = [1, 1]} : vector<32x2048xf32> to vector<32x256xf32>
    %41 = arith.maximumf %39, %40 : vector<32x256xf32>
    %42 = vector.extract_strided_slice %30 {offsets = [0, 1536], sizes = [32, 256], strides = [1, 1]} : vector<32x2048xf32> to vector<32x256xf32>
    %43 = arith.maximumf %41, %42 : vector<32x256xf32>
    %44 = vector.extract_strided_slice %30 {offsets = [0, 1792], sizes = [32, 256], strides = [1, 1]} : vector<32x2048xf32> to vector<32x256xf32>
    %45 = arith.maximumf %43, %44 : vector<32x256xf32>
    %c0_14 = arith.constant 0 : index
    %c0_15 = arith.constant 0 : index
    %46 = vector.load %arg7[%c0_14, %c0_15] : memref<64x32xf32, #tpu.memory_space<vmem>>, vector<64x32xf32>
    %cst_16 = arith.constant dense<0.000000e+00> : vector<64x2048xf32>
    %47 = tpu.matmul %46, %30, %cst_16 {dimension_numbers = #tpu.dot_dimension_numbers<[1], [0], [0], [1], [0, 0, 1, 1], [], []>} : vector<64x32xf32>, vector<32x2048xf32>, vector<64x2048xf32> -> vector<64x2048xf32>
    %c0_17 = arith.constant 0 : index
    %c0_18 = arith.constant 0 : index
    %48 = vector.load %arg8[%c0_17, %c0_18] : memref<64x1xf32, #tpu.memory_space<vmem>>, vector<64x1xf32>
    %49 = vector.broadcast %48 : vector<64x1xf32> to vector<64x2048xf32>
    %50 = arith.addf %47, %49 : vector<64x2048xf32>
    %cst_19 = arith.constant 0.000000e+00 : f32
    %51 = vector.broadcast %cst_19 : f32 to vector<64x2048xf32>
    %52 = arith.maximumf %50, %51 : vector<64x2048xf32>
    %53 = vector.extract_strided_slice %52 {offsets = [0, 0], sizes = [64, 256], strides = [1, 1]} : vector<64x2048xf32> to vector<64x256xf32>
    %54 = vector.extract_strided_slice %52 {offsets = [0, 256], sizes = [64, 256], strides = [1, 1]} : vector<64x2048xf32> to vector<64x256xf32>
    %55 = arith.maximumf %53, %54 : vector<64x256xf32>
    %56 = vector.extract_strided_slice %52 {offsets = [0, 512], sizes = [64, 256], strides = [1, 1]} : vector<64x2048xf32> to vector<64x256xf32>
    %57 = arith.maximumf %55, %56 : vector<64x256xf32>
    %58 = vector.extract_strided_slice %52 {offsets = [0, 768], sizes = [64, 256], strides = [1, 1]} : vector<64x2048xf32> to vector<64x256xf32>
    %59 = arith.maximumf %57, %58 : vector<64x256xf32>
    %60 = vector.extract_strided_slice %52 {offsets = [0, 1024], sizes = [64, 256], strides = [1, 1]} : vector<64x2048xf32> to vector<64x256xf32>
    %61 = arith.maximumf %59, %60 : vector<64x256xf32>
    %62 = vector.extract_strided_slice %52 {offsets = [0, 1280], sizes = [64, 256], strides = [1, 1]} : vector<64x2048xf32> to vector<64x256xf32>
    %63 = arith.maximumf %61, %62 : vector<64x256xf32>
    %64 = vector.extract_strided_slice %52 {offsets = [0, 1536], sizes = [64, 256], strides = [1, 1]} : vector<64x2048xf32> to vector<64x256xf32>
    %65 = arith.maximumf %63, %64 : vector<64x256xf32>
    %66 = vector.extract_strided_slice %52 {offsets = [0, 1792], sizes = [64, 256], strides = [1, 1]} : vector<64x2048xf32> to vector<64x256xf32>
    %67 = arith.maximumf %65, %66 : vector<64x256xf32>
    %c0_20 = arith.constant 0 : index
    %c0_21 = arith.constant 0 : index
    %68 = vector.load %arg9[%c0_20, %c0_21] : memref<128x64xf32, #tpu.memory_space<vmem>>, vector<128x64xf32>
    %cst_22 = arith.constant dense<0.000000e+00> : vector<128x2048xf32>
    %69 = tpu.matmul %68, %52, %cst_22 {dimension_numbers = #tpu.dot_dimension_numbers<[1], [0], [0], [1], [0, 0, 1, 1], [], []>} : vector<128x64xf32>, vector<64x2048xf32>, vector<128x2048xf32> -> vector<128x2048xf32>
    %c0_23 = arith.constant 0 : index
    %c0_24 = arith.constant 0 : index
    %70 = vector.load %arg10[%c0_23, %c0_24] : memref<128x1xf32, #tpu.memory_space<vmem>>, vector<128x1xf32>
    %71 = vector.broadcast %70 : vector<128x1xf32> to vector<128x2048xf32>
    %72 = arith.addf %69, %71 : vector<128x2048xf32>
    %cst_25 = arith.constant 0.000000e+00 : f32
    %73 = vector.broadcast %cst_25 : f32 to vector<128x2048xf32>
    %74 = arith.maximumf %72, %73 : vector<128x2048xf32>
    %75 = vector.extract_strided_slice %74 {offsets = [0, 0], sizes = [128, 256], strides = [1, 1]} : vector<128x2048xf32> to vector<128x256xf32>
    %76 = vector.extract_strided_slice %74 {offsets = [0, 256], sizes = [128, 256], strides = [1, 1]} : vector<128x2048xf32> to vector<128x256xf32>
    %77 = arith.maximumf %75, %76 : vector<128x256xf32>
    %78 = vector.extract_strided_slice %74 {offsets = [0, 512], sizes = [128, 256], strides = [1, 1]} : vector<128x2048xf32> to vector<128x256xf32>
    %79 = arith.maximumf %77, %78 : vector<128x256xf32>
    %80 = vector.extract_strided_slice %74 {offsets = [0, 768], sizes = [128, 256], strides = [1, 1]} : vector<128x2048xf32> to vector<128x256xf32>
    %81 = arith.maximumf %79, %80 : vector<128x256xf32>
    %82 = vector.extract_strided_slice %74 {offsets = [0, 1024], sizes = [128, 256], strides = [1, 1]} : vector<128x2048xf32> to vector<128x256xf32>
    %83 = arith.maximumf %81, %82 : vector<128x256xf32>
    %84 = vector.extract_strided_slice %74 {offsets = [0, 1280], sizes = [128, 256], strides = [1, 1]} : vector<128x2048xf32> to vector<128x256xf32>
    %85 = arith.maximumf %83, %84 : vector<128x256xf32>
    %86 = vector.extract_strided_slice %74 {offsets = [0, 1536], sizes = [128, 256], strides = [1, 1]} : vector<128x2048xf32> to vector<128x256xf32>
    %87 = arith.maximumf %85, %86 : vector<128x256xf32>
    %88 = vector.extract_strided_slice %74 {offsets = [0, 1792], sizes = [128, 256], strides = [1, 1]} : vector<128x2048xf32> to vector<128x256xf32>
    %89 = arith.maximumf %87, %88 : vector<128x256xf32>
    %90 = tpu.concatenate %23, %45, %67, %89 in 0 : vector<32x256xf32>, vector<32x256xf32>, vector<64x256xf32>, vector<128x256xf32> -> vector<256x256xf32>
    %c0_26 = arith.constant 0 : index
    %c0_27 = arith.constant 0 : index
    %91 = vector.load %arg11[%c0_26, %c0_27] : memref<128x256xf32, #tpu.memory_space<vmem>>, vector<128x256xf32>
    %cst_28 = arith.constant dense<0.000000e+00> : vector<128x256xf32>
    %92 = tpu.matmul %91, %90, %cst_28 {dimension_numbers = #tpu.dot_dimension_numbers<[1], [0], [0], [1], [0, 0, 1, 1], [], []>} : vector<128x256xf32>, vector<256x256xf32>, vector<128x256xf32> -> vector<128x256xf32>
    %c0_29 = arith.constant 0 : index
    %c0_30 = arith.constant 0 : index
    %93 = vector.load %arg12[%c0_29, %c0_30] : memref<128x1xf32, #tpu.memory_space<vmem>>, vector<128x1xf32>
    %94 = vector.broadcast %93 : vector<128x1xf32> to vector<128x256xf32>
    %95 = arith.addf %92, %94 : vector<128x256xf32>
    %cst_31 = arith.constant 0.000000e+00 : f32
    %96 = vector.broadcast %cst_31 : f32 to vector<128x256xf32>
    %97 = arith.maximumf %95, %96 : vector<128x256xf32>
    %c0_32 = arith.constant 0 : index
    %c0_33 = arith.constant 0 : index
    %c0_34 = arith.constant 0 : index
    %98 = vector.load %arg13[%c0_32, %c0_33, %c0_34] : memref<1x128x256xf32, #tpu.memory_space<vmem>>, vector<1x128x256xf32>
    %99 = vector.shape_cast %98 : vector<1x128x256xf32> to vector<128x256xf32>
    %100 = vector.shape_cast %97 : vector<128x256xf32> to vector<1x128x256xf32>
    tpu.vector_store %arg13[%c0_32, %c0_33, %c0_34], %100 {strides = array<i32>} : memref<1x128x256xf32, #tpu.memory_space<vmem>>, vector<1x128x256xf32>,
    return
  }
  func.func @transform_0(%arg0: i32, %arg1: i32) -> (i32, i32, i32, i32) {
    %c0_i32 = arith.constant 0 : i32
    %c0_i32_0 = arith.constant 0 : i32
    %c0_i32_1 = arith.constant 0 : i32
    return %arg0, %arg1, %c0_i32, %c0_i32_0 : i32, i32, i32, i32
  }
  func.func @transform_1(%arg0: i32, %arg1: i32) -> (i32, i32) {
    %c0_i32 = arith.constant 0 : i32
    %c0_i32_0 = arith.constant 0 : i32
    %c0_i32_1 = arith.constant 0 : i32
    return %c0_i32, %c0_i32_0 : i32, i32
  }
  func.func @transform_2(%arg0: i32, %arg1: i32) -> (i32, i32) {
    %c0_i32 = arith.constant 0 : i32
    %c0_i32_0 = arith.constant 0 : i32
    %c0_i32_1 = arith.constant 0 : i32
    return %c0_i32, %c0_i32_0 : i32, i32
  }
  func.func @transform_3(%arg0: i32, %arg1: i32) -> (i32, i32) {
    %c0_i32 = arith.constant 0 : i32
    %c0_i32_0 = arith.constant 0 : i32
    %c0_i32_1 = arith.constant 0 : i32
    return %c0_i32, %c0_i32_0 : i32, i32
  }
  func.func @transform_4(%arg0: i32, %arg1: i32) -> (i32, i32) {
    %c0_i32 = arith.constant 0 : i32
    %c0_i32_0 = arith.constant 0 : i32
    %c0_i32_1 = arith.constant 0 : i32
    return %c0_i32, %c0_i32_0 : i32, i32
  }
  func.func @transform_5(%arg0: i32, %arg1: i32) -> (i32, i32) {
    %c0_i32 = arith.constant 0 : i32
    %c0_i32_0 = arith.constant 0 : i32
    %c0_i32_1 = arith.constant 0 : i32
    return %c0_i32, %c0_i32_0 : i32, i32
  }
  func.func @transform_6(%arg0: i32, %arg1: i32) -> (i32, i32) {
    %c0_i32 = arith.constant 0 : i32
    %c0_i32_0 = arith.constant 0 : i32
    %c0_i32_1 = arith.constant 0 : i32
    return %c0_i32, %c0_i32_0 : i32, i32
  }
  func.func @transform_7(%arg0: i32, %arg1: i32) -> (i32, i32) {
    %c0_i32 = arith.constant 0 : i32
    %c0_i32_0 = arith.constant 0 : i32
    %c0_i32_1 = arith.constant 0 : i32
    return %c0_i32, %c0_i32_0 : i32, i32
  }
  func.func @transform_8(%arg0: i32, %arg1: i32) -> (i32, i32) {
    %c0_i32 = arith.constant 0 : i32
    %c0_i32_0 = arith.constant 0 : i32
    %c0_i32_1 = arith.constant 0 : i32
    return %c0_i32, %c0_i32_0 : i32, i32
  }
  func.func @transform_9(%arg0: i32, %arg1: i32) -> (i32, i32) {
    %c0_i32 = arith.constant 0 : i32
    %c0_i32_0 = arith.constant 0 : i32
    %c0_i32_1 = arith.constant 0 : i32
    return %c0_i32, %c0_i32_0 : i32, i32
  }
  func.func @transform_10(%arg0: i32, %arg1: i32) -> (i32, i32) {
    %c0_i32 = arith.constant 0 : i32
    %c0_i32_0 = arith.constant 0 : i32
    %c0_i32_1 = arith.constant 0 : i32
    return %c0_i32, %c0_i32_0 : i32, i32
  }
  func.func @transform_11(%arg0: i32, %arg1: i32) -> (i32, i32, i32) {
    %c0_i32 = arith.constant 0 : i32
    %c0_i32_0 = arith.constant 0 : i32
    return %arg0, %c0_i32, %arg1 : i32, i32, i32
  }
}

</mosaic_0001>

<llo_original>
// kernel: tpu_custom_call.1
$region0: #{tpu_custom_call.1}
  #allocation0 [shape = 'u32[]', space=smem, size = 0x4, offset = 0x4, fixed_abs, tag = 'smem constant byte address 0x4 - core index']
  #allocation1 [shape = 'u32[144,128]{1,0:T(1,128)}', space=vmem, size = 0x12000, scoped, tag = 'internal scratch']
  %s0 = inlined_call_operand.vmem [shape: f32[2,1,3,2048], index: 0, kind: input, shape index: {}]
  %s1 = inlined_call_operand.vmem [shape: f32[32,3], index: 1, kind: input, shape index: {}]
  %s2 = inlined_call_operand.vmem [shape: f32[32,1], index: 2, kind: input, shape index: {}]
  %s3 = inlined_call_operand.vmem [shape: f32[32,32], index: 3, kind: input, shape index: {}]
  %s4 = inlined_call_operand.vmem [shape: f32[32,1], index: 4, kind: input, shape index: {}]
  %s5 = inlined_call_operand.vmem [shape: f32[64,32], index: 5, kind: input, shape index: {}]
  %s6 = inlined_call_operand.vmem [shape: f32[64,1], index: 6, kind: input, shape index: {}]
  %s7 = inlined_call_operand.vmem [shape: f32[128,64], index: 7, kind: input, shape index: {}]
  %s8 = inlined_call_operand.vmem [shape: f32[128,1], index: 8, kind: input, shape index: {}]
  %s9 = inlined_call_operand.vmem [shape: f32[128,256], index: 9, kind: input, shape index: {}]
  %s10 = inlined_call_operand.vmem [shape: f32[128,1], index: 10, kind: input, shape index: {}]
  %s11 = inlined_call_operand.hbm [shape: f32[2,128,256], index: 11, kind: output, shape index: {}]
  %s12 = sld [smem:[#allocation0]]
  $region77: #{tpu_custom_call.1} parent=0
    _
  %s14 = ssub.s32 1, %s12
  %s15 = scalar_select 0, %s14, %s12
  $region1: #{tpu_custom_call.1} parent=0
    #allocation2 [shape = 'u8[262144]{0}', space=vmem, size = 0x40000, scoped, tag = 'output window, operand 0']
    #allocation3 [shape = 's32[2]{0}', space=sflag, size = 0x8, scoped, tag = 'scoped memory for tpu_custom_call.1']
    %16 = vsyncpa [#allocation3], 0
    %s17 = scalar_lea.sflag [#allocation3], 1
    %18 = vsyncpa %s17, 0
    loop: start=0, step=1, limit=4
    $region2: #{tpu_custom_call.1} parent=1 // loop_pre_header
      _
    $region3: #{tpu_custom_call.1} parent=1 // loop_header
      %s20 = sphi 0, %s24
      %p21 = scmp.ge.s32.totalorder %s20, 4
      %s27 = sphi 0, %s39
      %s28 = sphi 0, %s35
      %s29 = sphi 0, %s27
      %s30 = sphi 0, %s28
      %s31 = sphi 0, %s29
      %s32 = sphi 0, %s30
      %s44 = sphi 0, %s46
      %s47 = sphi 0, %s44
      %s48 = sphi 0, %s47
      %s64 = sphi 0, %s48
      %s68 = sphi 0, %s68
      %s70 = sphi 0, %s68
      %s71 = sphi 0, %s70
      %s85 = sphi 0, %s71
      %s89 = sphi 0, %s89
      %s91 = sphi 0, %s89
      %s92 = sphi 0, %s91
      %s106 = sphi 0, %s92
      %s110 = sphi 0, %s110
      %s112 = sphi 0, %s110
      %s113 = sphi 0, %s112
      %s127 = sphi 0, %s113
      %s131 = sphi 0, %s131
      %s133 = sphi 0, %s131
      %s134 = sphi 0, %s133
      %s148 = sphi 0, %s134
      %s152 = sphi 0, %s152
      %s154 = sphi 0, %s152
      %s155 = sphi 0, %s154
      %s169 = sphi 0, %s155
      %s173 = sphi 0, %s173
      %s175 = sphi 0, %s173
      %s176 = sphi 0, %s175
      %s190 = sphi 0, %s176
      %s194 = sphi 0, %s194
      %s196 = sphi 0, %s194
      %s197 = sphi 0, %s196
      %s211 = sphi 0, %s197
      %s215 = sphi 0, %s215
      %s217 = sphi 0, %s215
      %s218 = sphi 0, %s217
      %s232 = sphi 0, %s218
      %s236 = sphi 0, %s236
      %s238 = sphi 0, %s236
      %s239 = sphi 0, %s238
      %s253 = sphi 0, %s239
      %s257 = sphi 0, %s257
      %s259 = sphi 0, %s257
      %s260 = sphi 0, %s259
      %s274 = sphi 0, %s260
      %s282 = sphi 0, %s284
      %s285 = sphi 0, %s282
      %s286 = sphi 0, %s285
      %s302 = sphi 0, %s286
    $region4: #{tpu_custom_call.1} parent=1 // loop_header_branch
      %23 = sbr.rel (%p21) target = $region8
    $region5: #{tpu_custom_call.1} parent=1 // loop_body
      %s25 = ssub.s32 %s20, 1
      %s26 = ssub.s32 %s20, 2
      %s33 = sadd.s32 1, %s28
      %p34 = scmp.ge.s32.totalorder %s33, 1
      %s35 = scalar_select %p34, 0, %s33
      %s36 = sadd.s32 1, %s27
      %s37 = scalar_select %p34, %s36, %s27
      %p38 = scmp.ge.s32.totalorder %s37, 2
      %s39 = scalar_select %p38, 0, %s37
      %s40 = ssub.s32 %s27, %s39
      %s41 = ssub.s32 %s28, %s35
      %s42 = sor.u32 %s40, %s41
      %p43 = scmp.eq.s32.totalorder %s42, 0
      %s45 = sadd.s32 %s44, 1
      %s46 = scalar_select %p43, %s44, %s45
      %p49 = pneg %p43
      %p50 = scmp.eq.s32.totalorder %s20, 1
      %p51 = por %p49, %p50
      %p52 = scmp.ne.s32.totalorder %s44, %s47
      %p53 = scmp.eq.s32.totalorder %s20, 0
      %p54 = por %p52, %p53
      %p55 = scmp.ne.s32.totalorder %s44, %s47
      %p56 = scmp.eq.s32.totalorder %s25, 1
      %p57 = por %p55, %p56
      %p58 = scmp.ne.s32.totalorder %s47, %s48
      %p59 = scmp.eq.s32.totalorder %s25, 0
      %p60 = por %p58, %p59
      %p61 = scmp.ne.s32.totalorder %s47, %s48
      %p62 = scmp.eq.s32.totalorder %s26, 1
      %p63 = por %p61, %p62
      %p65 = scmp.ne.s32.totalorder %s48, %s64
      %p66 = scmp.eq.s32.totalorder %s26, 0
      %p67 = por %p65, %p66
      %s69 = sadd.s32 %s68, 1
      %p72 = scmp.eq.s32.totalorder %s20, 1
      %p73 = scmp.ne.s32.totalorder %s68, %s70
      %p74 = scmp.eq.s32.totalorder %s20, 0
      %p75 = por %p73, %p74
      %p76 = scmp.ne.s32.totalorder %s68, %s70
      %p77 = scmp.eq.s32.totalorder %s25, 1
      %p78 = por %p76, %p77
      %p79 = scmp.ne.s32.totalorder %s70, %s71
      %p80 = scmp.eq.s32.totalorder %s25, 0
      %p81 = por %p79, %p80
      %p82 = scmp.ne.s32.totalorder %s70, %s71
      %p83 = scmp.eq.s32.totalorder %s26, 1
      %p84 = por %p82, %p83
      %p86 = scmp.ne.s32.totalorder %s71, %s85
      %p87 = scmp.eq.s32.totalorder %s26, 0
      %p88 = por %p86, %p87
      %s90 = sadd.s32 %s89, 1
      %p93 = scmp.eq.s32.totalorder %s20, 1
      %p94 = scmp.ne.s32.totalorder %s89, %s91
      %p95 = scmp.eq.s32.totalorder %s20, 0
      %p96 = por %p94, %p95
      %p97 = scmp.ne.s32.totalorder %s89, %s91
      %p98 = scmp.eq.s32.totalorder %s25, 1
      %p99 = por %p97, %p98
      %p100 = scmp.ne.s32.totalorder %s91, %s92
      %p101 = scmp.eq.s32.totalorder %s25, 0
      %p102 = por %p100, %p101
      %p103 = scmp.ne.s32.totalorder %s91, %s92
      %p104 = scmp.eq.s32.totalorder %s26, 1
      %p105 = por %p103, %p104
      %p107 = scmp.ne.s32.totalorder %s92, %s106
      %p108 = scmp.eq.s32.totalorder %s26, 0
      %p109 = por %p107, %p108
      %s111 = sadd.s32 %s110, 1
      %p114 = scmp.eq.s32.totalorder %s20, 1
      %p115 = scmp.ne.s32.totalorder %s110, %s112
      %p116 = scmp.eq.s32.totalorder %s20, 0
      %p117 = por %p115, %p116
      %p118 = scmp.ne.s32.totalorder %s110, %s112
      %p119 = scmp.eq.s32.totalorder %s25, 1
      %p120 = por %p118, %p119
      %p121 = scmp.ne.s32.totalorder %s112, %s113
      %p122 = scmp.eq.s32.totalorder %s25, 0
      %p123 = por %p121, %p122
      %p124 = scmp.ne.s32.totalorder %s112, %s113
      %p125 = scmp.eq.s32.totalorder %s26, 1
      %p126 = por %p124, %p125
      %p128 = scmp.ne.s32.totalorder %s113, %s127
      %p129 = scmp.eq.s32.totalorder %s26, 0
      %p130 = por %p128, %p129
      %s132 = sadd.s32 %s131, 1
      %p135 = scmp.eq.s32.totalorder %s20, 1
      %p136 = scmp.ne.s32.totalorder %s131, %s133
      %p137 = scmp.eq.s32.totalorder %s20, 0
      %p138 = por %p136, %p137
      %p139 = scmp.ne.s32.totalorder %s131, %s133
      %p140 = scmp.eq.s32.totalorder %s25, 1
      %p141 = por %p139, %p140
      %p142 = scmp.ne.s32.totalorder %s133, %s134
      %p143 = scmp.eq.s32.totalorder %s25, 0
      %p144 = por %p142, %p143
      %p145 = scmp.ne.s32.totalorder %s133, %s134
      %p146 = scmp.eq.s32.totalorder %s26, 1
      %p147 = por %p145, %p146
      %p149 = scmp.ne.s32.totalorder %s134, %s148
      %p150 = scmp.eq.s32.totalorder %s26, 0
      %p151 = por %p149, %p150
      %s153 = sadd.s32 %s152, 1
      %p156 = scmp.eq.s32.totalorder %s20, 1
      %p157 = scmp.ne.s32.totalorder %s152, %s154
      %p158 = scmp.eq.s32.totalorder %s20, 0
      %p159 = por %p157, %p158
      %p160 = scmp.ne.s32.totalorder %s152, %s154
      %p161 = scmp.eq.s32.totalorder %s25, 1
      %p162 = por %p160, %p161
      %p163 = scmp.ne.s32.totalorder %s154, %s155
      %p164 = scmp.eq.s32.totalorder %s25, 0
      %p165 = por %p163, %p164
      %p166 = scmp.ne.s32.totalorder %s154, %s155
      %p167 = scmp.eq.s32.totalorder %s26, 1
      %p168 = por %p166, %p167
      %p170 = scmp.ne.s32.totalorder %s155, %s169
      %p171 = scmp.eq.s32.totalorder %s26, 0
      %p172 = por %p170, %p171
      %s174 = sadd.s32 %s173, 1
      %p177 = scmp.eq.s32.totalorder %s20, 1
      %p178 = scmp.ne.s32.totalorder %s173, %s175
      %p179 = scmp.eq.s32.totalorder %s20, 0
      %p180 = por %p178, %p179
      %p181 = scmp.ne.s32.totalorder %s173, %s175
      %p182 = scmp.eq.s32.totalorder %s25, 1
      %p183 = por %p181, %p182
      %p184 = scmp.ne.s32.totalorder %s175, %s176
      %p185 = scmp.eq.s32.totalorder %s25, 0
      %p186 = por %p184, %p185
      %p187 = scmp.ne.s32.totalorder %s175, %s176
      %p188 = scmp.eq.s32.totalorder %s26, 1
      %p189 = por %p187, %p188
      %p191 = scmp.ne.s32.totalorder %s176, %s190
      %p192 = scmp.eq.s32.totalorder %s26, 0
      %p193 = por %p191, %p192
      %s195 = sadd.s32 %s194, 1
      %p198 = scmp.eq.s32.totalorder %s20, 1
      %p199 = scmp.ne.s32.totalorder %s194, %s196
      %p200 = scmp.eq.s32.totalorder %s20, 0
      %p201 = por %p199, %p200
      %p202 = scmp.ne.s32.totalorder %s194, %s196
      %p203 = scmp.eq.s32.totalorder %s25, 1
      %p204 = por %p202, %p203
      %p205 = scmp.ne.s32.totalorder %s196, %s197
      %p206 = scmp.eq.s32.totalorder %s25, 0
      %p207 = por %p205, %p206
      %p208 = scmp.ne.s32.totalorder %s196, %s197
      %p209 = scmp.eq.s32.totalorder %s26, 1
      %p210 = por %p208, %p209
      %p212 = scmp.ne.s32.totalorder %s197, %s211
      %p213 = scmp.eq.s32.totalorder %s26, 0
      %p214 = por %p212, %p213
      %s216 = sadd.s32 %s215, 1
      %p219 = scmp.eq.s32.totalorder %s20, 1
      %p220 = scmp.ne.s32.totalorder %s215, %s217
      %p221 = scmp.eq.s32.totalorder %s20, 0
      %p222 = por %p220, %p221
      %p223 = scmp.ne.s32.totalorder %s215, %s217
      %p224 = scmp.eq.s32.totalorder %s25, 1
      %p225 = por %p223, %p224
      %p226 = scmp.ne.s32.totalorder %s217, %s218
      %p227 = scmp.eq.s32.totalorder %s25, 0
      %p228 = por %p226, %p227
      %p229 = scmp.ne.s32.totalorder %s217, %s218
      %p230 = scmp.eq.s32.totalorder %s26, 1
      %p231 = por %p229, %p230
      %p233 = scmp.ne.s32.totalorder %s218, %s232
      %p234 = scmp.eq.s32.totalorder %s26, 0
      %p235 = por %p233, %p234
      %s237 = sadd.s32 %s236, 1
      %p240 = scmp.eq.s32.totalorder %s20, 1
      %p241 = scmp.ne.s32.totalorder %s236, %s238
      %p242 = scmp.eq.s32.totalorder %s20, 0
      %p243 = por %p241, %p242
      %p244 = scmp.ne.s32.totalorder %s236, %s238
      %p245 = scmp.eq.s32.totalorder %s25, 1
      %p246 = por %p244, %p245
      %p247 = scmp.ne.s32.totalorder %s238, %s239
      %p248 = scmp.eq.s32.totalorder %s25, 0
      %p249 = por %p247, %p248
      %p250 = scmp.ne.s32.totalorder %s238, %s239
      %p251 = scmp.eq.s32.totalorder %s26, 1
      %p252 = por %p250, %p251
      %p254 = scmp.ne.s32.totalorder %s239, %s253
      %p255 = scmp.eq.s32.totalorder %s26, 0
      %p256 = por %p254, %p255
      %s258 = sadd.s32 %s257, 1
      %p261 = scmp.eq.s32.totalorder %s20, 1
      %p262 = scmp.ne.s32.totalorder %s257, %s259
      %p263 = scmp.eq.s32.totalorder %s20, 0
      %p264 = por %p262, %p263
      %p265 = scmp.ne.s32.totalorder %s257, %s259
      %p266 = scmp.eq.s32.totalorder %s25, 1
      %p267 = por %p265, %p266
      %p268 = scmp.ne.s32.totalorder %s259, %s260
      %p269 = scmp.eq.s32.totalorder %s25, 0
      %p270 = por %p268, %p269
      %p271 = scmp.ne.s32.totalorder %s259, %s260
      %p272 = scmp.eq.s32.totalorder %s26, 1
      %p273 = por %p271, %p272
      %p275 = scmp.ne.s32.totalorder %s260, %s274
      %p276 = scmp.eq.s32.totalorder %s26, 0
      %p277 = por %p275, %p276
      %s278 = ssub.s32 %s27, %s39
      %s279 = ssub.s32 %s28, %s35
      %s280 = sor.u32 %s278, %s279
      %p281 = scmp.eq.s32.totalorder %s280, 0
      %s283 = sadd.s32 %s282, 1
      %s284 = scalar_select %p281, %s282, %s283
      %p287 = pneg %p281
      %p288 = scmp.eq.s32.totalorder %s20, 1
      %p289 = por %p287, %p288
      %p290 = scmp.ne.s32.totalorder %s282, %s285
      %p291 = scmp.eq.s32.totalorder %s20, 0
      %p292 = por %p290, %p291
      %p293 = scmp.ne.s32.totalorder %s282, %s285
      %p294 = scmp.eq.s32.totalorder %s25, 1
      %p295 = por %p293, %p294
      %p296 = scmp.ne.s32.totalorder %s285, %s286
      %p297 = scmp.eq.s32.totalorder %s25, 0
      %p298 = por %p296, %p297
      %p299 = scmp.ne.s32.totalorder %s285, %s286
      %p300 = scmp.eq.s32.totalorder %s26, 1
      %p301 = por %p299, %p300
      %p303 = scmp.ne.s32.totalorder %s286, %s302
      %p304 = scmp.eq.s32.totalorder %s26, 0
      %p305 = por %p303, %p304
      %p306 = scmp.le.s32.totalorder 1, %s20
      %p307 = scmp.lt.s32.totalorder %s20, 3
      %p308 = pnand %p306, %p307
      %p309 = pneg %p308
      // Predicated region
      $region9: #{tpu_custom_call.1} parent=5 // pred_check
        _
      $region10: #{tpu_custom_call.1} parent=5 // pred_check_branch
        %311 = sbr.rel (%p308) target = $region12
      $region11: #{tpu_custom_call.1} parent=5 // pred_region
        %s312 = ssub.s32 %s20, 1
        // Predicated region
        $region13: #{tpu_custom_call.1} parent=11 // pred_check
          %p313 = pneg %p81
        $region14: #{tpu_custom_call.1} parent=11 // pred_check_branch
          %315 = sbr.rel (%p313) target = $region16
        $region15: #{tpu_custom_call.1} parent=11 // pred_region
          _
        $region16: #{tpu_custom_call.1} parent=11 // pred_fallthru
          _
        // Predicated region
        $region17: #{tpu_custom_call.1} parent=11 // pred_check
          %p316 = pneg %p102
        $region18: #{tpu_custom_call.1} parent=11 // pred_check_branch
          %318 = sbr.rel (%p316) target = $region20
        $region19: #{tpu_custom_call.1} parent=11 // pred_region
          _
        $region20: #{tpu_custom_call.1} parent=11 // pred_fallthru
          _
        // Predicated region
        $region21: #{tpu_custom_call.1} parent=11 // pred_check
          %p319 = pneg %p123
        $region22: #{tpu_custom_call.1} parent=11 // pred_check_branch
          %321 = sbr.rel (%p319) target = $region24
        $region23: #{tpu_custom_call.1} parent=11 // pred_region
          _
        $region24: #{tpu_custom_call.1} parent=11 // pred_fallthru
          _
        // Predicated region
        $region25: #{tpu_custom_call.1} parent=11 // pred_check
          %p322 = pneg %p144
        $region26: #{tpu_custom_call.1} parent=11 // pred_check_branch
          %324 = sbr.rel (%p322) target = $region28
        $region27: #{tpu_custom_call.1} parent=11 // pred_region
          _
        $region28: #{tpu_custom_call.1} parent=11 // pred_fallthru
          _
        // Predicated region
        $region29: #{tpu_custom_call.1} parent=11 // pred_check
          %p325 = pneg %p165
        $region30: #{tpu_custom_call.1} parent=11 // pred_check_branch
          %327 = sbr.rel (%p325) target = $region32
        $region31: #{tpu_custom_call.1} parent=11 // pred_region
          _
        $region32: #{tpu_custom_call.1} parent=11 // pred_fallthru
          _
        // Predicated region
        $region33: #{tpu_custom_call.1} parent=11 // pred_check
          %p328 = pneg %p186
        $region34: #{tpu_custom_call.1} parent=11 // pred_check_branch
          %330 = sbr.rel (%p328) target = $region36
        $region35: #{tpu_custom_call.1} parent=11 // pred_region
          _
        $region36: #{tpu_custom_call.1} parent=11 // pred_fallthru
          _
        // Predicated region
        $region37: #{tpu_custom_call.1} parent=11 // pred_check
          %p331 = pneg %p207
        $region38: #{tpu_custom_call.1} parent=11 // pred_check_branch
          %333 = sbr.rel (%p331) target = $region40
        $region39: #{tpu_custom_call.1} parent=11 // pred_region
          _
        $region40: #{tpu_custom_call.1} parent=11 // pred_fallthru
          _
        // Predicated region
        $region41: #{tpu_custom_call.1} parent=11 // pred_check
          %p334 = pneg %p228
        $region42: #{tpu_custom_call.1} parent=11 // pred_check_branch
          %336 = sbr.rel (%p334) target = $region44
        $region43: #{tpu_custom_call.1} parent=11 // pred_region
          _
        $region44: #{tpu_custom_call.1} parent=11 // pred_fallthru
          _
        // Predicated region
        $region45: #{tpu_custom_call.1} parent=11 // pred_check
          %p337 = pneg %p249
        $region46: #{tpu_custom_call.1} parent=11 // pred_check_branch
          %339 = sbr.rel (%p337) target = $region48
        $region47: #{tpu_custom_call.1} parent=11 // pred_region
          _
        $region48: #{tpu_custom_call.1} parent=11 // pred_fallthru
          _
        // Predicated region
        $region49: #{tpu_custom_call.1} parent=11 // pred_check
          %p340 = pneg %p270
        $region50: #{tpu_custom_call.1} parent=11 // pred_check_branch
          %342 = sbr.rel (%p340) target = $region52
        $region51: #{tpu_custom_call.1} parent=11 // pred_region
          _
        $region52: #{tpu_custom_call.1} parent=11 // pred_fallthru
          _
      $region12: #{tpu_custom_call.1} parent=5 // pred_fallthru
        _
      %p343 = scmp.lt.s32.totalorder %s20, 2
      // Predicated region
      $region53: #{tpu_custom_call.1} parent=5 // pred_check
        %p344 = pneg %p343
      $region54: #{tpu_custom_call.1} parent=5 // pred_check_branch
        %346 = sbr.rel (%p344) target = $region56
      $region55: #{tpu_custom_call.1} parent=5 // pred_region
        // Predicated region
        $region57: #{tpu_custom_call.1} parent=55 // pred_check
          %p347 = pneg %p54
        $region58: #{tpu_custom_call.1} parent=55 // pred_check_branch
          %349 = sbr.rel (%p347) target = $region60
        $region59: #{tpu_custom_call.1} parent=55 // pred_region
          %p350 = scmp.lt.s32.totalorder %s27, 1
          %s351 = scalar_select %p350, %s27, 1
          %p352 = scmp.lt.s32.totalorder %s28, 0
          %s353 = scalar_select %p352, %s28, 0
          %s354 = smul.addr %s353, 16
          %s355 = smul.addr %s351, 16
          %s356 = sadd.s32 %s354, %s355
          %s357 = smul.addr %s356, 4
          %s358 = scalar_lea.vmem %s0, %s357
        $region60: #{tpu_custom_call.1} parent=55 // pred_fallthru
          _
      $region56: #{tpu_custom_call.1} parent=5 // pred_fallthru
        _
      %p359 = scmp.le.s32.totalorder 1, %s20
      %p360 = scmp.lt.s32.totalorder %s20, 3
      %p361 = pnand %p359, %p360
      %p362 = pneg %p361
      // Predicated region
      $region61: #{tpu_custom_call.1} parent=5 // pred_check
        _
      $region62: #{tpu_custom_call.1} parent=5 // pred_check_branch
        %364 = sbr.rel (%p361) target = $region64
      $region63: #{tpu_custom_call.1} parent=5 // pred_region
        %s365 = ssub.s32 %s20, 1
        %p366 = scmp.lt.s32.totalorder %s29, 1
        %s367 = scalar_select %p366, %s29, 1
        %p368 = scmp.lt.s32.totalorder %s30, 0
        %s369 = scalar_select %p368, %s30, 0
        %s370 = smul.addr %s369, 16
        %s371 = smul.addr %s367, 16
        %s372 = sadd.s32 %s370, %s371
        %s373 = smul.addr %s372, 4
        %s374 = scalar_lea.vmem %s0, %s373
        %p375 = pneg %p60
        %p376 = pneg %p57
        %p377 = pneg %p81
        %p378 = pneg %p78
        %p379 = pneg %p102
        %p380 = pneg %p99
        %p381 = pneg %p123
        %p382 = pneg %p120
        %p383 = pneg %p144
        %p384 = pneg %p141
        %p385 = pneg %p165
        %p386 = pneg %p162
        %p387 = pneg %p186
        %p388 = pneg %p183
        %p389 = pneg %p207
        %p390 = pneg %p204
        %p391 = pneg %p228
        %p392 = pneg %p225
        %p393 = pneg %p249
        %p394 = pneg %p246
        %p395 = pneg %p270
        %p396 = pneg %p267
        %p397 = pneg %p298
        %p398 = pneg %p295
        %s399 = sand.u32 %s285, 1
        %s400 = scalar_lea.sflag [#allocation3], %s399
        %s401 = sand.u32 %s285, 1
        %s402 = smul.addr %s401, 256
        %s403 = scalar_lea.vmem [#allocation2], %s402
        %p404 = scmp.lt.s32.totalorder %s29, 1
        %s405 = scalar_select %p404, %s29, 1
        %p406 = scmp.lt.s32.totalorder %s30, 0
        %s407 = scalar_select %p406, %s30, 0
        %s408 = smul.addr %s407, 16
        %s409 = smul.addr %s405, 16
        %s410 = sadd.s32 %s408, %s409
        %s411 = smul.addr %s410, 4
        %s412 = scalar_lea.vmem %s0, %s411
        %s413 = smul.u32 2, %s30
        %v414 = vld [vmem:[%s412] sm:$0x77]
        %v415 = vld [vmem:[%s412 + $0x8] sm:$0x77]
        %v416 = vld [vmem:[%s412 + $0x10] sm:$0x77]
        %v417 = vld [vmem:[%s412 + $0x18] sm:$0x77]
        %v418 = vld [vmem:[%s412 + $0x20] sm:$0x77]
        %v419 = vld [vmem:[%s412 + $0x28] sm:$0x77]
        %v420 = vld [vmem:[%s412 + $0x30] sm:$0x77]
        %v421 = vld [vmem:[%s412 + $0x38] sm:$0x77]
        %v422 = vld [vmem:[%s1] sm:$0xff]
        %v423 = vld [vmem:[%s1 + $0x8] sm:$0xff]
        %v424 = vld [vmem:[%s1 + $0x10] sm:$0xff]
        %v425 = vld [vmem:[%s1 + $0x18] sm:$0xff]
        %v426 = vld [vmem:[%s2] sm:$0xff]
        %v427 = vld [vmem:[%s2 + $0x8] sm:$0xff]
        %v428 = vld [vmem:[%s2 + $0x10] sm:$0xff]
        %v429 = vld [vmem:[%s2 + $0x18] sm:$0xff]
        %431 = vset.pattern.permute.xlu0 0
        %432 = vperm.xlu0 %431, %v426
        %v433 = vpop.permute.xlu0 %432
        %436 = vset.pattern.permute.xlu0 0
        %437 = vperm.xlu0 %436, %v427
        %v438 = vpop.permute.xlu0 %437
        %441 = vset.pattern.permute.xlu0 0
        %442 = vperm.xlu0 %441, %v428
        %v443 = vpop.permute.xlu0 %442
        %446 = vset.pattern.permute.xlu0 0
        %447 = vperm.xlu0 %446, %v429
        %v448 = vpop.permute.xlu0 %447
        %v458 = vcombine.high %v414, %v414
        %v459 = vcombine.high %v415, %v415
        %v460 = vcombine.high %v416, %v416
        %v461 = vcombine.high %v417, %v417
        %v462 = vcombine.high %v418, %v418
        %v463 = vcombine.high %v419, %v419
        %v464 = vcombine.high %v420, %v420
        %v465 = vcombine.high %v421, %v421
        %vm466 = vcmask 23552
        %v468 = vsel %vm466, %v422, 0
        %v471 = vsel %vm466, %v423, 0
        %v474 = vsel %vm466, %v424, 0
        %v477 = vsel %vm466, %v425, 0
        %vm479 = vcmask 1042432
        %v480 = vsel %vm479, %v414, 0
        %v482 = vsel %vm479, %v458, 0
        %v484 = vsel %vm479, %v415, 0
        %v486 = vsel %vm479, %v459, 0
        %v488 = vsel %vm479, %v416, 0
        %v490 = vsel %vm479, %v460, 0
        %v492 = vsel %vm479, %v417, 0
        %v494 = vsel %vm479, %v461, 0
        %v496 = vsel %vm479, %v418, 0
        %v498 = vsel %vm479, %v462, 0
        %v500 = vsel %vm479, %v419, 0
        %v502 = vsel %vm479, %v463, 0
        %v504 = vsel %vm479, %v420, 0
        %v506 = vsel %vm479, %v464, 0
        %v508 = vsel %vm479, %v421, 0
        %v510 = vsel %vm479, %v465, 0
        %512 = vmatprep.subr.mxu0 %v482
        %513 = vmatpush1.msra.mxu0 %v480
        %514 = vmatprep.subr.mxu0 0.0
        %515 = vmatpush1.msra.mxu0 0.0
        %516 = vmatprep.subr.mxu0 0.0
        %517 = vmatpush1.msra.mxu0 0.0
        %518 = vmatprep.subr.mxu0 0.0
        %519 = vmatpush1.msra.mxu0 0.0
        %520 = vmatprep.subr.mxu0 0.0
        %521 = vmatpush1.msra.mxu0 0.0
        %522 = vmatprep.subr.mxu0 0.0
        %523 = vmatpush1.msra.mxu0 0.0
        %524 = vmatprep.subr.mxu0 0.0
        %525 = vmatpush1.msra.mxu0 0.0
        %526 = vmatprep.subr.mxu0 0.0
        %527 = vmatpush1.msra.mxu0 0.0
        %528 = vmatprep.subr.mxu0 0.0
        %529 = vmatpush1.msra.mxu0 0.0
        %530 = vmatprep.subr.mxu0 0.0
        %531 = vmatpush1.msra.mxu0 0.0
        %532 = vmatprep.subr.mxu0 0.0
        %533 = vmatpush1.msra.mxu0 0.0
        %534 = vmatprep.subr.mxu0 0.0
        %535 = vmatpush1.msra.mxu0 0.0
        %536 = vmatprep.subr.mxu0 0.0
        %537 = vmatpush1.msra.mxu0 0.0
        %538 = vmatprep.subr.mxu0 0.0
        %539 = vmatpush1.msra.mxu0 0.0
        %540 = vmatprep.subr.mxu0 0.0
        %541 = vmatpush1.msra.mxu0 0.0
        %542 = vmatprep.subr.mxu0 0.0
        %543 = vmatpush1.msra.mxu0 0.0
        %544 = vmatprep.subr.mxu0 0.0
        %545 = vmatpush1.msra.mxu0 0.0
        %546 = vmatprep.subr.mxu0 0.0
        %547 = vmatpush1.msra.mxu0 0.0
        %548 = vmatprep.subr.mxu0 0.0
        %549 = vmatpush1.msra.mxu0 0.0
        %550 = vmatprep.subr.mxu0 0.0
        %551 = vmatpush1.msra.mxu0 0.0
        %552 = vmatprep.subr.mxu0 0.0
        %553 = vmatpush1.msra.mxu0 0.0
        %554 = vmatprep.subr.mxu0 0.0
        %555 = vmatpush1.msra.mxu0 0.0
        %556 = vmatprep.subr.mxu0 0.0
        %557 = vmatpush1.msra.mxu0 0.0
        %558 = vmatprep.subr.mxu0 0.0
        %559 = vmatpush1.msra.mxu0 0.0
        %560 = vmatprep.subr.mxu0 0.0
        %561 = vmatpush1.msra.mxu0 0.0
        %562 = vmatprep.subr.mxu0 0.0
        %563 = vmatpush1.msra.mxu0 0.0
        %564 = vmatprep.subr.mxu0 0.0
        %565 = vmatpush1.msra.mxu0 0.0
        %566 = vmatprep.subr.mxu0 0.0
        %567 = vmatpush1.msra.mxu0 0.0
        %568 = vmatprep.subr.mxu0 0.0
        %569 = vmatpush1.msra.mxu0 0.0
        %570 = vmatprep.subr.mxu0 0.0
        %571 = vmatpush1.msra.mxu0 0.0
        %572 = vmatprep.subr.mxu0 0.0
        %573 = vmatpush1.msra.mxu0 0.0
        %574 = vmatprep.subr.mxu0 0.0
        %575 = vmatpush1.msra.mxu0 0.0
        %576 = vmatprep.mubr.f32.mxu0 0.0
        %577 = vmatmul.mubr.f32.gmra.mrb[0].mxu0 %v468
        %v578 = vpop.f32.mrb[0].mxu0
        %v579 = vadd.f32 %v433, %v578
        %v580 = vpop.f32.mrb[0].mxu0
        %v581 = vadd.f32 %v433, %v580
        %582 = vmatprep.mubr.f32.mxu0 0.0
        %583 = vmatmul.mubr.f32.gmra.mrb[0].mxu0 %v471
        %v584 = vpop.f32.mrb[0].mxu0
        %v585 = vadd.f32 %v438, %v584
        %v586 = vpop.f32.mrb[0].mxu0
        %v587 = vadd.f32 %v438, %v586
        %588 = vmatprep.mubr.f32.mxu0 0.0
        %589 = vmatmul.mubr.f32.gmra.mrb[0].mxu0 %v474
        %v590 = vpop.f32.mrb[0].mxu0
        %v591 = vadd.f32 %v443, %v590
        %v592 = vpop.f32.mrb[0].mxu0
        %v593 = vadd.f32 %v443, %v592
        %594 = vmatprep.mubr.f32.mxu0 0.0
        %595 = vmatmul.mubr.f32.gmra.mrb[0].mxu0 %v477
        %v596 = vpop.f32.mrb[0].mxu0
        %v597 = vadd.f32 %v448, %v596
        %v598 = vpop.f32.mrb[0].mxu0
        %v599 = vadd.f32 %v448, %v598
        %600 = vdwg.mxu0
        %601 = vmatprep.subr.mxu0 %v486
        %602 = vmatpush1.msra.mxu0 %v484
        %603 = vmatprep.subr.mxu0 0.0
        %604 = vmatpush1.msra.mxu0 0.0
        %605 = vmatprep.subr.mxu0 0.0
        %606 = vmatpush1.msra.mxu0 0.0
        %607 = vmatprep.subr.mxu0 0.0
        %608 = vmatpush1.msra.mxu0 0.0
        %609 = vmatprep.subr.mxu0 0.0
        %610 = vmatpush1.msra.mxu0 0.0
        %611 = vmatprep.subr.mxu0 0.0
        %612 = vmatpush1.msra.mxu0 0.0
        %613 = vmatprep.subr.mxu0 0.0
        %614 = vmatpush1.msra.mxu0 0.0
        %615 = vmatprep.subr.mxu0 0.0
        %616 = vmatpush1.msra.mxu0 0.0
        %617 = vmatprep.subr.mxu0 0.0
        %618 = vmatpush1.msra.mxu0 0.0
        %619 = vmatprep.subr.mxu0 0.0
        %620 = vmatpush1.msra.mxu0 0.0
        %621 = vmatprep.subr.mxu0 0.0
        %622 = vmatpush1.msra.mxu0 0.0
        %623 = vmatprep.subr.mxu0 0.0
        %624 = vmatpush1.msra.mxu0 0.0
        %625 = vmatprep.subr.mxu0 0.0
        %626 = vmatpush1.msra.mxu0 0.0
        %627 = vmatprep.subr.mxu0 0.0
        %628 = vmatpush1.msra.mxu0 0.0
        %629 = vmatprep.subr.mxu0 0.0
        %630 = vmatpush1.msra.mxu0 0.0
        %631 = vmatprep.subr.mxu0 0.0
        %632 = vmatpush1.msra.mxu0 0.0
        %633 = vmatprep.subr.mxu0 0.0
        %634 = vmatpush1.msra.mxu0 0.0
        %635 = vmatprep.subr.mxu0 0.0
        %636 = vmatpush1.msra.mxu0 0.0
        %637 = vmatprep.subr.mxu0 0.0
        %638 = vmatpush1.msra.mxu0 0.0
        %639 = vmatprep.subr.mxu0 0.0
        %640 = vmatpush1.msra.mxu0 0.0
        %641 = vmatprep.subr.mxu0 0.0
        %642 = vmatpush1.msra.mxu0 0.0
        %643 = vmatprep.subr.mxu0 0.0
        %644 = vmatpush1.msra.mxu0 0.0
        %645 = vmatprep.subr.mxu0 0.0
        %646 = vmatpush1.msra.mxu0 0.0
        %647 = vmatprep.subr.mxu0 0.0
        %648 = vmatpush1.msra.mxu0 0.0
        %649 = vmatprep.subr.mxu0 0.0
        %650 = vmatpush1.msra.mxu0 0.0
        %651 = vmatprep.subr.mxu0 0.0
        %652 = vmatpush1.msra.mxu0 0.0
        %653 = vmatprep.subr.mxu0 0.0
        %654 = vmatpush1.msra.mxu0 0.0
        %655 = vmatprep.subr.mxu0 0.0
        %656 = vmatpush1.msra.mxu0 0.0
        %657 = vmatprep.subr.mxu0 0.0
        %658 = vmatpush1.msra.mxu0 0.0
        %659 = vmatprep.subr.mxu0 0.0
        %660 = vmatpush1.msra.mxu0 0.0
        %661 = vmatprep.subr.mxu0 0.0
        %662 = vmatpush1.msra.mxu0 0.0
        %663 = vmatprep.subr.mxu0 0.0
        %664 = vmatpush1.msra.mxu0 0.0
        %665 = vmatprep.mubr.f32.mxu0 0.0
        %666 = vmatmul.mubr.f32.gmra.mrb[0].mxu0 %v468
        %v667 = vpop.f32.mrb[0].mxu0
        %v668 = vadd.f32 %v433, %v667
        %v669 = vpop.f32.mrb[0].mxu0
        %v670 = vadd.f32 %v433, %v669
        %671 = vmatprep.mubr.f32.mxu0 0.0
        %672 = vmatmul.mubr.f32.gmra.mrb[0].mxu0 %v471
        %v673 = vpop.f32.mrb[0].mxu0
        %v674 = vadd.f32 %v438, %v673
        %v675 = vpop.f32.mrb[0].mxu0
        %v676 = vadd.f32 %v438, %v675
        %677 = vmatprep.mubr.f32.mxu0 0.0
        %678 = vmatmul.mubr.f32.gmra.mrb[0].mxu0 %v474
        %v679 = vpop.f32.mrb[0].mxu0
        %v680 = vadd.f32 %v443, %v679
        %v681 = vpop.f32.mrb[0].mxu0
        %v682 = vadd.f32 %v443, %v681
        %683 = vmatprep.mubr.f32.mxu0 0.0
        %684 = vmatmul.mubr.f32.gmra.mrb[0].mxu0 %v477
        %v685 = vpop.f32.mrb[0].mxu0
        %v686 = vadd.f32 %v448, %v685
        %v687 = vpop.f32.mrb[0].mxu0
        %v688 = vadd.f32 %v448, %v687
        %689 = vdwg.mxu0
        %690 = vmatprep.subr.mxu0 %v490
        %691 = vmatpush1.msra.mxu0 %v488
        %692 = vmatprep.subr.mxu0 0.0
        %693 = vmatpush1.msra.mxu0 0.0
        %694 = vmatprep.subr.mxu0 0.0
        %695 = vmatpush1.msra.mxu0 0.0
        %696 = vmatprep.subr.mxu0 0.0
        %697 = vmatpush1.msra.mxu0 0.0
        %698 = vmatprep.subr.mxu0 0.0
        %699 = vmatpush1.msra.mxu0 0.0
        %700 = vmatprep.subr.mxu0 0.0
        %701 = vmatpush1.msra.mxu0 0.0
        %702 = vmatprep.subr.mxu0 0.0
        %703 = vmatpush1.msra.mxu0 0.0
        %704 = vmatprep.subr.mxu0 0.0
        %705 = vmatpush1.msra.mxu0 0.0
        %706 = vmatprep.subr.mxu0 0.0
        %707 = vmatpush1.msra.mxu0 0.0
        %708 = vmatprep.subr.mxu0 0.0
        %709 = vmatpush1.msra.mxu0 0.0
        %710 = vmatprep.subr.mxu0 0.0
        %711 = vmatpush1.msra.mxu0 0.0
        %712 = vmatprep.subr.mxu0 0.0
        %713 = vmatpush1.msra.mxu0 0.0
        %714 = vmatprep.subr.mxu0 0.0
        %715 = vmatpush1.msra.mxu0 0.0
        %716 = vmatprep.subr.mxu0 0.0
        %717 = vmatpush1.msra.mxu0 0.0
        %718 = vmatprep.subr.mxu0 0.0
        %719 = vmatpush1.msra.mxu0 0.0
        %720 = vmatprep.subr.mxu0 0.0
        %721 = vmatpush1.msra.mxu0 0.0
        %722 = vmatprep.subr.mxu0 0.0
        %723 = vmatpush1.msra.mxu0 0.0
        %724 = vmatprep.subr.mxu0 0.0
        %725 = vmatpush1.msra.mxu0 0.0
        %726 = vmatprep.subr.mxu0 0.0
        %727 = vmatpush1.msra.mxu0 0.0
        %728 = vmatprep.subr.mxu0 0.0
        %729 = vmatpush1.msra.mxu0 0.0
        %730 = vmatprep.subr.mxu0 0.0
        %731 = vmatpush1.msra.mxu0 0.0
        %732 = vmatprep.subr.mxu0 0.0
        %733 = vmatpush1.msra.mxu0 0.0
        %734 = vmatprep.subr.mxu0 0.0
        %735 = vmatpush1.msra.mxu0 0.0
        %736 = vmatprep.subr.mxu0 0.0
        %737 = vmatpush1.msra.mxu0 0.0
        %738 = vmatprep.subr.mxu0 0.0
        %739 = vmatpush1.msra.mxu0 0.0
        %740 = vmatprep.subr.mxu0 0.0
        %741 = vmatpush1.msra.mxu0 0.0
        %742 = vmatprep.subr.mxu0 0.0
        %743 = vmatpush1.msra.mxu0 0.0
        %744 = vmatprep.subr.mxu0 0.0
        %745 = vmatpush1.msra.mxu0 0.0
        %746 = vmatprep.subr.mxu0 0.0
        %747 = vmatpush1.msra.mxu0 0.0
        %748 = vmatprep.subr.mxu0 0.0
        %749 = vmatpush1.msra.mxu0 0.0
        %750 = vmatprep.subr.mxu0 0.0
        %751 = vmatpush1.msra.mxu0 0.0
        %752 = vmatprep.subr.mxu0 0.0
        %753 = vmatpush1.msra.mxu0 0.0
        %754 = vmatprep.mubr.f32.mxu0 0.0
        %755 = vmatmul.mubr.f32.gmra.mrb[0].mxu0 %v468
        %v756 = vpop.f32.mrb[0].mxu0
        %v757 = vadd.f32 %v433, %v756
        %v758 = vpop.f32.mrb[0].mxu0
        %v759 = vadd.f32 %v433, %v758
        %760 = vmatprep.mubr.f32.mxu0 0.0
        %761 = vmatmul.mubr.f32.gmra.mrb[0].mxu0 %v471
        %v762 = vpop.f32.mrb[0].mxu0
        %v763 = vadd.f32 %v438, %v762
        %v764 = vpop.f32.mrb[0].mxu0
        %v765 = vadd.f32 %v438, %v764
        %766 = vmatprep.mubr.f32.mxu0 0.0
        %767 = vmatmul.mubr.f32.gmra.mrb[0].mxu0 %v474
        %v768 = vpop.f32.mrb[0].mxu0
        %v769 = vadd.f32 %v443, %v768
        %v770 = vpop.f32.mrb[0].mxu0
        %v771 = vadd.f32 %v443, %v770
        %772 = vmatprep.mubr.f32.mxu0 0.0
        %773 = vmatmul.mubr.f32.gmra.mrb[0].mxu0 %v477
        %v774 = vpop.f32.mrb[0].mxu0
        %v775 = vadd.f32 %v448, %v774
        %v776 = vpop.f32.mrb[0].mxu0
        %v777 = vadd.f32 %v448, %v776
        %778 = vdwg.mxu0
        %779 = vmatprep.subr.mxu0 %v494
        %780 = vmatpush1.msra.mxu0 %v492
        %781 = vmatprep.subr.mxu0 0.0
        %782 = vmatpush1.msra.mxu0 0.0
        %783 = vmatprep.subr.mxu0 0.0
        %784 = vmatpush1.msra.mxu0 0.0
        %785 = vmatprep.subr.mxu0 0.0
        %786 = vmatpush1.msra.mxu0 0.0
        %787 = vmatprep.subr.mxu0 0.0
        %788 = vmatpush1.msra.mxu0 0.0
        %789 = vmatprep.subr.mxu0 0.0
        %790 = vmatpush1.msra.mxu0 0.0
        %791 = vmatprep.subr.mxu0 0.0
        %792 = vmatpush1.msra.mxu0 0.0
        %793 = vmatprep.subr.mxu0 0.0
        %794 = vmatpush1.msra.mxu0 0.0
        %795 = vmatprep.subr.mxu0 0.0
        %796 = vmatpush1.msra.mxu0 0.0
        %797 = vmatprep.subr.mxu0 0.0
        %798 = vmatpush1.msra.mxu0 0.0
        %799 = vmatprep.subr.mxu0 0.0
        %800 = vmatpush1.msra.mxu0 0.0
        %801 = vmatprep.subr.mxu0 0.0
        %802 = vmatpush1.msra.mxu0 0.0
        %803 = vmatprep.subr.mxu0 0.0
        %804 = vmatpush1.msra.mxu0 0.0
        %805 = vmatprep.subr.mxu0 0.0
        %806 = vmatpush1.msra.mxu0 0.0
        %807 = vmatprep.subr.mxu0 0.0
        %808 = vmatpush1.msra.mxu0 0.0
        %809 = vmatprep.subr.mxu0 0.0
        %810 = vmatpush1.msra.mxu0 0.0
        %811 = vmatprep.subr.mxu0 0.0
        %812 = vmatpush1.msra.mxu0 0.0
        %813 = vmatprep.subr.mxu0 0.0
        %814 = vmatpush1.msra.mxu0 0.0
        %815 = vmatprep.subr.mxu0 0.0
        %816 = vmatpush1.msra.mxu0 0.0
        %817 = vmatprep.subr.mxu0 0.0
        %818 = vmatpush1.msra.mxu0 0.0
        %819 = vmatprep.subr.mxu0 0.0
        %820 = vmatpush1.msra.mxu0 0.0
        %821 = vmatprep.subr.mxu0 0.0
        %822 = vmatpush1.msra.mxu0 0.0
        %823 = vmatprep.subr.mxu0 0.0
        %824 = vmatpush1.msra.mxu0 0.0
        %825 = vmatprep.subr.mxu0 0.0
        %826 = vmatpush1.msra.mxu0 0.0
        %827 = vmatprep.subr.mxu0 0.0
        %828 = vmatpush1.msra.mxu0 0.0
        %829 = vmatprep.subr.mxu0 0.0
        %830 = vmatpush1.msra.mxu0 0.0
        %831 = vmatprep.subr.mxu0 0.0
        %832 = vmatpush1.msra.mxu0 0.0
        %833 = vmatprep.subr.mxu0 0.0
        %834 = vmatpush1.msra.mxu0 0.0
        %835 = vmatprep.subr.mxu0 0.0
        %836 = vmatpush1.msra.mxu0 0.0
        %837 = vmatprep.subr.mxu0 0.0
        %838 = vmatpush1.msra.mxu0 0.0
        %839 = vmatprep.subr.mxu0 0.0
        %840 = vmatpush1.msra.mxu0 0.0
        %841 = vmatprep.subr.mxu0 0.0
        %842 = vmatpush1.msra.mxu0 0.0
        %843 = vmatprep.mubr.f32.mxu0 0.0
        %844 = vmatmul.mubr.f32.gmra.mrb[0].mxu0 %v468
        %v845 = vpop.f32.mrb[0].mxu0
        %v846 = vadd.f32 %v433, %v845
        %v847 = vpop.f32.mrb[0].mxu0
        %v848 = vadd.f32 %v433, %v847
        %849 = vmatprep.mubr.f32.mxu0 0.0
        %850 = vmatmul.mubr.f32.gmra.mrb[0].mxu0 %v471
        %v851 = vpop.f32.mrb[0].mxu0
        %v852 = vadd.f32 %v438, %v851
        %v853 = vpop.f32.mrb[0].mxu0
        %v854 = vadd.f32 %v438, %v853
        %855 = vmatprep.mubr.f32.mxu0 0.0
        %856 = vmatmul.mubr.f32.gmra.mrb[0].mxu0 %v474
        %v857 = vpop.f32.mrb[0].mxu0
        %v858 = vadd.f32 %v443, %v857
        %v859 = vpop.f32.mrb[0].mxu0
        %v860 = vadd.f32 %v443, %v859
        %861 = vmatprep.mubr.f32.mxu0 0.0
        %862 = vmatmul.mubr.f32.gmra.mrb[0].mxu0 %v477
        %v863 = vpop.f32.mrb[0].mxu0
        %v864 = vadd.f32 %v448, %v863
        %v865 = vpop.f32.mrb[0].mxu0
        %v866 = vadd.f32 %v448, %v865
        %867 = vdwg.mxu0
        %868 = vmatprep.subr.mxu0 %v498
        %869 = vmatpush1.msra.mxu0 %v496
        %870 = vmatprep.subr.mxu0 0.0
        %871 = vmatpush1.msra.mxu0 0.0
        %872 = vmatprep.subr.mxu0 0.0
        %873 = vmatpush1.msra.mxu0 0.0
        %874 = vmatprep.subr.mxu0 0.0
        %875 = vmatpush1.msra.mxu0 0.0
        %876 = vmatprep.subr.mxu0 0.0
        %877 = vmatpush1.msra.mxu0 0.0
        %878 = vmatprep.subr.mxu0 0.0
        %879 = vmatpush1.msra.mxu0 0.0
        %880 = vmatprep.subr.mxu0 0.0
        %881 = vmatpush1.msra.mxu0 0.0
        %882 = vmatprep.subr.mxu0 0.0
        %883 = vmatpush1.msra.mxu0 0.0
        %884 = vmatprep.subr.mxu0 0.0
        %885 = vmatpush1.msra.mxu0 0.0
        %886 = vmatprep.subr.mxu0 0.0
        %887 = vmatpush1.msra.mxu0 0.0
        %888 = vmatprep.subr.mxu0 0.0
        %889 = vmatpush1.msra.mxu0 0.0
        %890 = vmatprep.subr.mxu0 0.0
        %891 = vmatpush1.msra.mxu0 0.0
        %892 = vmatprep.subr.mxu0 0.0
        %893 = vmatpush1.msra.mxu0 0.0
        %894 = vmatprep.subr.mxu0 0.0
        %895 = vmatpush1.msra.mxu0 0.0
        %896 = vmatprep.subr.mxu0 0.0
        %897 = vmatpush1.msra.mxu0 0.0
        %898 = vmatprep.subr.mxu0 0.0
        %899 = vmatpush1.msra.mxu0 0.0
        %900 = vmatprep.subr.mxu0 0.0
        %901 = vmatpush1.msra.mxu0 0.0
        %902 = vmatprep.subr.mxu0 0.0
        %903 = vmatpush1.msra.mxu0 0.0
        %904 = vmatprep.subr.mxu0 0.0
        %905 = vmatpush1.msra.mxu0 0.0
        %906 = vmatprep.subr.mxu0 0.0
        %907 = vmatpush1.msra.mxu0 0.0
        %908 = vmatprep.subr.mxu0 0.0
        %909 = vmatpush1.msra.mxu0 0.0
        %910 = vmatprep.subr.mxu0 0.0
        %911 = vmatpush1.msra.mxu0 0.0
        %912 = vmatprep.subr.mxu0 0.0
        %913 = vmatpush1.msra.mxu0 0.0
        %914 = vmatprep.subr.mxu0 0.0
        %915 = vmatpush1.msra.mxu0 0.0
        %916 = vmatprep.subr.mxu0 0.0
        %917 = vmatpush1.msra.mxu0 0.0
        %918 = vmatprep.subr.mxu0 0.0
        %919 = vmatpush1.msra.mxu0 0.0
        %920 = vmatprep.subr.mxu0 0.0
        %921 = vmatpush1.msra.mxu0 0.0
        %922 = vmatprep.subr.mxu0 0.0
        %923 = vmatpush1.msra.mxu0 0.0
        %924 = vmatprep.subr.mxu0 0.0
        %925 = vmatpush1.msra.mxu0 0.0
        %926 = vmatprep.subr.mxu0 0.0
        %927 = vmatpush1.msra.mxu0 0.0
        %928 = vmatprep.subr.mxu0 0.0
        %929 = vmatpush1.msra.mxu0 0.0
        %930 = vmatprep.subr.mxu0 0.0
        %931 = vmatpush1.msra.mxu0 0.0
        %932 = vmatprep.mubr.f32.mxu0 0.0
        %933 = vmatmul.mubr.f32.gmra.mrb[0].mxu0 %v468
        %v934 = vpop.f32.mrb[0].mxu0
        %v935 = vadd.f32 %v433, %v934
        %v936 = vpop.f32.mrb[0].mxu0
        %v937 = vadd.f32 %v433, %v936
        %938 = vmatprep.mubr.f32.mxu0 0.0
        %939 = vmatmul.mubr.f32.gmra.mrb[0].mxu0 %v471
        %v940 = vpop.f32.mrb[0].mxu0
        %v941 = vadd.f32 %v438, %v940
        %v942 = vpop.f32.mrb[0].mxu0
        %v943 = vadd.f32 %v438, %v942
        %944 = vmatprep.mubr.f32.mxu0 0.0
        %945 = vmatmul.mubr.f32.gmra.mrb[0].mxu0 %v474
        %v946 = vpop.f32.mrb[0].mxu0
        %v947 = vadd.f32 %v443, %v946
        %v948 = vpop.f32.mrb[0].mxu0
        %v949 = vadd.f32 %v443, %v948
        %950 = vmatprep.mubr.f32.mxu0 0.0
        %951 = vmatmul.mubr.f32.gmra.mrb[0].mxu0 %v477
        %v952 = vpop.f32.mrb[0].mxu0
        %v953 = vadd.f32 %v448, %v952
        %v954 = vpop.f32.mrb[0].mxu0
        %v955 = vadd.f32 %v448, %v954
        %956 = vdwg.mxu0
        %957 = vmatprep.subr.mxu0 %v502
        %958 = vmatpush1.msra.mxu0 %v500
        %959 = vmatprep.subr.mxu0 0.0
        %960 = vmatpush1.msra.mxu0 0.0
        %961 = vmatprep.subr.mxu0 0.0
        %962 = vmatpush1.msra.mxu0 0.0
        %963 = vmatprep.subr.mxu0 0.0
        %964 = vmatpush1.msra.mxu0 0.0
        %965 = vmatprep.subr.mxu0 0.0
        %966 = vmatpush1.msra.mxu0 0.0
        %967 = vmatprep.subr.mxu0 0.0
        %968 = vmatpush1.msra.mxu0 0.0
        %969 = vmatprep.subr.mxu0 0.0
        %970 = vmatpush1.msra.mxu0 0.0
        %971 = vmatprep.subr.mxu0 0.0
        %972 = vmatpush1.msra.mxu0 0.0
        %973 = vmatprep.subr.mxu0 0.0
        %974 = vmatpush1.msra.mxu0 0.0
        %975 = vmatprep.subr.mxu0 0.0
        %976 = vmatpush1.msra.mxu0 0.0
        %977 = vmatprep.subr.mxu0 0.0
        %978 = vmatpush1.msra.mxu0 0.0
        %979 = vmatprep.subr.mxu0 0.0
        %980 = vmatpush1.msra.mxu0 0.0
        %981 = vmatprep.subr.mxu0 0.0
        %982 = vmatpush1.msra.mxu0 0.0
        %983 = vmatprep.subr.mxu0 0.0
        %984 = vmatpush1.msra.mxu0 0.0
        %985 = vmatprep.subr.mxu0 0.0
        %986 = vmatpush1.msra.mxu0 0.0
        %987 = vmatprep.subr.mxu0 0.0
        %988 = vmatpush1.msra.mxu0 0.0
        %989 = vmatprep.subr.mxu0 0.0
        %990 = vmatpush1.msra.mxu0 0.0
        %991 = vmatprep.subr.mxu0 0.0
        %992 = vmatpush1.msra.mxu0 0.0
        %993 = vmatprep.subr.mxu0 0.0
        %994 = vmatpush1.msra.mxu0 0.0
        %995 = vmatprep.subr.mxu0 0.0
        %996 = vmatpush1.msra.mxu0 0.0
        %997 = vmatprep.subr.mxu0 0.0
        %998 = vmatpush1.msra.mxu0 0.0
        %999 = vmatprep.subr.mxu0 0.0
        %1000 = vmatpush1.msra.mxu0 0.0
        %1001 = vmatprep.subr.mxu0 0.0
        %1002 = vmatpush1.msra.mxu0 0.0
        %1003 = vmatprep.subr.mxu0 0.0
        %1004 = vmatpush1.msra.mxu0 0.0
        %1005 = vmatprep.subr.mxu0 0.0
        %1006 = vmatpush1.msra.mxu0 0.0
        %1007 = vmatprep.subr.mxu0 0.0
        %1008 = vmatpush1.msra.mxu0 0.0
        %1009 = vmatprep.subr.mxu0 0.0
        %1010 = vmatpush1.msra.mxu0 0.0
        %1011 = vmatprep.subr.mxu0 0.0
        %1012 = vmatpush1.msra.mxu0 0.0
        %1013 = vmatprep.subr.mxu0 0.0
        %1014 = vmatpush1.msra.mxu0 0.0
        %1015 = vmatprep.subr.mxu0 0.0
        %1016 = vmatpush1.msra.mxu0 0.0
        %1017 = vmatprep.subr.mxu0 0.0
        %1018 = vmatpush1.msra.mxu0 0.0
        %1019 = vmatprep.subr.mxu0 0.0
        %1020 = vmatpush1.msra.mxu0 0.0
        %1021 = vmatprep.mubr.f32.mxu0 0.0
        %1022 = vmatmul.mubr.f32.gmra.mrb[0].mxu0 %v468
        %v1023 = vpop.f32.mrb[0].mxu0
        %v1024 = vadd.f32 %v433, %v1023
        %v1025 = vpop.f32.mrb[0].mxu0
        %v1026 = vadd.f32 %v433, %v1025
        %1027 = vmatprep.mubr.f32.mxu0 0.0
        %1028 = vmatmul.mubr.f32.gmra.mrb[0].mxu0 %v471
        %v1029 = vpop.f32.mrb[0].mxu0
        %v1030 = vadd.f32 %v438, %v1029
        %v1031 = vpop.f32.mrb[0].mxu0
        %v1032 = vadd.f32 %v438, %v1031
        %1033 = vmatprep.mubr.f32.mxu0 0.0
        %1034 = vmatmul.mubr.f32.gmra.mrb[0].mxu0 %v474
        %v1035 = vpop.f32.mrb[0].mxu0
        %v1036 = vadd.f32 %v443, %v1035
        %v1037 = vpop.f32.mrb[0].mxu0
        %v1038 = vadd.f32 %v443, %v1037
        %1039 = vmatprep.mubr.f32.mxu0 0.0
        %1040 = vmatmul.mubr.f32.gmra.mrb[0].mxu0 %v477
        %v1041 = vpop.f32.mrb[0].mxu0
        %v1042 = vadd.f32 %v448, %v1041
        %v1043 = vpop.f32.mrb[0].mxu0
        %v1044 = vadd.f32 %v448, %v1043
        %1045 = vdwg.mxu0
        %1046 = vmatprep.subr.mxu0 %v506
        %1047 = vmatpush1.msra.mxu0 %v504
        %1048 = vmatprep.subr.mxu0 0.0
        %1049 = vmatpush1.msra.mxu0 0.0
        %1050 = vmatprep.subr.mxu0 0.0
        %1051 = vmatpush1.msra.mxu0 0.0
        %1052 = vmatprep.subr.mxu0 0.0
        %1053 = vmatpush1.msra.mxu0 0.0
        %1054 = vmatprep.subr.mxu0 0.0
        %1055 = vmatpush1.msra.mxu0 0.0
        %1056 = vmatprep.subr.mxu0 0.0
        %1057 = vmatpush1.msra.mxu0 0.0
        %1058 = vmatprep.subr.mxu0 0.0
        %1059 = vmatpush1.msra.mxu0 0.0
        %1060 = vmatprep.subr.mxu0 0.0
        %1061 = vmatpush1.msra.mxu0 0.0
        %1062 = vmatprep.subr.mxu0 0.0
        %1063 = vmatpush1.msra.mxu0 0.0
        %1064 = vmatprep.subr.mxu0 0.0
        %1065 = vmatpush1.msra.mxu0 0.0
        %1066 = vmatprep.subr.mxu0 0.0
        %1067 = vmatpush1.msra.mxu0 0.0
        %1068 = vmatprep.subr.mxu0 0.0
        %1069 = vmatpush1.msra.mxu0 0.0
        %1070 = vmatprep.subr.mxu0 0.0
        %1071 = vmatpush1.msra.mxu0 0.0
        %1072 = vmatprep.subr.mxu0 0.0
        %1073 = vmatpush1.msra.mxu0 0.0
        %1074 = vmatprep.subr.mxu0 0.0
        %1075 = vmatpush1.msra.mxu0 0.0
        %1076 = vmatprep.subr.mxu0 0.0
        %1077 = vmatpush1.msra.mxu0 0.0
        %1078 = vmatprep.subr.mxu0 0.0
        %1079 = vmatpush1.msra.mxu0 0.0
        %1080 = vmatprep.subr.mxu0 0.0
        %1081 = vmatpush1.msra.mxu0 0.0
        %1082 = vmatprep.subr.mxu0 0.0
        %1083 = vmatpush1.msra.mxu0 0.0
        %1084 = vmatprep.subr.mxu0 0.0
        %1085 = vmatpush1.msra.mxu0 0.0
        %1086 = vmatprep.subr.mxu0 0.0
        %1087 = vmatpush1.msra.mxu0 0.0
        %1088 = vmatprep.subr.mxu0 0.0
        %1089 = vmatpush1.msra.mxu0 0.0
        %1090 = vmatprep.subr.mxu0 0.0
        %1091 = vmatpush1.msra.mxu0 0.0
        %1092 = vmatprep.subr.mxu0 0.0
        %1093 = vmatpush1.msra.mxu0 0.0
        %1094 = vmatprep.subr.mxu0 0.0
        %1095 = vmatpush1.msra.mxu0 0.0
        %1096 = vmatprep.subr.mxu0 0.0
        %1097 = vmatpush1.msra.mxu0 0.0
        %1098 = vmatprep.subr.mxu0 0.0
        %1099 = vmatpush1.msra.mxu0 0.0
        %1100 = vmatprep.subr.mxu0 0.0
        %1101 = vmatpush1.msra.mxu0 0.0
        %1102 = vmatprep.subr.mxu0 0.0
        %1103 = vmatpush1.msra.mxu0 0.0
        %1104 = vmatprep.subr.mxu0 0.0
        %1105 = vmatpush1.msra.mxu0 0.0
        %1106 = vmatprep.subr.mxu0 0.0
        %1107 = vmatpush1.msra.mxu0 0.0
        %1108 = vmatprep.subr.mxu0 0.0
        %1109 = vmatpush1.msra.mxu0 0.0
        %1110 = vmatprep.mubr.f32.mxu0 0.0
        %1111 = vmatmul.mubr.f32.gmra.mrb[0].mxu0 %v468
        %v1112 = vpop.f32.mrb[0].mxu0
        %v1113 = vadd.f32 %v433, %v1112
        %v1114 = vpop.f32.mrb[0].mxu0
        %v1115 = vadd.f32 %v433, %v1114
        %1116 = vmatprep.mubr.f32.mxu0 0.0
        %1117 = vmatmul.mubr.f32.gmra.mrb[0].mxu0 %v471
        %v1118 = vpop.f32.mrb[0].mxu0
        %v1119 = vadd.f32 %v438, %v1118
        %v1120 = vpop.f32.mrb[0].mxu0
        %v1121 = vadd.f32 %v438, %v1120
        %1122 = vmatprep.mubr.f32.mxu0 0.0
        %1123 = vmatmul.mubr.f32.gmra.mrb[0].mxu0 %v474
        %v1124 = vpop.f32.mrb[0].mxu0
        %v1125 = vadd.f32 %v443, %v1124
        %v1126 = vpop.f32.mrb[0].mxu0
        %v1127 = vadd.f32 %v443, %v1126
        %1128 = vmatprep.mubr.f32.mxu0 0.0
        %1129 = vmatmul.mubr.f32.gmra.mrb[0].mxu0 %v477
        %v1130 = vpop.f32.mrb[0].mxu0
        %v1131 = vadd.f32 %v448, %v1130
        %v1132 = vpop.f32.mrb[0].mxu0
        %v1133 = vadd.f32 %v448, %v1132
        %1134 = vdwg.mxu0
        %1135 = vmatprep.subr.mxu0 %v510
        %1136 = vmatpush1.msra.mxu0 %v508
        %1137 = vmatprep.subr.mxu0 0.0
        %1138 = vmatpush1.msra.mxu0 0.0
        %1139 = vmatprep.subr.mxu0 0.0
        %1140 = vmatpush1.msra.mxu0 0.0
        %1141 = vmatprep.subr.mxu0 0.0
        %1142 = vmatpush1.msra.mxu0 0.0
        %1143 = vmatprep.subr.mxu0 0.0
        %1144 = vmatpush1.msra.mxu0 0.0
        %1145 = vmatprep.subr.mxu0 0.0
        %1146 = vmatpush1.msra.mxu0 0.0
        %1147 = vmatprep.subr.mxu0 0.0
        %1148 = vmatpush1.msra.mxu0 0.0
        %1149 = vmatprep.subr.mxu0 0.0
        %1150 = vmatpush1.msra.mxu0 0.0
        %1151 = vmatprep.subr.mxu0 0.0
        %1152 = vmatpush1.msra.mxu0 0.0
        %1153 = vmatprep.subr.mxu0 0.0
        %1154 = vmatpush1.msra.mxu0 0.0
        %1155 = vmatprep.subr.mxu0 0.0
        %1156 = vmatpush1.msra.mxu0 0.0
        %1157 = vmatprep.subr.mxu0 0.0
        %1158 = vmatpush1.msra.mxu0 0.0
        %1159 = vmatprep.subr.mxu0 0.0
        %1160 = vmatpush1.msra.mxu0 0.0
        %1161 = vmatprep.subr.mxu0 0.0
        %1162 = vmatpush1.msra.mxu0 0.0
        %1163 = vmatprep.subr.mxu0 0.0
        %1164 = vmatpush1.msra.mxu0 0.0
        %1165 = vmatprep.subr.mxu0 0.0
        %1166 = vmatpush1.msra.mxu0 0.0
        %1167 = vmatprep.subr.mxu0 0.0
        %1168 = vmatpush1.msra.mxu0 0.0
        %1169 = vmatprep.subr.mxu0 0.0
        %1170 = vmatpush1.msra.mxu0 0.0
        %1171 = vmatprep.subr.mxu0 0.0
        %1172 = vmatpush1.msra.mxu0 0.0
        %1173 = vmatprep.subr.mxu0 0.0
        %1174 = vmatpush1.msra.mxu0 0.0
        %1175 = vmatprep.subr.mxu0 0.0
        %1176 = vmatpush1.msra.mxu0 0.0
        %1177 = vmatprep.subr.mxu0 0.0
        %1178 = vmatpush1.msra.mxu0 0.0
        %1179 = vmatprep.subr.mxu0 0.0
        %1180 = vmatpush1.msra.mxu0 0.0
        %1181 = vmatprep.subr.mxu0 0.0
        %1182 = vmatpush1.msra.mxu0 0.0
        %1183 = vmatprep.subr.mxu0 0.0
        %1184 = vmatpush1.msra.mxu0 0.0
        %1185 = vmatprep.subr.mxu0 0.0
        %1186 = vmatpush1.msra.mxu0 0.0
        %1187 = vmatprep.subr.mxu0 0.0
        %1188 = vmatpush1.msra.mxu0 0.0
        %1189 = vmatprep.subr.mxu0 0.0
        %1190 = vmatpush1.msra.mxu0 0.0
        %1191 = vmatprep.subr.mxu0 0.0
        %1192 = vmatpush1.msra.mxu0 0.0
        %1193 = vmatprep.subr.mxu0 0.0
        %1194 = vmatpush1.msra.mxu0 0.0
        %1195 = vmatprep.subr.mxu0 0.0
        %1196 = vmatpush1.msra.mxu0 0.0
        %1197 = vmatprep.subr.mxu0 0.0
        %1198 = vmatpush1.msra.mxu0 0.0
        %1199 = vmatprep.mubr.f32.mxu0 0.0
        %1200 = vmatmul.mubr.f32.gmra.mrb[0].mxu0 %v468
        %v1201 = vpop.f32.mrb[0].mxu0
        %v1202 = vadd.f32 %v433, %v1201
        %v1203 = vpop.f32.mrb[0].mxu0
        %v1204 = vadd.f32 %v433, %v1203
        %1205 = vmatprep.mubr.f32.mxu0 0.0
        %1206 = vmatmul.mubr.f32.gmra.mrb[0].mxu0 %v471
        %v1207 = vpop.f32.mrb[0].mxu0
        %v1208 = vadd.f32 %v438, %v1207
        %v1209 = vpop.f32.mrb[0].mxu0
        %v1210 = vadd.f32 %v438, %v1209
        %1211 = vmatprep.mubr.f32.mxu0 0.0
        %1212 = vmatmul.mubr.f32.gmra.mrb[0].mxu0 %v474
        %v1213 = vpop.f32.mrb[0].mxu0
        %v1214 = vadd.f32 %v443, %v1213
        %v1215 = vpop.f32.mrb[0].mxu0
        %v1216 = vadd.f32 %v443, %v1215
        %1217 = vmatprep.mubr.f32.mxu0 0.0
        %1218 = vmatmul.mubr.f32.gmra.mrb[0].mxu0 %v477
        %v1219 = vpop.f32.mrb[0].mxu0
        %v1220 = vadd.f32 %v448, %v1219
        %v1221 = vpop.f32.mrb[0].mxu0
        %v1222 = vadd.f32 %v448, %v1221
        %1223 = vdwg.mxu0
        %v1224 = vmax.f32 %v579, 0.0
        %v1225 = vmax.f32 %v581, 0.0
        %v1226 = vmax.f32 %v668, 0.0
        %v1227 = vmax.f32 %v670, 0.0
        %v1228 = vmax.f32 %v757, 0.0
        %v1229 = vmax.f32 %v759, 0.0
        %v1230 = vmax.f32 %v846, 0.0
        %v1231 = vmax.f32 %v848, 0.0
        %v1232 = vmax.f32 %v935, 0.0
        %v1233 = vmax.f32 %v937, 0.0
        %v1234 = vmax.f32 %v1024, 0.0
        %v1235 = vmax.f32 %v1026, 0.0
        %v1236 = vmax.f32 %v1113, 0.0
        %v1237 = vmax.f32 %v1115, 0.0
        %v1238 = vmax.f32 %v1202, 0.0
        %v1239 = vmax.f32 %v1204, 0.0
        %v1240 = vmax.f32 %v585, 0.0
        %v1241 = vmax.f32 %v587, 0.0
        %v1242 = vmax.f32 %v674, 0.0
        %v1243 = vmax.f32 %v676, 0.0
        %v1244 = vmax.f32 %v763, 0.0
        %v1245 = vmax.f32 %v765, 0.0
        %v1246 = vmax.f32 %v852, 0.0
        %v1247 = vmax.f32 %v854, 0.0
        %v1248 = vmax.f32 %v941, 0.0
        %v1249 = vmax.f32 %v943, 0.0
        %v1250 = vmax.f32 %v1030, 0.0
        %v1251 = vmax.f32 %v1032, 0.0
        %v1252 = vmax.f32 %v1119, 0.0
        %v1253 = vmax.f32 %v1121, 0.0
        %v1254 = vmax.f32 %v1208, 0.0
        %v1255 = vmax.f32 %v1210, 0.0
        %v1256 = vmax.f32 %v591, 0.0
        %v1257 = vmax.f32 %v593, 0.0
        %v1258 = vmax.f32 %v680, 0.0
        %v1259 = vmax.f32 %v682, 0.0
        %v1260 = vmax.f32 %v769, 0.0
        %v1261 = vmax.f32 %v771, 0.0
        %v1262 = vmax.f32 %v858, 0.0
        %v1263 = vmax.f32 %v860, 0.0
        %v1264 = vmax.f32 %v947, 0.0
        %v1265 = vmax.f32 %v949, 0.0
        %v1266 = vmax.f32 %v1036, 0.0
        %v1267 = vmax.f32 %v1038, 0.0
        %v1268 = vmax.f32 %v1125, 0.0
        %v1269 = vmax.f32 %v1127, 0.0
        %v1270 = vmax.f32 %v1214, 0.0
        %v1271 = vmax.f32 %v1216, 0.0
        %v1272 = vmax.f32 %v597, 0.0
        %v1273 = vmax.f32 %v599, 0.0
        %v1274 = vmax.f32 %v686, 0.0
        %v1275 = vmax.f32 %v688, 0.0
        %v1276 = vmax.f32 %v775, 0.0
        %v1277 = vmax.f32 %v777, 0.0
        %v1278 = vmax.f32 %v864, 0.0
        %v1279 = vmax.f32 %v866, 0.0
        %v1280 = vmax.f32 %v953, 0.0
        %v1281 = vmax.f32 %v955, 0.0
        %v1282 = vmax.f32 %v1042, 0.0
        %v1283 = vmax.f32 %v1044, 0.0
        %v1284 = vmax.f32 %v1131, 0.0
        %v1285 = vmax.f32 %v1133, 0.0
        %v1286 = vmax.f32 %v1220, 0.0
        %v1287 = vmax.f32 %v1222, 0.0
        %v1288 = vmax.f32 %v1224, %v1226
        %v1289 = vmax.f32 %v1225, %v1227
        %v1290 = vmax.f32 %v1240, %v1242
        %v1291 = vmax.f32 %v1241, %v1243
        %v1292 = vmax.f32 %v1256, %v1258
        %v1293 = vmax.f32 %v1257, %v1259
        %v1294 = vmax.f32 %v1272, %v1274
        %v1295 = vmax.f32 %v1273, %v1275
        %v1296 = vmax.f32 %v1288, %v1228
        %v1297 = vmax.f32 %v1289, %v1229
        %v1298 = vmax.f32 %v1290, %v1244
        %v1299 = vmax.f32 %v1291, %v1245
        %v1300 = vmax.f32 %v1292, %v1260
        %v1301 = vmax.f32 %v1293, %v1261
        %v1302 = vmax.f32 %v1294, %v1276
        %v1303 = vmax.f32 %v1295, %v1277
        %v1304 = vmax.f32 %v1296, %v1230
        %v1305 = vmax.f32 %v1297, %v1231
        %v1306 = vmax.f32 %v1298, %v1246
        %v1307 = vmax.f32 %v1299, %v1247
        %v1308 = vmax.f32 %v1300, %v1262
        %v1309 = vmax.f32 %v1301, %v1263
        %v1310 = vmax.f32 %v1302, %v1278
        %v1311 = vmax.f32 %v1303, %v1279
        %v1312 = vmax.f32 %v1304, %v1232
        %v1313 = vmax.f32 %v1305, %v1233
        %v1314 = vmax.f32 %v1306, %v1248
        %v1315 = vmax.f32 %v1307, %v1249
        %v1316 = vmax.f32 %v1308, %v1264
        %v1317 = vmax.f32 %v1309, %v1265
        %v1318 = vmax.f32 %v1310, %v1280
        %v1319 = vmax.f32 %v1311, %v1281
        %v1320 = vmax.f32 %v1312, %v1234
        %v1321 = vmax.f32 %v1313, %v1235
        %v1322 = vmax.f32 %v1314, %v1250
        %v1323 = vmax.f32 %v1315, %v1251
        %v1324 = vmax.f32 %v1316, %v1266
        %v1325 = vmax.f32 %v1317, %v1267
        %v1326 = vmax.f32 %v1318, %v1282
        %v1327 = vmax.f32 %v1319, %v1283
        %v1328 = vmax.f32 %v1320, %v1236
        %v1329 = vmax.f32 %v1321, %v1237
        %v1330 = vmax.f32 %v1322, %v1252
        %v1331 = vmax.f32 %v1323, %v1253
        %v1332 = vmax.f32 %v1324, %v1268
        %v1333 = vmax.f32 %v1325, %v1269
        %v1334 = vmax.f32 %v1326, %v1284
        %v1335 = vmax.f32 %v1327, %v1285
        %v1336 = vmax.f32 %v1328, %v1238
        %v1337 = vmax.f32 %v1329, %v1239
        %v1338 = vmax.f32 %v1330, %v1254
        %v1339 = vmax.f32 %v1331, %v1255
        %v1340 = vmax.f32 %v1332, %v1270
        %v1341 = vmax.f32 %v1333, %v1271
        %v1342 = vmax.f32 %v1334, %v1286
        %v1343 = vmax.f32 %v1335, %v1287
        %v1344 = vld [vmem:[%s3] sm:$0xff]
        %v1345 = vld [vmem:[%s3 + $0x8] sm:$0xff]
        %v1346 = vld [vmem:[%s3 + $0x10] sm:$0xff]
        %v1347 = vld [vmem:[%s3 + $0x18] sm:$0xff]
        %v1348 = vld [vmem:[%s4] sm:$0xff]
        %v1349 = vld [vmem:[%s4 + $0x8] sm:$0xff]
        %v1350 = vld [vmem:[%s4 + $0x10] sm:$0xff]
        %v1351 = vld [vmem:[%s4 + $0x18] sm:$0xff]
        %1353 = vset.pattern.permute.xlu0 0
        %1354 = vperm.xlu0 %1353, %v1348
        %v1355 = vpop.permute.xlu0 %1354
        %1358 = vset.pattern.permute.xlu0 0
        %1359 = vperm.xlu0 %1358, %v1349
        %v1360 = vpop.permute.xlu0 %1359
        %1363 = vset.pattern.permute.xlu0 0
        %1364 = vperm.xlu0 %1363, %v1350
        %v1365 = vpop.permute.xlu0 %1364
        %1368 = vset.pattern.permute.xlu0 0
        %1369 = vperm.xlu0 %1368, %v1351
        %v1370 = vpop.permute.xlu0 %1369
        %vm1372 = vcmask 261120
        %v1374 = vsel %vm1372, %v1344, 0
        %v1377 = vsel %vm1372, %v1345, 0
        %v1380 = vsel %vm1372, %v1346, 0
        %v1383 = vsel %vm1372, %v1347, 0
        %1385 = vmatprep.subr.mxu0 %v1225
        %1386 = vmatpush1.msra.mxu0 %v1224
        %1387 = vmatprep.subr.mxu0 %v1241
        %1388 = vmatpush1.msra.mxu0 %v1240
        %1389 = vmatprep.subr.mxu0 %v1257
        %1390 = vmatpush1.msra.mxu0 %v1256
        %1391 = vmatprep.subr.mxu0 %v1273
        %1392 = vmatpush1.msra.mxu0 %v1272
        %1393 = vmatprep.subr.mxu0 0.0
        %1394 = vmatpush1.msra.mxu0 0.0
        %1395 = vmatprep.subr.mxu0 0.0
        %1396 = vmatpush1.msra.mxu0 0.0
        %1397 = vmatprep.subr.mxu0 0.0
        %1398 = vmatpush1.msra.mxu0 0.0
        %1399 = vmatprep.subr.mxu0 0.0
        %1400 = vmatpush1.msra.mxu0 0.0
        %1401 = vmatprep.subr.mxu0 0.0
        %1402 = vmatpush1.msra.mxu0 0.0
        %1403 = vmatprep.subr.mxu0 0.0
        %1404 = vmatpush1.msra.mxu0 0.0
        %1405 = vmatprep.subr.mxu0 0.0
        %1406 = vmatpush1.msra.mxu0 0.0
        %1407 = vmatprep.subr.mxu0 0.0
        %1408 = vmatpush1.msra.mxu0 0.0
        %1409 = vmatprep.subr.mxu0 0.0
        %1410 = vmatpush1.msra.mxu0 0.0
        %1411 = vmatprep.subr.mxu0 0.0
        %1412 = vmatpush1.msra.mxu0 0.0
        %1413 = vmatprep.subr.mxu0 0.0
        %1414 = vmatpush1.msra.mxu0 0.0
        %1415 = vmatprep.subr.mxu0 0.0
        %1416 = vmatpush1.msra.mxu0 0.0
        %1417 = vmatprep.subr.mxu0 0.0
        %1418 = vmatpush1.msra.mxu0 0.0
        %1419 = vmatprep.subr.mxu0 0.0
        %1420 = vmatpush1.msra.mxu0 0.0
        %1421 = vmatprep.subr.mxu0 0.0
        %1422 = vmatpush1.msra.mxu0 0.0
        %1423 = vmatprep.subr.mxu0 0.0
        %1424 = vmatpush1.msra.mxu0 0.0
        %1425 = vmatprep.subr.mxu0 0.0
        %1426 = vmatpush1.msra.mxu0 0.0
        %1427 = vmatprep.subr.mxu0 0.0
        %1428 = vmatpush1.msra.mxu0 0.0
        %1429 = vmatprep.subr.mxu0 0.0
        %1430 = vmatpush1.msra.mxu0 0.0
        %1431 = vmatprep.subr.mxu0 0.0
        %1432 = vmatpush1.msra.mxu0 0.0
        %1433 = vmatprep.subr.mxu0 0.0
        %1434 = vmatpush1.msra.mxu0 0.0
        %1435 = vmatprep.subr.mxu0 0.0
        %1436 = vmatpush1.msra.mxu0 0.0
        %1437 = vmatprep.subr.mxu0 0.0
        %1438 = vmatpush1.msra.mxu0 0.0
        %1439 = vmatprep.subr.mxu0 0.0
        %1440 = vmatpush1.msra.mxu0 0.0
        %1441 = vmatprep.subr.mxu0 0.0
        %1442 = vmatpush1.msra.mxu0 0.0
        %1443 = vmatprep.subr.mxu0 0.0
        %1444 = vmatpush1.msra.mxu0 0.0
        %1445 = vmatprep.subr.mxu0 0.0
        %1446 = vmatpush1.msra.mxu0 0.0
        %1447 = vmatprep.subr.mxu0 0.0
        %1448 = vmatpush1.msra.mxu0 0.0
        %1449 = vmatprep.mubr.f32.mxu0 0.0
        %1450 = vmatmul.mubr.f32.gmra.mrb[0].mxu0 %v1374
        %v1451 = vpop.f32.mrb[0].mxu0
        %v1452 = vadd.f32 %v1355, %v1451
        %v1453 = vpop.f32.mrb[0].mxu0
        %v1454 = vadd.f32 %v1355, %v1453
        %1455 = vmatprep.mubr.f32.mxu0 0.0
        %1456 = vmatmul.mubr.f32.gmra.mrb[0].mxu0 %v1377
        %v1457 = vpop.f32.mrb[0].mxu0
        %v1458 = vadd.f32 %v1360, %v1457
        %v1459 = vpop.f32.mrb[0].mxu0
        %v1460 = vadd.f32 %v1360, %v1459
        %1461 = vmatprep.mubr.f32.mxu0 0.0
        %1462 = vmatmul.mubr.f32.gmra.mrb[0].mxu0 %v1380
        %v1463 = vpop.f32.mrb[0].mxu0
        %v1464 = vadd.f32 %v1365, %v1463
        %v1465 = vpop.f32.mrb[0].mxu0
        %v1466 = vadd.f32 %v1365, %v1465
        %1467 = vmatprep.mubr.f32.mxu0 0.0
        %1468 = vmatmul.mubr.f32.gmra.mrb[0].mxu0 %v1383
        %v1469 = vpop.f32.mrb[0].mxu0
        %v1470 = vadd.f32 %v1370, %v1469
        %v1471 = vpop.f32.mrb[0].mxu0
        %v1472 = vadd.f32 %v1370, %v1471
        %1473 = vdwg.mxu0
        %1474 = vmatprep.subr.mxu0 %v1227
        %1475 = vmatpush1.msra.mxu0 %v1226
        %1476 = vmatprep.subr.mxu0 %v1243
        %1477 = vmatpush1.msra.mxu0 %v1242
        %1478 = vmatprep.subr.mxu0 %v1259
        %1479 = vmatpush1.msra.mxu0 %v1258
        %1480 = vmatprep.subr.mxu0 %v1275
        %1481 = vmatpush1.msra.mxu0 %v1274
        %1482 = vmatprep.subr.mxu0 0.0
        %1483 = vmatpush1.msra.mxu0 0.0
        %1484 = vmatprep.subr.mxu0 0.0
        %1485 = vmatpush1.msra.mxu0 0.0
        %1486 = vmatprep.subr.mxu0 0.0
        %1487 = vmatpush1.msra.mxu0 0.0
        %1488 = vmatprep.subr.mxu0 0.0
        %1489 = vmatpush1.msra.mxu0 0.0
        %1490 = vmatprep.subr.mxu0 0.0
        %1491 = vmatpush1.msra.mxu0 0.0
        %1492 = vmatprep.subr.mxu0 0.0
        %1493 = vmatpush1.msra.mxu0 0.0
        %1494 = vmatprep.subr.mxu0 0.0
        %1495 = vmatpush1.msra.mxu0 0.0
        %1496 = vmatprep.subr.mxu0 0.0
        %1497 = vmatpush1.msra.mxu0 0.0
        %1498 = vmatprep.subr.mxu0 0.0
        %1499 = vmatpush1.msra.mxu0 0.0
        %1500 = vmatprep.subr.mxu0 0.0
        %1501 = vmatpush1.msra.mxu0 0.0
        %1502 = vmatprep.subr.mxu0 0.0
        %1503 = vmatpush1.msra.mxu0 0.0
        %1504 = vmatprep.subr.mxu0 0.0
        %1505 = vmatpush1.msra.mxu0 0.0
        %1506 = vmatprep.subr.mxu0 0.0
        %1507 = vmatpush1.msra.mxu0 0.0
        %1508 = vmatprep.subr.mxu0 0.0
        %1509 = vmatpush1.msra.mxu0 0.0
        %1510 = vmatprep.subr.mxu0 0.0
        %1511 = vmatpush1.msra.mxu0 0.0
        %1512 = vmatprep.subr.mxu0 0.0
        %1513 = vmatpush1.msra.mxu0 0.0
        %1514 = vmatprep.subr.mxu0 0.0
        %1515 = vmatpush1.msra.mxu0 0.0
        %1516 = vmatprep.subr.mxu0 0.0
        %1517 = vmatpush1.msra.mxu0 0.0
        %1518 = vmatprep.subr.mxu0 0.0
        %1519 = vmatpush1.msra.mxu0 0.0
        %1520 = vmatprep.subr.mxu0 0.0
        %1521 = vmatpush1.msra.mxu0 0.0
        %1522 = vmatprep.subr.mxu0 0.0
        %1523 = vmatpush1.msra.mxu0 0.0
        %1524 = vmatprep.subr.mxu0 0.0
        %1525 = vmatpush1.msra.mxu0 0.0
        %1526 = vmatprep.subr.mxu0 0.0
        %1527 = vmatpush1.msra.mxu0 0.0
        %1528 = vmatprep.subr.mxu0 0.0
        %1529 = vmatpush1.msra.mxu0 0.0
        %1530 = vmatprep.subr.mxu0 0.0
        %1531 = vmatpush1.msra.mxu0 0.0
        %1532 = vmatprep.subr.mxu0 0.0
        %1533 = vmatpush1.msra.mxu0 0.0
        %1534 = vmatprep.subr.mxu0 0.0
        %1535 = vmatpush1.msra.mxu0 0.0
        %1536 = vmatprep.subr.mxu0 0.0
        %1537 = vmatpush1.msra.mxu0 0.0
        %1538 = vmatprep.mubr.f32.mxu0 0.0
        %1539 = vmatmul.mubr.f32.gmra.mrb[0].mxu0 %v1374
        %v1540 = vpop.f32.mrb[0].mxu0
        %v1541 = vadd.f32 %v1355, %v1540
        %v1542 = vpop.f32.mrb[0].mxu0
        %v1543 = vadd.f32 %v1355, %v1542
        %1544 = vmatprep.mubr.f32.mxu0 0.0
        %1545 = vmatmul.mubr.f32.gmra.mrb[0].mxu0 %v1377
        %v1546 = vpop.f32.mrb[0].mxu0
        %v1547 = vadd.f32 %v1360, %v1546
        %v1548 = vpop.f32.mrb[0].mxu0
        %v1549 = vadd.f32 %v1360, %v1548
        %1550 = vmatprep.mubr.f32.mxu0 0.0
        %1551 = vmatmul.mubr.f32.gmra.mrb[0].mxu0 %v1380
        %v1552 = vpop.f32.mrb[0].mxu0
        %v1553 = vadd.f32 %v1365, %v1552
        %v1554 = vpop.f32.mrb[0].mxu0
        %v1555 = vadd.f32 %v1365, %v1554
        %1556 = vmatprep.mubr.f32.mxu0 0.0
        %1557 = vmatmul.mubr.f32.gmra.mrb[0].mxu0 %v1383
        %v1558 = vpop.f32.mrb[0].mxu0
        %v1559 = vadd.f32 %v1370, %v1558
        %v1560 = vpop.f32.mrb[0].mxu0
        %v1561 = vadd.f32 %v1370, %v1560
        %1562 = vdwg.mxu0
        %1563 = vmatprep.subr.mxu0 %v1229
        %1564 = vmatpush1.msra.mxu0 %v1228
        %1565 = vmatprep.subr.mxu0 %v1245
        %1566 = vmatpush1.msra.mxu0 %v1244
        %1567 = vmatprep.subr.mxu0 %v1261
        %1568 = vmatpush1.msra.mxu0 %v1260
        %1569 = vmatprep.subr.mxu0 %v1277
        %1570 = vmatpush1.msra.mxu0 %v1276
        %1571 = vmatprep.subr.mxu0 0.0
        %1572 = vmatpush1.msra.mxu0 0.0
        %1573 = vmatprep.subr.mxu0 0.0
        %1574 = vmatpush1.msra.mxu0 0.0
        %1575 = vmatprep.subr.mxu0 0.0
        %1576 = vmatpush1.msra.mxu0 0.0
        %1577 = vmatprep.subr.mxu0 0.0
        %1578 = vmatpush1.msra.mxu0 0.0
        %1579 = vmatprep.subr.mxu0 0.0
        %1580 = vmatpush1.msra.mxu0 0.0
        %1581 = vmatprep.subr.mxu0 0.0
        %1582 = vmatpush1.msra.mxu0 0.0
        %1583 = vmatprep.subr.mxu0 0.0
        %1584 = vmatpush1.msra.mxu0 0.0
        %1585 = vmatprep.subr.mxu0 0.0
        %1586 = vmatpush1.msra.mxu0 0.0
        %1587 = vmatprep.subr.mxu0 0.0
        %1588 = vmatpush1.msra.mxu0 0.0
        %1589 = vmatprep.subr.mxu0 0.0
        %1590 = vmatpush1.msra.mxu0 0.0
        %1591 = vmatprep.subr.mxu0 0.0
        %1592 = vmatpush1.msra.mxu0 0.0
        %1593 = vmatprep.subr.mxu0 0.0
        %1594 = vmatpush1.msra.mxu0 0.0
        %1595 = vmatprep.subr.mxu0 0.0
        %1596 = vmatpush1.msra.mxu0 0.0
        %1597 = vmatprep.subr.mxu0 0.0
        %1598 = vmatpush1.msra.mxu0 0.0
        %1599 = vmatprep.subr.mxu0 0.0
        %1600 = vmatpush1.msra.mxu0 0.0
        %1601 = vmatprep.subr.mxu0 0.0
        %1602 = vmatpush1.msra.mxu0 0.0
        %1603 = vmatprep.subr.mxu0 0.0
        %1604 = vmatpush1.msra.mxu0 0.0
        %1605 = vmatprep.subr.mxu0 0.0
        %1606 = vmatpush1.msra.mxu0 0.0
        %1607 = vmatprep.subr.mxu0 0.0
        %1608 = vmatpush1.msra.mxu0 0.0
        %1609 = vmatprep.subr.mxu0 0.0
        %1610 = vmatpush1.msra.mxu0 0.0
        %1611 = vmatprep.subr.mxu0 0.0
        %1612 = vmatpush1.msra.mxu0 0.0
        %1613 = vmatprep.subr.mxu0 0.0
        %1614 = vmatpush1.msra.mxu0 0.0
        %1615 = vmatprep.subr.mxu0 0.0
        %1616 = vmatpush1.msra.mxu0 0.0
        %1617 = vmatprep.subr.mxu0 0.0
        %1618 = vmatpush1.msra.mxu0 0.0
        %1619 = vmatprep.subr.mxu0 0.0
        %1620 = vmatpush1.msra.mxu0 0.0
        %1621 = vmatprep.subr.mxu0 0.0
        %1622 = vmatpush1.msra.mxu0 0.0
        %1623 = vmatprep.subr.mxu0 0.0
        %1624 = vmatpush1.msra.mxu0 0.0
        %1625 = vmatprep.subr.mxu0 0.0
        %1626 = vmatpush1.msra.mxu0 0.0
        %1627 = vmatprep.mubr.f32.mxu0 0.0
        %1628 = vmatmul.mubr.f32.gmra.mrb[0].mxu0 %v1374
        %v1629 = vpop.f32.mrb[0].mxu0
        %v1630 = vadd.f32 %v1355, %v1629
        %v1631 = vpop.f32.mrb[0].mxu0
        %v1632 = vadd.f32 %v1355, %v1631
        %1633 = vmatprep.mubr.f32.mxu0 0.0
        %1634 = vmatmul.mubr.f32.gmra.mrb[0].mxu0 %v1377
        %v1635 = vpop.f32.mrb[0].mxu0
        %v1636 = vadd.f32 %v1360, %v1635
        %v1637 = vpop.f32.mrb[0].mxu0
        %v1638 = vadd.f32 %v1360, %v1637
        %1639 = vmatprep.mubr.f32.mxu0 0.0
        %1640 = vmatmul.mubr.f32.gmra.mrb[0].mxu0 %v1380
        %v1641 = vpop.f32.mrb[0].mxu0
        %v1642 = vadd.f32 %v1365, %v1641
        %v1643 = vpop.f32.mrb[0].mxu0
        %v1644 = vadd.f32 %v1365, %v1643
        %1645 = vmatprep.mubr.f32.mxu0 0.0
        %1646 = vmatmul.mubr.f32.gmra.mrb[0].mxu0 %v1383
        %v1647 = vpop.f32.mrb[0].mxu0
        %v1648 = vadd.f32 %v1370, %v1647
        %v1649 = vpop.f32.mrb[0].mxu0
        %v1650 = vadd.f32 %v1370, %v1649
        %1651 = vdwg.mxu0
        %1652 = vmatprep.subr.mxu0 %v1231
        %1653 = vmatpush1.msra.mxu0 %v1230
        %1654 = vmatprep.subr.mxu0 %v1247
        %1655 = vmatpush1.msra.mxu0 %v1246
        %1656 = vmatprep.subr.mxu0 %v1263
        %1657 = vmatpush1.msra.mxu0 %v1262
        %1658 = vmatprep.subr.mxu0 %v1279
        %1659 = vmatpush1.msra.mxu0 %v1278
        %1660 = vmatprep.subr.mxu0 0.0
        %1661 = vmatpush1.msra.mxu0 0.0
        %1662 = vmatprep.subr.mxu0 0.0
        %1663 = vmatpush1.msra.mxu0 0.0
        %1664 = vmatprep.subr.mxu0 0.0
        %1665 = vmatpush1.msra.mxu0 0.0
        %1666 = vmatprep.subr.mxu0 0.0
        %1667 = vmatpush1.msra.mxu0 0.0
        %1668 = vmatprep.subr.mxu0 0.0
        %1669 = vmatpush1.msra.mxu0 0.0
        %1670 = vmatprep.subr.mxu0 0.0
        %1671 = vmatpush1.msra.mxu0 0.0
        %1672 = vmatprep.subr.mxu0 0.0
        %1673 = vmatpush1.msra.mxu0 0.0
        %1674 = vmatprep.subr.mxu0 0.0
        %1675 = vmatpush1.msra.mxu0 0.0
        %1676 = vmatprep.subr.mxu0 0.0
        %1677 = vmatpush1.msra.mxu0 0.0
        %1678 = vmatprep.subr.mxu0 0.0
        %1679 = vmatpush1.msra.mxu0 0.0
        %1680 = vmatprep.subr.mxu0 0.0
        %1681 = vmatpush1.msra.mxu0 0.0
        %1682 = vmatprep.subr.mxu0 0.0
        %1683 = vmatpush1.msra.mxu0 0.0
        %1684 = vmatprep.subr.mxu0 0.0
        %1685 = vmatpush1.msra.mxu0 0.0
        %1686 = vmatprep.subr.mxu0 0.0
        %1687 = vmatpush1.msra.mxu0 0.0
        %1688 = vmatprep.subr.mxu0 0.0
        %1689 = vmatpush1.msra.mxu0 0.0
        %1690 = vmatprep.subr.mxu0 0.0
        %1691 = vmatpush1.msra.mxu0 0.0
        %1692 = vmatprep.subr.mxu0 0.0
        %1693 = vmatpush1.msra.mxu0 0.0
        %1694 = vmatprep.subr.mxu0 0.0
        %1695 = vmatpush1.msra.mxu0 0.0
        %1696 = vmatprep.subr.mxu0 0.0
        %1697 = vmatpush1.msra.mxu0 0.0
        %1698 = vmatprep.subr.mxu0 0.0
        %1699 = vmatpush1.msra.mxu0 0.0
        %1700 = vmatprep.subr.mxu0 0.0
        %1701 = vmatpush1.msra.mxu0 0.0
        %1702 = vmatprep.subr.mxu0 0.0
        %1703 = vmatpush1.msra.mxu0 0.0
        %1704 = vmatprep.subr.mxu0 0.0
        %1705 = vmatpush1.msra.mxu0 0.0
        %1706 = vmatprep.subr.mxu0 0.0
        %1707 = vmatpush1.msra.mxu0 0.0
        %1708 = vmatprep.subr.mxu0 0.0
        %1709 = vmatpush1.msra.mxu0 0.0
        %1710 = vmatprep.subr.mxu0 0.0
        %1711 = vmatpush1.msra.mxu0 0.0
        %1712 = vmatprep.subr.mxu0 0.0
        %1713 = vmatpush1.msra.mxu0 0.0
        %1714 = vmatprep.subr.mxu0 0.0
        %1715 = vmatpush1.msra.mxu0 0.0
        %1716 = vmatprep.mubr.f32.mxu0 0.0
        %1717 = vmatmul.mubr.f32.gmra.mrb[0].mxu0 %v1374
        %v1718 = vpop.f32.mrb[0].mxu0
        %v1719 = vadd.f32 %v1355, %v1718
        %v1720 = vpop.f32.mrb[0].mxu0
        %v1721 = vadd.f32 %v1355, %v1720
        %1722 = vmatprep.mubr.f32.mxu0 0.0
        %1723 = vmatmul.mubr.f32.gmra.mrb[0].mxu0 %v1377
        %v1724 = vpop.f32.mrb[0].mxu0
        %v1725 = vadd.f32 %v1360, %v1724
        %v1726 = vpop.f32.mrb[0].mxu0
        %v1727 = vadd.f32 %v1360, %v1726
        %1728 = vmatprep.mubr.f32.mxu0 0.0
        %1729 = vmatmul.mubr.f32.gmra.mrb[0].mxu0 %v1380
        %v1730 = vpop.f32.mrb[0].mxu0
        %v1731 = vadd.f32 %v1365, %v1730
        %v1732 = vpop.f32.mrb[0].mxu0
        %v1733 = vadd.f32 %v1365, %v1732
        %1734 = vmatprep.mubr.f32.mxu0 0.0
        %1735 = vmatmul.mubr.f32.gmra.mrb[0].mxu0 %v1383
        %v1736 = vpop.f32.mrb[0].mxu0
        %v1737 = vadd.f32 %v1370, %v1736
        %v1738 = vpop.f32.mrb[0].mxu0
        %v1739 = vadd.f32 %v1370, %v1738
        %1740 = vdwg.mxu0
        %1741 = vmatprep.subr.mxu0 %v1233
        %1742 = vmatpush1.msra.mxu0 %v1232
        %1743 = vmatprep.subr.mxu0 %v1249
        %1744 = vmatpush1.msra.mxu0 %v1248
        %1745 = vmatprep.subr.mxu0 %v1265
        %1746 = vmatpush1.msra.mxu0 %v1264
        %1747 = vmatprep.subr.mxu0 %v1281
        %1748 = vmatpush1.msra.mxu0 %v1280
        %1749 = vmatprep.subr.mxu0 0.0
        %1750 = vmatpush1.msra.mxu0 0.0
        %1751 = vmatprep.subr.mxu0 0.0
        %1752 = vmatpush1.msra.mxu0 0.0
        %1753 = vmatprep.subr.mxu0 0.0
        %1754 = vmatpush1.msra.mxu0 0.0
        %1755 = vmatprep.subr.mxu0 0.0
        %1756 = vmatpush1.msra.mxu0 0.0
        %1757 = vmatprep.subr.mxu0 0.0
        %1758 = vmatpush1.msra.mxu0 0.0
        %1759 = vmatprep.subr.mxu0 0.0
        %1760 = vmatpush1.msra.mxu0 0.0
        %1761 = vmatprep.subr.mxu0 0.0
        %1762 = vmatpush1.msra.mxu0 0.0
        %1763 = vmatprep.subr.mxu0 0.0
        %1764 = vmatpush1.msra.mxu0 0.0
        %1765 = vmatprep.subr.mxu0 0.0
        %1766 = vmatpush1.msra.mxu0 0.0
        %1767 = vmatprep.subr.mxu0 0.0
        %1768 = vmatpush1.msra.mxu0 0.0
        %1769 = vmatprep.subr.mxu0 0.0
        %1770 = vmatpush1.msra.mxu0 0.0
        %1771 = vmatprep.subr.mxu0 0.0
        %1772 = vmatpush1.msra.mxu0 0.0
        %1773 = vmatprep.subr.mxu0 0.0
        %1774 = vmatpush1.msra.mxu0 0.0
        %1775 = vmatprep.subr.mxu0 0.0
        %1776 = vmatpush1.msra.mxu0 0.0
        %1777 = vmatprep.subr.mxu0 0.0
        %1778 = vmatpush1.msra.mxu0 0.0
        %1779 = vmatprep.subr.mxu0 0.0
        %1780 = vmatpush1.msra.mxu0 0.0
        %1781 = vmatprep.subr.mxu0 0.0
        %1782 = vmatpush1.msra.mxu0 0.0
        %1783 = vmatprep.subr.mxu0 0.0
        %1784 = vmatpush1.msra.mxu0 0.0
        %1785 = vmatprep.subr.mxu0 0.0
        %1786 = vmatpush1.msra.mxu0 0.0
        %1787 = vmatprep.subr.mxu0 0.0
        %1788 = vmatpush1.msra.mxu0 0.0
        %1789 = vmatprep.subr.mxu0 0.0
        %1790 = vmatpush1.msra.mxu0 0.0
        %1791 = vmatprep.subr.mxu0 0.0
        %1792 = vmatpush1.msra.mxu0 0.0
        %1793 = vmatprep.subr.mxu0 0.0
        %1794 = vmatpush1.msra.mxu0 0.0
        %1795 = vmatprep.subr.mxu0 0.0
        %1796 = vmatpush1.msra.mxu0 0.0
        %1797 = vmatprep.subr.mxu0 0.0
        %1798 = vmatpush1.msra.mxu0 0.0
        %1799 = vmatprep.subr.mxu0 0.0
        %1800 = vmatpush1.msra.mxu0 0.0
        %1801 = vmatprep.subr.mxu0 0.0
        %1802 = vmatpush1.msra.mxu0 0.0
        %1803 = vmatprep.subr.mxu0 0.0
        %1804 = vmatpush1.msra.mxu0 0.0
        %1805 = vmatprep.mubr.f32.mxu0 0.0
        %1806 = vmatmul.mubr.f32.gmra.mrb[0].mxu0 %v1374
        %v1807 = vpop.f32.mrb[0].mxu0
        %v1808 = vadd.f32 %v1355, %v1807
        %v1809 = vpop.f32.mrb[0].mxu0
        %v1810 = vadd.f32 %v1355, %v1809
        %1811 = vmatprep.mubr.f32.mxu0 0.0
        %1812 = vmatmul.mubr.f32.gmra.mrb[0].mxu0 %v1377
        %v1813 = vpop.f32.mrb[0].mxu0
        %v1814 = vadd.f32 %v1360, %v1813
        %v1815 = vpop.f32.mrb[0].mxu0
        %v1816 = vadd.f32 %v1360, %v1815
        %1817 = vmatprep.mubr.f32.mxu0 0.0
        %1818 = vmatmul.mubr.f32.gmra.mrb[0].mxu0 %v1380
        %v1819 = vpop.f32.mrb[0].mxu0
        %v1820 = vadd.f32 %v1365, %v1819
        %v1821 = vpop.f32.mrb[0].mxu0
        %v1822 = vadd.f32 %v1365, %v1821
        %1823 = vmatprep.mubr.f32.mxu0 0.0
        %1824 = vmatmul.mubr.f32.gmra.mrb[0].mxu0 %v1383
        %v1825 = vpop.f32.mrb[0].mxu0
        %v1826 = vadd.f32 %v1370, %v1825
        %v1827 = vpop.f32.mrb[0].mxu0
        %v1828 = vadd.f32 %v1370, %v1827
        %1829 = vdwg.mxu0
        %1830 = vmatprep.subr.mxu0 %v1235
        %1831 = vmatpush1.msra.mxu0 %v1234
        %1832 = vmatprep.subr.mxu0 %v1251
        %1833 = vmatpush1.msra.mxu0 %v1250
        %1834 = vmatprep.subr.mxu0 %v1267
        %1835 = vmatpush1.msra.mxu0 %v1266
        %1836 = vmatprep.subr.mxu0 %v1283
        %1837 = vmatpush1.msra.mxu0 %v1282
        %1838 = vmatprep.subr.mxu0 0.0
        %1839 = vmatpush1.msra.mxu0 0.0
        %1840 = vmatprep.subr.mxu0 0.0
        %1841 = vmatpush1.msra.mxu0 0.0
        %1842 = vmatprep.subr.mxu0 0.0
        %1843 = vmatpush1.msra.mxu0 0.0
        %1844 = vmatprep.subr.mxu0 0.0
        %1845 = vmatpush1.msra.mxu0 0.0
        %1846 = vmatprep.subr.mxu0 0.0
        %1847 = vmatpush1.msra.mxu0 0.0
        %1848 = vmatprep.subr.mxu0 0.0
        %1849 = vmatpush1.msra.mxu0 0.0
        %1850 = vmatprep.subr.mxu0 0.0
        %1851 = vmatpush1.msra.mxu0 0.0
        %1852 = vmatprep.subr.mxu0 0.0
        %1853 = vmatpush1.msra.mxu0 0.0
        %1854 = vmatprep.subr.mxu0 0.0
        %1855 = vmatpush1.msra.mxu0 0.0
        %1856 = vmatprep.subr.mxu0 0.0
        %1857 = vmatpush1.msra.mxu0 0.0
        %1858 = vmatprep.subr.mxu0 0.0
        %1859 = vmatpush1.msra.mxu0 0.0
        %1860 = vmatprep.subr.mxu0 0.0
        %1861 = vmatpush1.msra.mxu0 0.0
        %1862 = vmatprep.subr.mxu0 0.0
        %1863 = vmatpush1.msra.mxu0 0.0
        %1864 = vmatprep.subr.mxu0 0.0
        %1865 = vmatpush1.msra.mxu0 0.0
        %1866 = vmatprep.subr.mxu0 0.0
        %1867 = vmatpush1.msra.mxu0 0.0
        %1868 = vmatprep.subr.mxu0 0.0
        %1869 = vmatpush1.msra.mxu0 0.0
        %1870 = vmatprep.subr.mxu0 0.0
        %1871 = vmatpush1.msra.mxu0 0.0
        %1872 = vmatprep.subr.mxu0 0.0
        %1873 = vmatpush1.msra.mxu0 0.0
        %1874 = vmatprep.subr.mxu0 0.0
        %1875 = vmatpush1.msra.mxu0 0.0
        %1876 = vmatprep.subr.mxu0 0.0
        %1877 = vmatpush1.msra.mxu0 0.0
        %1878 = vmatprep.subr.mxu0 0.0
        %1879 = vmatpush1.msra.mxu0 0.0
        %1880 = vmatprep.subr.mxu0 0.0
        %1881 = vmatpush1.msra.mxu0 0.0
        %1882 = vmatprep.subr.mxu0 0.0
        %1883 = vmatpush1.msra.mxu0 0.0
        %1884 = vmatprep.subr.mxu0 0.0
        %1885 = vmatpush1.msra.mxu0 0.0
        %1886 = vmatprep.subr.mxu0 0.0
        %1887 = vmatpush1.msra.mxu0 0.0
        %1888 = vmatprep.subr.mxu0 0.0
        %1889 = vmatpush1.msra.mxu0 0.0
        %1890 = vmatprep.subr.mxu0 0.0
        %1891 = vmatpush1.msra.mxu0 0.0
        %1892 = vmatprep.subr.mxu0 0.0
        %1893 = vmatpush1.msra.mxu0 0.0
        %1894 = vmatprep.mubr.f32.mxu0 0.0
        %1895 = vmatmul.mubr.f32.gmra.mrb[0].mxu0 %v1374
        %v1896 = vpop.f32.mrb[0].mxu0
        %v1897 = vadd.f32 %v1355, %v1896
        %v1898 = vpop.f32.mrb[0].mxu0
        %v1899 = vadd.f32 %v1355, %v1898
        %1900 = vmatprep.mubr.f32.mxu0 0.0
        %1901 = vmatmul.mubr.f32.gmra.mrb[0].mxu0 %v1377
        %v1902 = vpop.f32.mrb[0].mxu0
        %v1903 = vadd.f32 %v1360, %v1902
        %v1904 = vpop.f32.mrb[0].mxu0
        %v1905 = vadd.f32 %v1360, %v1904
        %1906 = vmatprep.mubr.f32.mxu0 0.0
        %1907 = vmatmul.mubr.f32.gmra.mrb[0].mxu0 %v1380
        %v1908 = vpop.f32.mrb[0].mxu0
        %v1909 = vadd.f32 %v1365, %v1908
        %v1910 = vpop.f32.mrb[0].mxu0
        %v1911 = vadd.f32 %v1365, %v1910
        %1912 = vmatprep.mubr.f32.mxu0 0.0
        %1913 = vmatmul.mubr.f32.gmra.mrb[0].mxu0 %v1383
        %v1914 = vpop.f32.mrb[0].mxu0
        %v1915 = vadd.f32 %v1370, %v1914
        %v1916 = vpop.f32.mrb[0].mxu0
        %v1917 = vadd.f32 %v1370, %v1916
        %1918 = vdwg.mxu0
        %1919 = vmatprep.subr.mxu0 %v1237
        %1920 = vmatpush1.msra.mxu0 %v1236
        %1921 = vmatprep.subr.mxu0 %v1253
        %1922 = vmatpush1.msra.mxu0 %v1252
        %1923 = vmatprep.subr.mxu0 %v1269
        %1924 = vmatpush1.msra.mxu0 %v1268
        %1925 = vmatprep.subr.mxu0 %v1285
        %1926 = vmatpush1.msra.mxu0 %v1284
        %1927 = vmatprep.subr.mxu0 0.0
        %1928 = vmatpush1.msra.mxu0 0.0
        %1929 = vmatprep.subr.mxu0 0.0
        %1930 = vmatpush1.msra.mxu0 0.0
        %1931 = vmatprep.subr.mxu0 0.0
        %1932 = vmatpush1.msra.mxu0 0.0
        %1933 = vmatprep.subr.mxu0 0.0
        %1934 = vmatpush1.msra.mxu0 0.0
        %1935 = vmatprep.subr.mxu0 0.0
        %1936 = vmatpush1.msra.mxu0 0.0
        %1937 = vmatprep.subr.mxu0 0.0
        %1938 = vmatpush1.msra.mxu0 0.0
        %1939 = vmatprep.subr.mxu0 0.0
        %1940 = vmatpush1.msra.mxu0 0.0
        %1941 = vmatprep.subr.mxu0 0.0
        %1942 = vmatpush1.msra.mxu0 0.0
        %1943 = vmatprep.subr.mxu0 0.0
        %1944 = vmatpush1.msra.mxu0 0.0
        %1945 = vmatprep.subr.mxu0 0.0
        %1946 = vmatpush1.msra.mxu0 0.0
        %1947 = vmatprep.subr.mxu0 0.0
        %1948 = vmatpush1.msra.mxu0 0.0
        %1949 = vmatprep.subr.mxu0 0.0
        %1950 = vmatpush1.msra.mxu0 0.0
        %1951 = vmatprep.subr.mxu0 0.0
        %1952 = vmatpush1.msra.mxu0 0.0
        %1953 = vmatprep.subr.mxu0 0.0
        %1954 = vmatpush1.msra.mxu0 0.0
        %1955 = vmatprep.subr.mxu0 0.0
        %1956 = vmatpush1.msra.mxu0 0.0
        %1957 = vmatprep.subr.mxu0 0.0
        %1958 = vmatpush1.msra.mxu0 0.0
        %1959 = vmatprep.subr.mxu0 0.0
        %1960 = vmatpush1.msra.mxu0 0.0
        %1961 = vmatprep.subr.mxu0 0.0
        %1962 = vmatpush1.msra.mxu0 0.0
        %1963 = vmatprep.subr.mxu0 0.0
        %1964 = vmatpush1.msra.mxu0 0.0
        %1965 = vmatprep.subr.mxu0 0.0
        %1966 = vmatpush1.msra.mxu0 0.0
        %1967 = vmatprep.subr.mxu0 0.0
        %1968 = vmatpush1.msra.mxu0 0.0
        %1969 = vmatprep.subr.mxu0 0.0
        %1970 = vmatpush1.msra.mxu0 0.0
        %1971 = vmatprep.subr.mxu0 0.0
        %1972 = vmatpush1.msra.mxu0 0.0
        %1973 = vmatprep.subr.mxu0 0.0
        %1974 = vmatpush1.msra.mxu0 0.0
        %1975 = vmatprep.subr.mxu0 0.0
        %1976 = vmatpush1.msra.mxu0 0.0
        %1977 = vmatprep.subr.mxu0 0.0
        %1978 = vmatpush1.msra.mxu0 0.0
        %1979 = vmatprep.subr.mxu0 0.0
        %1980 = vmatpush1.msra.mxu0 0.0
        %1981 = vmatprep.subr.mxu0 0.0
        %1982 = vmatpush1.msra.mxu0 0.0
        %1983 = vmatprep.mubr.f32.mxu0 0.0
        %1984 = vmatmul.mubr.f32.gmra.mrb[0].mxu0 %v1374
        %v1985 = vpop.f32.mrb[0].mxu0
        %v1986 = vadd.f32 %v1355, %v1985
        %v1987 = vpop.f32.mrb[0].mxu0
        %v1988 = vadd.f32 %v1355, %v1987
        %1989 = vmatprep.mubr.f32.mxu0 0.0
        %1990 = vmatmul.mubr.f32.gmra.mrb[0].mxu0 %v1377
        %v1991 = vpop.f32.mrb[0].mxu0
        %v1992 = vadd.f32 %v1360, %v1991
        %v1993 = vpop.f32.mrb[0].mxu0
        %v1994 = vadd.f32 %v1360, %v1993
        %1995 = vmatprep.mubr.f32.mxu0 0.0
        %1996 = vmatmul.mubr.f32.gmra.mrb[0].mxu0 %v1380
        %v1997 = vpop.f32.mrb[0].mxu0
        %v1998 = vadd.f32 %v1365, %v1997
        %v1999 = vpop.f32.mrb[0].mxu0
        %v2000 = vadd.f32 %v1365, %v1999
        %2001 = vmatprep.mubr.f32.mxu0 0.0
        %2002 = vmatmul.mubr.f32.gmra.mrb[0].mxu0 %v1383
        %v2003 = vpop.f32.mrb[0].mxu0
        %v2004 = vadd.f32 %v1370, %v2003
        %v2005 = vpop.f32.mrb[0].mxu0
        %v2006 = vadd.f32 %v1370, %v2005
        %2007 = vdwg.mxu0
        %2008 = vmatprep.subr.mxu0 %v1239
        %2009 = vmatpush1.msra.mxu0 %v1238
        %2010 = vmatprep.subr.mxu0 %v1255
        %2011 = vmatpush1.msra.mxu0 %v1254
        %2012 = vmatprep.subr.mxu0 %v1271
        %2013 = vmatpush1.msra.mxu0 %v1270
        %2014 = vmatprep.subr.mxu0 %v1287
        %2015 = vmatpush1.msra.mxu0 %v1286
        %2016 = vmatprep.subr.mxu0 0.0
        %2017 = vmatpush1.msra.mxu0 0.0
        %2018 = vmatprep.subr.mxu0 0.0
        %2019 = vmatpush1.msra.mxu0 0.0
        %2020 = vmatprep.subr.mxu0 0.0
        %2021 = vmatpush1.msra.mxu0 0.0
        %2022 = vmatprep.subr.mxu0 0.0
        %2023 = vmatpush1.msra.mxu0 0.0
        %2024 = vmatprep.subr.mxu0 0.0
        %2025 = vmatpush1.msra.mxu0 0.0
        %2026 = vmatprep.subr.mxu0 0.0
        %2027 = vmatpush1.msra.mxu0 0.0
        %2028 = vmatprep.subr.mxu0 0.0
        %2029 = vmatpush1.msra.mxu0 0.0
        %2030 = vmatprep.subr.mxu0 0.0
        %2031 = vmatpush1.msra.mxu0 0.0
        %2032 = vmatprep.subr.mxu0 0.0
        %2033 = vmatpush1.msra.mxu0 0.0
        %2034 = vmatprep.subr.mxu0 0.0
        %2035 = vmatpush1.msra.mxu0 0.0
        %2036 = vmatprep.subr.mxu0 0.0
        %2037 = vmatpush1.msra.mxu0 0.0
        %2038 = vmatprep.subr.mxu0 0.0
        %2039 = vmatpush1.msra.mxu0 0.0
        %2040 = vmatprep.subr.mxu0 0.0
        %2041 = vmatpush1.msra.mxu0 0.0
        %2042 = vmatprep.subr.mxu0 0.0
        %2043 = vmatpush1.msra.mxu0 0.0
        %2044 = vmatprep.subr.mxu0 0.0
        %2045 = vmatpush1.msra.mxu0 0.0
        %2046 = vmatprep.subr.mxu0 0.0
        %2047 = vmatpush1.msra.mxu0 0.0
        %2048 = vmatprep.subr.mxu0 0.0
        %2049 = vmatpush1.msra.mxu0 0.0
        %2050 = vmatprep.subr.mxu0 0.0
        %2051 = vmatpush1.msra.mxu0 0.0
        %2052 = vmatprep.subr.mxu0 0.0
        %2053 = vmatpush1.msra.mxu0 0.0
        %2054 = vmatprep.subr.mxu0 0.0
        %2055 = vmatpush1.msra.mxu0 0.0
        %2056 = vmatprep.subr.mxu0 0.0
        %2057 = vmatpush1.msra.mxu0 0.0
        %2058 = vmatprep.subr.mxu0 0.0
        %2059 = vmatpush1.msra.mxu0 0.0
        %2060 = vmatprep.subr.mxu0 0.0
        %2061 = vmatpush1.msra.mxu0 0.0
        %2062 = vmatprep.subr.mxu0 0.0
        %2063 = vmatpush1.msra.mxu0 0.0
        %2064 = vmatprep.subr.mxu0 0.0
        %2065 = vmatpush1.msra.mxu0 0.0
        %2066 = vmatprep.subr.mxu0 0.0
        %2067 = vmatpush1.msra.mxu0 0.0
        %2068 = vmatprep.subr.mxu0 0.0
        %2069 = vmatpush1.msra.mxu0 0.0
        %2070 = vmatprep.subr.mxu0 0.0
        %2071 = vmatpush1.msra.mxu0 0.0
        %2072 = vmatprep.mubr.f32.mxu0 0.0
        %2073 = vmatmul.mubr.f32.gmra.mrb[0].mxu0 %v1374
        %v2074 = vpop.f32.mrb[0].mxu0
        %v2075 = vadd.f32 %v1355, %v2074
        %v2076 = vpop.f32.mrb[0].mxu0
        %v2077 = vadd.f32 %v1355, %v2076
        %2078 = vmatprep.mubr.f32.mxu0 0.0
        %2079 = vmatmul.mubr.f32.gmra.mrb[0].mxu0 %v1377
        %v2080 = vpop.f32.mrb[0].mxu0
        %v2081 = vadd.f32 %v1360, %v2080
        %v2082 = vpop.f32.mrb[0].mxu0
        %v2083 = vadd.f32 %v1360, %v2082
        %2084 = vmatprep.mubr.f32.mxu0 0.0
        %2085 = vmatmul.mubr.f32.gmra.mrb[0].mxu0 %v1380
        %v2086 = vpop.f32.mrb[0].mxu0
        %v2087 = vadd.f32 %v1365, %v2086
        %v2088 = vpop.f32.mrb[0].mxu0
        %v2089 = vadd.f32 %v1365, %v2088
        %2090 = vmatprep.mubr.f32.mxu0 0.0
        %2091 = vmatmul.mubr.f32.gmra.mrb[0].mxu0 %v1383
        %v2092 = vpop.f32.mrb[0].mxu0
        %v2093 = vadd.f32 %v1370, %v2092
        %v2094 = vpop.f32.mrb[0].mxu0
        %v2095 = vadd.f32 %v1370, %v2094
        %2096 = vdwg.mxu0
        %v2097 = vmax.f32 %v1452, 0.0
        %v2098 = vmax.f32 %v1454, 0.0
        %v2099 = vmax.f32 %v1541, 0.0
        %v2100 = vmax.f32 %v1543, 0.0
        %v2101 = vmax.f32 %v1630, 0.0
        %v2102 = vmax.f32 %v1632, 0.0
        %v2103 = vmax.f32 %v1719, 0.0
        %v2104 = vmax.f32 %v1721, 0.0
        %v2105 = vmax.f32 %v1808, 0.0
        %v2106 = vmax.f32 %v1810, 0.0
        %v2107 = vmax.f32 %v1897, 0.0
        %v2108 = vmax.f32 %v1899, 0.0
        %v2109 = vmax.f32 %v1986, 0.0
        %v2110 = vmax.f32 %v1988, 0.0
        %v2111 = vmax.f32 %v2075, 0.0
        %v2112 = vmax.f32 %v2077, 0.0
        %v2113 = vmax.f32 %v1458, 0.0
        %v2114 = vmax.f32 %v1460, 0.0
        %v2115 = vmax.f32 %v1547, 0.0
        %v2116 = vmax.f32 %v1549, 0.0
        %v2117 = vmax.f32 %v1636, 0.0
        %v2118 = vmax.f32 %v1638, 0.0
        %v2119 = vmax.f32 %v1725, 0.0
        %v2120 = vmax.f32 %v1727, 0.0
        %v2121 = vmax.f32 %v1814, 0.0
        %v2122 = vmax.f32 %v1816, 0.0
        %v2123 = vmax.f32 %v1903, 0.0
        %v2124 = vmax.f32 %v1905, 0.0
        %v2125 = vmax.f32 %v1992, 0.0
        %v2126 = vmax.f32 %v1994, 0.0
        %v2127 = vmax.f32 %v2081, 0.0
        %v2128 = vmax.f32 %v2083, 0.0
        %v2129 = vmax.f32 %v1464, 0.0
        %v2130 = vmax.f32 %v1466, 0.0
        %v2131 = vmax.f32 %v1553, 0.0
        %v2132 = vmax.f32 %v1555, 0.0
        %v2133 = vmax.f32 %v1642, 0.0
        %v2134 = vmax.f32 %v1644, 0.0
        %v2135 = vmax.f32 %v1731, 0.0
        %v2136 = vmax.f32 %v1733, 0.0
        %v2137 = vmax.f32 %v1820, 0.0
        %v2138 = vmax.f32 %v1822, 0.0
        %v2139 = vmax.f32 %v1909, 0.0
        %v2140 = vmax.f32 %v1911, 0.0
        %v2141 = vmax.f32 %v1998, 0.0
        %v2142 = vmax.f32 %v2000, 0.0
        %v2143 = vmax.f32 %v2087, 0.0
        %v2144 = vmax.f32 %v2089, 0.0
        %v2145 = vmax.f32 %v1470, 0.0
        %v2146 = vmax.f32 %v1472, 0.0
        %v2147 = vmax.f32 %v1559, 0.0
        %v2148 = vmax.f32 %v1561, 0.0
        %v2149 = vmax.f32 %v1648, 0.0
        %v2150 = vmax.f32 %v1650, 0.0
        %v2151 = vmax.f32 %v1737, 0.0
        %v2152 = vmax.f32 %v1739, 0.0
        %v2153 = vmax.f32 %v1826, 0.0
        %v2154 = vmax.f32 %v1828, 0.0
        %v2155 = vmax.f32 %v1915, 0.0
        %v2156 = vmax.f32 %v1917, 0.0
        %v2157 = vmax.f32 %v2004, 0.0
        %v2158 = vmax.f32 %v2006, 0.0
        %v2159 = vmax.f32 %v2093, 0.0
        %v2160 = vmax.f32 %v2095, 0.0
        %v2161 = vmax.f32 %v2097, %v2099
        %v2162 = vmax.f32 %v2098, %v2100
        %v2163 = vmax.f32 %v2113, %v2115
        %v2164 = vmax.f32 %v2114, %v2116
        %v2165 = vmax.f32 %v2129, %v2131
        %v2166 = vmax.f32 %v2130, %v2132
        %v2167 = vmax.f32 %v2145, %v2147
        %v2168 = vmax.f32 %v2146, %v2148
        %v2169 = vmax.f32 %v2161, %v2101
        %v2170 = vmax.f32 %v2162, %v2102
        %v2171 = vmax.f32 %v2163, %v2117
        %v2172 = vmax.f32 %v2164, %v2118
        %v2173 = vmax.f32 %v2165, %v2133
        %v2174 = vmax.f32 %v2166, %v2134
        %v2175 = vmax.f32 %v2167, %v2149
        %v2176 = vmax.f32 %v2168, %v2150
        %v2177 = vmax.f32 %v2169, %v2103
        %v2178 = vmax.f32 %v2170, %v2104
        %v2179 = vmax.f32 %v2171, %v2119
        %v2180 = vmax.f32 %v2172, %v2120
        %v2181 = vmax.f32 %v2173, %v2135
        %v2182 = vmax.f32 %v2174, %v2136
        %v2183 = vmax.f32 %v2175, %v2151
        %v2184 = vmax.f32 %v2176, %v2152
        %v2185 = vmax.f32 %v2177, %v2105
        %v2186 = vmax.f32 %v2178, %v2106
        %v2187 = vmax.f32 %v2179, %v2121
        %v2188 = vmax.f32 %v2180, %v2122
        %v2189 = vmax.f32 %v2181, %v2137
        %v2190 = vmax.f32 %v2182, %v2138
        %v2191 = vmax.f32 %v2183, %v2153
        %v2192 = vmax.f32 %v2184, %v2154
        %v2193 = vmax.f32 %v2185, %v2107
        %v2194 = vmax.f32 %v2186, %v2108
        %v2195 = vmax.f32 %v2187, %v2123
        %v2196 = vmax.f32 %v2188, %v2124
        %v2197 = vmax.f32 %v2189, %v2139
        %v2198 = vmax.f32 %v2190, %v2140
        %v2199 = vmax.f32 %v2191, %v2155
        %v2200 = vmax.f32 %v2192, %v2156
        %v2201 = vmax.f32 %v2193, %v2109
        %v2202 = vmax.f32 %v2194, %v2110
        %v2203 = vmax.f32 %v2195, %v2125
        %v2204 = vmax.f32 %v2196, %v2126
        %v2205 = vmax.f32 %v2197, %v2141
        %v2206 = vmax.f32 %v2198, %v2142
        %v2207 = vmax.f32 %v2199, %v2157
        %v2208 = vmax.f32 %v2200, %v2158
        %v2209 = vmax.f32 %v2201, %v2111
        %v2210 = vmax.f32 %v2202, %v2112
        %v2211 = vmax.f32 %v2203, %v2127
        %v2212 = vmax.f32 %v2204, %v2128
        %v2213 = vmax.f32 %v2205, %v2143
        %v2214 = vmax.f32 %v2206, %v2144
        %v2215 = vmax.f32 %v2207, %v2159
        %v2216 = vmax.f32 %v2208, %v2160
        %v2217 = vld [vmem:[%s5] sm:$0xff]
        %v2218 = vld [vmem:[%s5 + $0x8] sm:$0xff]
        %v2219 = vld [vmem:[%s5 + $0x10] sm:$0xff]
        %v2220 = vld [vmem:[%s5 + $0x18] sm:$0xff]
        %v2221 = vld [vmem:[%s5 + $0x20] sm:$0xff]
        %v2222 = vld [vmem:[%s5 + $0x28] sm:$0xff]
        %v2223 = vld [vmem:[%s5 + $0x30] sm:$0xff]
        %v2224 = vld [vmem:[%s5 + $0x38] sm:$0xff]
        %v2225 = vld [vmem:[%s6] sm:$0xff]
        %v2226 = vld [vmem:[%s6 + $0x8] sm:$0xff]
        %v2227 = vld [vmem:[%s6 + $0x10] sm:$0xff]
        %v2228 = vld [vmem:[%s6 + $0x18] sm:$0xff]
        %v2229 = vld [vmem:[%s6 + $0x20] sm:$0xff]
        %v2230 = vld [vmem:[%s6 + $0x28] sm:$0xff]
        %v2231 = vld [vmem:[%s6 + $0x30] sm:$0xff]
        %v2232 = vld [vmem:[%s6 + $0x38] sm:$0xff]
        %2234 = vset.pattern.permute.xlu0 0
        %2235 = vperm.xlu0 %2234, %v2225
        %v2236 = vpop.permute.xlu0 %2235
        %2239 = vset.pattern.permute.xlu0 0
        %2240 = vperm.xlu0 %2239, %v2226
        %v2241 = vpop.permute.xlu0 %2240
        %2244 = vset.pattern.permute.xlu0 0
        %2245 = vperm.xlu0 %2244, %v2227
        %v2246 = vpop.permute.xlu0 %2245
        %2249 = vset.pattern.permute.xlu0 0
        %2250 = vperm.xlu0 %2249, %v2228
        %v2251 = vpop.permute.xlu0 %2250
        %2254 = vset.pattern.permute.xlu0 0
        %2255 = vperm.xlu0 %2254, %v2229
        %v2256 = vpop.permute.xlu0 %2255
        %2259 = vset.pattern.permute.xlu0 0
        %2260 = vperm.xlu0 %2259, %v2230
        %v2261 = vpop.permute.xlu0 %2260
        %2264 = vset.pattern.permute.xlu0 0
        %2265 = vperm.xlu0 %2264, %v2231
        %v2266 = vpop.permute.xlu0 %2265
        %2269 = vset.pattern.permute.xlu0 0
        %2270 = vperm.xlu0 %2269, %v2232
        %v2271 = vpop.permute.xlu0 %2270
        %v2274 = vsel %vm1372, %v2217, 0
        %v2277 = vsel %vm1372, %v2218, 0
        %v2280 = vsel %vm1372, %v2219, 0
        %v2283 = vsel %vm1372, %v2220, 0
        %v2286 = vsel %vm1372, %v2221, 0
        %v2289 = vsel %vm1372, %v2222, 0
        %v2292 = vsel %vm1372, %v2223, 0
        %v2295 = vsel %vm1372, %v2224, 0
        %2297 = vmatprep.subr.mxu0 %v2098
        %2298 = vmatpush1.msra.mxu0 %v2097
        %2299 = vmatprep.subr.mxu0 %v2114
        %2300 = vmatpush1.msra.mxu0 %v2113
        %2301 = vmatprep.subr.mxu0 %v2130
        %2302 = vmatpush1.msra.mxu0 %v2129
        %2303 = vmatprep.subr.mxu0 %v2146
        %2304 = vmatpush1.msra.mxu0 %v2145
        %2305 = vmatprep.subr.mxu0 0.0
        %2306 = vmatpush1.msra.mxu0 0.0
        %2307 = vmatprep.subr.mxu0 0.0
        %2308 = vmatpush1.msra.mxu0 0.0
        %2309 = vmatprep.subr.mxu0 0.0
        %2310 = vmatpush1.msra.mxu0 0.0
        %2311 = vmatprep.subr.mxu0 0.0
        %2312 = vmatpush1.msra.mxu0 0.0
        %2313 = vmatprep.subr.mxu0 0.0
        %2314 = vmatpush1.msra.mxu0 0.0
        %2315 = vmatprep.subr.mxu0 0.0
        %2316 = vmatpush1.msra.mxu0 0.0
        %2317 = vmatprep.subr.mxu0 0.0
        %2318 = vmatpush1.msra.mxu0 0.0
        %2319 = vmatprep.subr.mxu0 0.0
        %2320 = vmatpush1.msra.mxu0 0.0
        %2321 = vmatprep.subr.mxu0 0.0
        %2322 = vmatpush1.msra.mxu0 0.0
        %2323 = vmatprep.subr.mxu0 0.0
        %2324 = vmatpush1.msra.mxu0 0.0
        %2325 = vmatprep.subr.mxu0 0.0
        %2326 = vmatpush1.msra.mxu0 0.0
        %2327 = vmatprep.subr.mxu0 0.0
        %2328 = vmatpush1.msra.mxu0 0.0
        %2329 = vmatprep.subr.mxu0 0.0
        %2330 = vmatpush1.msra.mxu0 0.0
        %2331 = vmatprep.subr.mxu0 0.0
        %2332 = vmatpush1.msra.mxu0 0.0
        %2333 = vmatprep.subr.mxu0 0.0
        %2334 = vmatpush1.msra.mxu0 0.0
        %2335 = vmatprep.subr.mxu0 0.0
        %2336 = vmatpush1.msra.mxu0 0.0
        %2337 = vmatprep.subr.mxu0 0.0
        %2338 = vmatpush1.msra.mxu0 0.0
        %2339 = vmatprep.subr.mxu0 0.0
        %2340 = vmatpush1.msra.mxu0 0.0
        %2341 = vmatprep.subr.mxu0 0.0
        %2342 = vmatpush1.msra.mxu0 0.0
        %2343 = vmatprep.subr.mxu0 0.0
        %2344 = vmatpush1.msra.mxu0 0.0
        %2345 = vmatprep.subr.mxu0 0.0
        %2346 = vmatpush1.msra.mxu0 0.0
        %2347 = vmatprep.subr.mxu0 0.0
        %2348 = vmatpush1.msra.mxu0 0.0
        %2349 = vmatprep.subr.mxu0 0.0
        %2350 = vmatpush1.msra.mxu0 0.0
        %2351 = vmatprep.subr.mxu0 0.0
        %2352 = vmatpush1.msra.mxu0 0.0
        %2353 = vmatprep.subr.mxu0 0.0
        %2354 = vmatpush1.msra.mxu0 0.0
        %2355 = vmatprep.subr.mxu0 0.0
        %2356 = vmatpush1.msra.mxu0 0.0
        %2357 = vmatprep.subr.mxu0 0.0
        %2358 = vmatpush1.msra.mxu0 0.0
        %2359 = vmatprep.subr.mxu0 0.0
        %2360 = vmatpush1.msra.mxu0 0.0
        %2361 = vmatprep.mubr.f32.mxu0 0.0
        %2362 = vmatmul.mubr.f32.gmra.mrb[0].mxu0 %v2274
        %v2363 = vpop.f32.mrb[0].mxu0
        %v2364 = vadd.f32 %v2236, %v2363
        %v2365 = vpop.f32.mrb[0].mxu0
        %v2366 = vadd.f32 %v2236, %v2365
        %2367 = vmatprep.mubr.f32.mxu0 0.0
        %2368 = vmatmul.mubr.f32.gmra.mrb[0].mxu0 %v2277
        %v2369 = vpop.f32.mrb[0].mxu0
        %v2370 = vadd.f32 %v2241, %v2369
        %v2371 = vpop.f32.mrb[0].mxu0
        %v2372 = vadd.f32 %v2241, %v2371
        %2373 = vmatprep.mubr.f32.mxu0 0.0
        %2374 = vmatmul.mubr.f32.gmra.mrb[0].mxu0 %v2280
        %v2375 = vpop.f32.mrb[0].mxu0
        %v2376 = vadd.f32 %v2246, %v2375
        %v2377 = vpop.f32.mrb[0].mxu0
        %v2378 = vadd.f32 %v2246, %v2377
        %2379 = vmatprep.mubr.f32.mxu0 0.0
        %2380 = vmatmul.mubr.f32.gmra.mrb[0].mxu0 %v2283
        %v2381 = vpop.f32.mrb[0].mxu0
        %v2382 = vadd.f32 %v2251, %v2381
        %v2383 = vpop.f32.mrb[0].mxu0
        %v2384 = vadd.f32 %v2251, %v2383
        %2385 = vmatprep.mubr.f32.mxu0 0.0
        %2386 = vmatmul.mubr.f32.gmra.mrb[0].mxu0 %v2286
        %v2387 = vpop.f32.mrb[0].mxu0
        %v2388 = vadd.f32 %v2256, %v2387
        %v2389 = vpop.f32.mrb[0].mxu0
        %v2390 = vadd.f32 %v2256, %v2389
        %2391 = vmatprep.mubr.f32.mxu0 0.0
        %2392 = vmatmul.mubr.f32.gmra.mrb[0].mxu0 %v2289
        %v2393 = vpop.f32.mrb[0].mxu0
        %v2394 = vadd.f32 %v2261, %v2393
        %v2395 = vpop.f32.mrb[0].mxu0
        %v2396 = vadd.f32 %v2261, %v2395
        %2397 = vmatprep.mubr.f32.mxu0 0.0
        %2398 = vmatmul.mubr.f32.gmra.mrb[0].mxu0 %v2292
        %v2399 = vpop.f32.mrb[0].mxu0
        %v2400 = vadd.f32 %v2266, %v2399
        %v2401 = vpop.f32.mrb[0].mxu0
        %v2402 = vadd.f32 %v2266, %v2401
        %2403 = vmatprep.mubr.f32.mxu0 0.0
        %2404 = vmatmul.mubr.f32.gmra.mrb[0].mxu0 %v2295
        %v2405 = vpop.f32.mrb[0].mxu0
        %v2406 = vadd.f32 %v2271, %v2405
        %v2407 = vpop.f32.mrb[0].mxu0
        %v2408 = vadd.f32 %v2271, %v2407
        %2409 = vdwg.mxu0
        %2410 = vmatprep.subr.mxu0 %v2100
        %2411 = vmatpush1.msra.mxu0 %v2099
        %2412 = vmatprep.subr.mxu0 %v2116
        %2413 = vmatpush1.msra.mxu0 %v2115
        %2414 = vmatprep.subr.mxu0 %v2132
        %2415 = vmatpush1.msra.mxu0 %v2131
        %2416 = vmatprep.subr.mxu0 %v2148
        %2417 = vmatpush1.msra.mxu0 %v2147
        %2418 = vmatprep.subr.mxu0 0.0
        %2419 = vmatpush1.msra.mxu0 0.0
        %2420 = vmatprep.subr.mxu0 0.0
        %2421 = vmatpush1.msra.mxu0 0.0
        %2422 = vmatprep.subr.mxu0 0.0
        %2423 = vmatpush1.msra.mxu0 0.0
        %2424 = vmatprep.subr.mxu0 0.0
        %2425 = vmatpush1.msra.mxu0 0.0
        %2426 = vmatprep.subr.mxu0 0.0
        %2427 = vmatpush1.msra.mxu0 0.0
        %2428 = vmatprep.subr.mxu0 0.0
        %2429 = vmatpush1.msra.mxu0 0.0
        %2430 = vmatprep.subr.mxu0 0.0
        %2431 = vmatpush1.msra.mxu0 0.0
        %2432 = vmatprep.subr.mxu0 0.0
        %2433 = vmatpush1.msra.mxu0 0.0
        %2434 = vmatprep.subr.mxu0 0.0
        %2435 = vmatpush1.msra.mxu0 0.0
        %2436 = vmatprep.subr.mxu0 0.0
        %2437 = vmatpush1.msra.mxu0 0.0
        %2438 = vmatprep.subr.mxu0 0.0
        %2439 = vmatpush1.msra.mxu0 0.0
        %2440 = vmatprep.subr.mxu0 0.0
        %2441 = vmatpush1.msra.mxu0 0.0
        %2442 = vmatprep.subr.mxu0 0.0
        %2443 = vmatpush1.msra.mxu0 0.0
        %2444 = vmatprep.subr.mxu0 0.0
        %2445 = vmatpush1.msra.mxu0 0.0
        %2446 = vmatprep.subr.mxu0 0.0
        %2447 = vmatpush1.msra.mxu0 0.0
        %2448 = vmatprep.subr.mxu0 0.0
        %2449 = vmatpush1.msra.mxu0 0.0
        %2450 = vmatprep.subr.mxu0 0.0
        %2451 = vmatpush1.msra.mxu0 0.0
        %2452 = vmatprep.subr.mxu0 0.0
        %2453 = vmatpush1.msra.mxu0 0.0
        %2454 = vmatprep.subr.mxu0 0.0
        %2455 = vmatpush1.msra.mxu0 0.0
        %2456 = vmatprep.subr.mxu0 0.0
        %2457 = vmatpush1.msra.mxu0 0.0
        %2458 = vmatprep.subr.mxu0 0.0
        %2459 = vmatpush1.msra.mxu0 0.0
        %2460 = vmatprep.subr.mxu0 0.0
        %2461 = vmatpush1.msra.mxu0 0.0
        %2462 = vmatprep.subr.mxu0 0.0
        %2463 = vmatpush1.msra.mxu0 0.0
        %2464 = vmatprep.subr.mxu0 0.0
        %2465 = vmatpush1.msra.mxu0 0.0
        %2466 = vmatprep.subr.mxu0 0.0
        %2467 = vmatpush1.msra.mxu0 0.0
        %2468 = vmatprep.subr.mxu0 0.0
        %2469 = vmatpush1.msra.mxu0 0.0
        %2470 = vmatprep.subr.mxu0 0.0
        %2471 = vmatpush1.msra.mxu0 0.0
        %2472 = vmatprep.subr.mxu0 0.0
        %2473 = vmatpush1.msra.mxu0 0.0
        %2474 = vmatprep.mubr.f32.mxu0 0.0
        %2475 = vmatmul.mubr.f32.gmra.mrb[0].mxu0 %v2274
        %v2476 = vpop.f32.mrb[0].mxu0
        %v2477 = vadd.f32 %v2236, %v2476
        %v2478 = vpop.f32.mrb[0].mxu0
        %v2479 = vadd.f32 %v2236, %v2478
        %2480 = vmatprep.mubr.f32.mxu0 0.0
        %2481 = vmatmul.mubr.f32.gmra.mrb[0].mxu0 %v2277
        %v2482 = vpop.f32.mrb[0].mxu0
        %v2483 = vadd.f32 %v2241, %v2482
        %v2484 = vpop.f32.mrb[0].mxu0
        %v2485 = vadd.f32 %v2241, %v2484
        %2486 = vmatprep.mubr.f32.mxu0 0.0
        %2487 = vmatmul.mubr.f32.gmra.mrb[0].mxu0 %v2280
        %v2488 = vpop.f32.mrb[0].mxu0
        %v2489 = vadd.f32 %v2246, %v2488
        %v2490 = vpop.f32.mrb[0].mxu0
        %v2491 = vadd.f32 %v2246, %v2490
        %2492 = vmatprep.mubr.f32.mxu0 0.0
        %2493 = vmatmul.mubr.f32.gmra.mrb[0].mxu0 %v2283
        %v2494 = vpop.f32.mrb[0].mxu0
        %v2495 = vadd.f32 %v2251, %v2494
        %v2496 = vpop.f32.mrb[0].mxu0
        %v2497 = vadd.f32 %v2251, %v2496
        %2498 = vmatprep.mubr.f32.mxu0 0.0
        %2499 = vmatmul.mubr.f32.gmra.mrb[0].mxu0 %v2286
        %v2500 = vpop.f32.mrb[0].mxu0
        %v2501 = vadd.f32 %v2256, %v2500
        %v2502 = vpop.f32.mrb[0].mxu0
        %v2503 = vadd.f32 %v2256, %v2502
        %2504 = vmatprep.mubr.f32.mxu0 0.0
        %2505 = vmatmul.mubr.f32.gmra.mrb[0].mxu0 %v2289
        %v2506 = vpop.f32.mrb[0].mxu0
        %v2507 = vadd.f32 %v2261, %v2506
        %v2508 = vpop.f32.mrb[0].mxu0
        %v2509 = vadd.f32 %v2261, %v2508
        %2510 = vmatprep.mubr.f32.mxu0 0.0
        %2511 = vmatmul.mubr.f32.gmra.mrb[0].mxu0 %v2292
        %v2512 = vpop.f32.mrb[0].mxu0
        %v2513 = vadd.f32 %v2266, %v2512
        %v2514 = vpop.f32.mrb[0].mxu0
        %v2515 = vadd.f32 %v2266, %v2514
        %2516 = vmatprep.mubr.f32.mxu0 0.0
        %2517 = vmatmul.mubr.f32.gmra.mrb[0].mxu0 %v2295
        %v2518 = vpop.f32.mrb[0].mxu0
        %v2519 = vadd.f32 %v2271, %v2518
        %v2520 = vpop.f32.mrb[0].mxu0
        %v2521 = vadd.f32 %v2271, %v2520
        %2522 = vdwg.mxu0
        %2523 = vmatprep.subr.mxu0 %v2102
        %2524 = vmatpush1.msra.mxu0 %v2101
        %2525 = vmatprep.subr.mxu0 %v2118
        %2526 = vmatpush1.msra.mxu0 %v2117
        %2527 = vmatprep.subr.mxu0 %v2134
        %2528 = vmatpush1.msra.mxu0 %v2133
        %2529 = vmatprep.subr.mxu0 %v2150
        %2530 = vmatpush1.msra.mxu0 %v2149
        %2531 = vmatprep.subr.mxu0 0.0
        %2532 = vmatpush1.msra.mxu0 0.0
        %2533 = vmatprep.subr.mxu0 0.0
        %2534 = vmatpush1.msra.mxu0 0.0
        %2535 = vmatprep.subr.mxu0 0.0
        %2536 = vmatpush1.msra.mxu0 0.0
        %2537 = vmatprep.subr.mxu0 0.0
        %2538 = vmatpush1.msra.mxu0 0.0
        %2539 = vmatprep.subr.mxu0 0.0
        %2540 = vmatpush1.msra.mxu0 0.0
        %2541 = vmatprep.subr.mxu0 0.0
        %2542 = vmatpush1.msra.mxu0 0.0
        %2543 = vmatprep.subr.mxu0 0.0
        %2544 = vmatpush1.msra.mxu0 0.0
        %2545 = vmatprep.subr.mxu0 0.0
        %2546 = vmatpush1.msra.mxu0 0.0
        %2547 = vmatprep.subr.mxu0 0.0
        %2548 = vmatpush1.msra.mxu0 0.0
        %2549 = vmatprep.subr.mxu0 0.0
        %2550 = vmatpush1.msra.mxu0 0.0
        %2551 = vmatprep.subr.mxu0 0.0
        %2552 = vmatpush1.msra.mxu0 0.0
        %2553 = vmatprep.subr.mxu0 0.0
        %2554 = vmatpush1.msra.mxu0 0.0
        %2555 = vmatprep.subr.mxu0 0.0
        %2556 = vmatpush1.msra.mxu0 0.0
        %2557 = vmatprep.subr.mxu0 0.0
        %2558 = vmatpush1.msra.mxu0 0.0
        %2559 = vmatprep.subr.mxu0 0.0
        %2560 = vmatpush1.msra.mxu0 0.0
        %2561 = vmatprep.subr.mxu0 0.0
        %2562 = vmatpush1.msra.mxu0 0.0
        %2563 = vmatprep.subr.mxu0 0.0
        %2564 = vmatpush1.msra.mxu0 0.0
        %2565 = vmatprep.subr.mxu0 0.0
        %2566 = vmatpush1.msra.mxu0 0.0
        %2567 = vmatprep.subr.mxu0 0.0
        %2568 = vmatpush1.msra.mxu0 0.0
        %2569 = vmatprep.subr.mxu0 0.0
        %2570 = vmatpush1.msra.mxu0 0.0
        %2571 = vmatprep.subr.mxu0 0.0
        %2572 = vmatpush1.msra.mxu0 0.0
        %2573 = vmatprep.subr.mxu0 0.0
        %2574 = vmatpush1.msra.mxu0 0.0
        %2575 = vmatprep.subr.mxu0 0.0
        %2576 = vmatpush1.msra.mxu0 0.0
        %2577 = vmatprep.subr.mxu0 0.0
        %2578 = vmatpush1.msra.mxu0 0.0
        %2579 = vmatprep.subr.mxu0 0.0
        %2580 = vmatpush1.msra.mxu0 0.0
        %2581 = vmatprep.subr.mxu0 0.0
        %2582 = vmatpush1.msra.mxu0 0.0
        %2583 = vmatprep.subr.mxu0 0.0
        %2584 = vmatpush1.msra.mxu0 0.0
        %2585 = vmatprep.subr.mxu0 0.0
        %2586 = vmatpush1.msra.mxu0 0.0
        %2587 = vmatprep.mubr.f32.mxu0 0.0
        %2588 = vmatmul.mubr.f32.gmra.mrb[0].mxu0 %v2274
        %v2589 = vpop.f32.mrb[0].mxu0
        %v2590 = vadd.f32 %v2236, %v2589
        %v2591 = vpop.f32.mrb[0].mxu0
        %v2592 = vadd.f32 %v2236, %v2591
        %2593 = vmatprep.mubr.f32.mxu0 0.0
        %2594 = vmatmul.mubr.f32.gmra.mrb[0].mxu0 %v2277
        %v2595 = vpop.f32.mrb[0].mxu0
        %v2596 = vadd.f32 %v2241, %v2595
        %v2597 = vpop.f32.mrb[0].mxu0
        %v2598 = vadd.f32 %v2241, %v2597
        %2599 = vmatprep.mubr.f32.mxu0 0.0
        %2600 = vmatmul.mubr.f32.gmra.mrb[0].mxu0 %v2280
        %v2601 = vpop.f32.mrb[0].mxu0
        %v2602 = vadd.f32 %v2246, %v2601
        %v2603 = vpop.f32.mrb[0].mxu0
        %v2604 = vadd.f32 %v2246, %v2603
        %2605 = vmatprep.mubr.f32.mxu0 0.0
        %2606 = vmatmul.mubr.f32.gmra.mrb[0].mxu0 %v2283
        %v2607 = vpop.f32.mrb[0].mxu0
        %v2608 = vadd.f32 %v2251, %v2607
        %v2609 = vpop.f32.mrb[0].mxu0
        %v2610 = vadd.f32 %v2251, %v2609
        %2611 = vmatprep.mubr.f32.mxu0 0.0
        %2612 = vmatmul.mubr.f32.gmra.mrb[0].mxu0 %v2286
        %v2613 = vpop.f32.mrb[0].mxu0
        %v2614 = vadd.f32 %v2256, %v2613
        %v2615 = vpop.f32.mrb[0].mxu0
        %v2616 = vadd.f32 %v2256, %v2615
        %2617 = vmatprep.mubr.f32.mxu0 0.0
        %2618 = vmatmul.mubr.f32.gmra.mrb[0].mxu0 %v2289
        %v2619 = vpop.f32.mrb[0].mxu0
        %v2620 = vadd.f32 %v2261, %v2619
        %v2621 = vpop.f32.mrb[0].mxu0
        %v2622 = vadd.f32 %v2261, %v2621
        %2623 = vmatprep.mubr.f32.mxu0 0.0
        %2624 = vmatmul.mubr.f32.gmra.mrb[0].mxu0 %v2292
        %v2625 = vpop.f32.mrb[0].mxu0
        %v2626 = vadd.f32 %v2266, %v2625
        %v2627 = vpop.f32.mrb[0].mxu0
        %v2628 = vadd.f32 %v2266, %v2627
        %2629 = vmatprep.mubr.f32.mxu0 0.0
        %2630 = vmatmul.mubr.f32.gmra.mrb[0].mxu0 %v2295
        %v2631 = vpop.f32.mrb[0].mxu0
        %v2632 = vadd.f32 %v2271, %v2631
        %v2633 = vpop.f32.mrb[0].mxu0
        %v2634 = vadd.f32 %v2271, %v2633
        %2635 = vdwg.mxu0
        %2636 = vmatprep.subr.mxu0 %v2104
        %2637 = vmatpush1.msra.mxu0 %v2103
        %2638 = vmatprep.subr.mxu0 %v2120
        %2639 = vmatpush1.msra.mxu0 %v2119
        %2640 = vmatprep.subr.mxu0 %v2136
        %2641 = vmatpush1.msra.mxu0 %v2135
        %2642 = vmatprep.subr.mxu0 %v2152
        %2643 = vmatpush1.msra.mxu0 %v2151
        %2644 = vmatprep.subr.mxu0 0.0
        %2645 = vmatpush1.msra.mxu0 0.0
        %2646 = vmatprep.subr.mxu0 0.0
        %2647 = vmatpush1.msra.mxu0 0.0
        %2648 = vmatprep.subr.mxu0 0.0
        %2649 = vmatpush1.msra.mxu0 0.0
        %2650 = vmatprep.subr.mxu0 0.0
        %2651 = vmatpush1.msra.mxu0 0.0
        %2652 = vmatprep.subr.mxu0 0.0
        %2653 = vmatpush1.msra.mxu0 0.0
        %2654 = vmatprep.subr.mxu0 0.0
        %2655 = vmatpush1.msra.mxu0 0.0
        %2656 = vmatprep.subr.mxu0 0.0
        %2657 = vmatpush1.msra.mxu0 0.0
        %2658 = vmatprep.subr.mxu0 0.0
        %2659 = vmatpush1.msra.mxu0 0.0
        %2660 = vmatprep.subr.mxu0 0.0
        %2661 = vmatpush1.msra.mxu0 0.0
        %2662 = vmatprep.subr.mxu0 0.0
        %2663 = vmatpush1.msra.mxu0 0.0
        %2664 = vmatprep.subr.mxu0 0.0
        %2665 = vmatpush1.msra.mxu0 0.0
        %2666 = vmatprep.subr.mxu0 0.0
        %2667 = vmatpush1.msra.mxu0 0.0
        %2668 = vmatprep.subr.mxu0 0.0
        %2669 = vmatpush1.msra.mxu0 0.0
        %2670 = vmatprep.subr.mxu0 0.0
        %2671 = vmatpush1.msra.mxu0 0.0
        %2672 = vmatprep.subr.mxu0 0.0
        %2673 = vmatpush1.msra.mxu0 0.0
        %2674 = vmatprep.subr.mxu0 0.0
        %2675 = vmatpush1.msra.mxu0 0.0
        %2676 = vmatprep.subr.mxu0 0.0
        %2677 = vmatpush1.msra.mxu0 0.0
        %2678 = vmatprep.subr.mxu0 0.0
        %2679 = vmatpush1.msra.mxu0 0.0
        %2680 = vmatprep.subr.mxu0 0.0
        %2681 = vmatpush1.msra.mxu0 0.0
        %2682 = vmatprep.subr.mxu0 0.0
        %2683 = vmatpush1.msra.mxu0 0.0
        %2684 = vmatprep.subr.mxu0 0.0
        %2685 = vmatpush1.msra.mxu0 0.0
        %2686 = vmatprep.subr.mxu0 0.0
        %2687 = vmatpush1.msra.mxu0 0.0
        %2688 = vmatprep.subr.mxu0 0.0
        %2689 = vmatpush1.msra.mxu0 0.0
        %2690 = vmatprep.subr.mxu0 0.0
        %2691 = vmatpush1.msra.mxu0 0.0
        %2692 = vmatprep.subr.mxu0 0.0
        %2693 = vmatpush1.msra.mxu0 0.0
        %2694 = vmatprep.subr.mxu0 0.0
        %2695 = vmatpush1.msra.mxu0 0.0
        %2696 = vmatprep.subr.mxu0 0.0
        %2697 = vmatpush1.msra.mxu0 0.0
        %2698 = vmatprep.subr.mxu0 0.0
        %2699 = vmatpush1.msra.mxu0 0.0
        %2700 = vmatprep.mubr.f32.mxu0 0.0
        %2701 = vmatmul.mubr.f32.gmra.mrb[0].mxu0 %v2274
        %v2702 = vpop.f32.mrb[0].mxu0
        %v2703 = vadd.f32 %v2236, %v2702
        %v2704 = vpop.f32.mrb[0].mxu0
        %v2705 = vadd.f32 %v2236, %v2704
        %2706 = vmatprep.mubr.f32.mxu0 0.0
        %2707 = vmatmul.mubr.f32.gmra.mrb[0].mxu0 %v2277
        %v2708 = vpop.f32.mrb[0].mxu0
        %v2709 = vadd.f32 %v2241, %v2708
        %v2710 = vpop.f32.mrb[0].mxu0
        %v2711 = vadd.f32 %v2241, %v2710
        %2712 = vmatprep.mubr.f32.mxu0 0.0
        %2713 = vmatmul.mubr.f32.gmra.mrb[0].mxu0 %v2280
        %v2714 = vpop.f32.mrb[0].mxu0
        %v2715 = vadd.f32 %v2246, %v2714
        %v2716 = vpop.f32.mrb[0].mxu0
        %v2717 = vadd.f32 %v2246, %v2716
        %2718 = vmatprep.mubr.f32.mxu0 0.0
        %2719 = vmatmul.mubr.f32.gmra.mrb[0].mxu0 %v2283
        %v2720 = vpop.f32.mrb[0].mxu0
        %v2721 = vadd.f32 %v2251, %v2720
        %v2722 = vpop.f32.mrb[0].mxu0
        %v2723 = vadd.f32 %v2251, %v2722
        %2724 = vmatprep.mubr.f32.mxu0 0.0
        %2725 = vmatmul.mubr.f32.gmra.mrb[0].mxu0 %v2286
        %v2726 = vpop.f32.mrb[0].mxu0
        %v2727 = vadd.f32 %v2256, %v2726
        %v2728 = vpop.f32.mrb[0].mxu0
        %v2729 = vadd.f32 %v2256, %v2728
        %2730 = vmatprep.mubr.f32.mxu0 0.0
        %2731 = vmatmul.mubr.f32.gmra.mrb[0].mxu0 %v2289
        %v2732 = vpop.f32.mrb[0].mxu0
        %v2733 = vadd.f32 %v2261, %v2732
        %v2734 = vpop.f32.mrb[0].mxu0
        %v2735 = vadd.f32 %v2261, %v2734
        %2736 = vmatprep.mubr.f32.mxu0 0.0
        %2737 = vmatmul.mubr.f32.gmra.mrb[0].mxu0 %v2292
        %v2738 = vpop.f32.mrb[0].mxu0
        %v2739 = vadd.f32 %v2266, %v2738
        %v2740 = vpop.f32.mrb[0].mxu0
        %v2741 = vadd.f32 %v2266, %v2740
        %2742 = vmatprep.mubr.f32.mxu0 0.0
        %2743 = vmatmul.mubr.f32.gmra.mrb[0].mxu0 %v2295
        %v2744 = vpop.f32.mrb[0].mxu0
        %v2745 = vadd.f32 %v2271, %v2744
        %v2746 = vpop.f32.mrb[0].mxu0
        %v2747 = vadd.f32 %v2271, %v2746
        %2748 = vdwg.mxu0
        %2749 = vmatprep.subr.mxu0 %v2106
        %2750 = vmatpush1.msra.mxu0 %v2105
        %2751 = vmatprep.subr.mxu0 %v2122
        %2752 = vmatpush1.msra.mxu0 %v2121
        %2753 = vmatprep.subr.mxu0 %v2138
        %2754 = vmatpush1.msra.mxu0 %v2137
        %2755 = vmatprep.subr.mxu0 %v2154
        %2756 = vmatpush1.msra.mxu0 %v2153
        %2757 = vmatprep.subr.mxu0 0.0
        %2758 = vmatpush1.msra.mxu0 0.0
        %2759 = vmatprep.subr.mxu0 0.0
        %2760 = vmatpush1.msra.mxu0 0.0
        %2761 = vmatprep.subr.mxu0 0.0
        %2762 = vmatpush1.msra.mxu0 0.0
        %2763 = vmatprep.subr.mxu0 0.0
        %2764 = vmatpush1.msra.mxu0 0.0
        %2765 = vmatprep.subr.mxu0 0.0
        %2766 = vmatpush1.msra.mxu0 0.0
        %2767 = vmatprep.subr.mxu0 0.0
        %2768 = vmatpush1.msra.mxu0 0.0
        %2769 = vmatprep.subr.mxu0 0.0
        %2770 = vmatpush1.msra.mxu0 0.0
        %2771 = vmatprep.subr.mxu0 0.0
        %2772 = vmatpush1.msra.mxu0 0.0
        %2773 = vmatprep.subr.mxu0 0.0
        %2774 = vmatpush1.msra.mxu0 0.0
        %2775 = vmatprep.subr.mxu0 0.0
        %2776 = vmatpush1.msra.mxu0 0.0
        %2777 = vmatprep.subr.mxu0 0.0
        %2778 = vmatpush1.msra.mxu0 0.0
        %2779 = vmatprep.subr.mxu0 0.0
        %2780 = vmatpush1.msra.mxu0 0.0
        %2781 = vmatprep.subr.mxu0 0.0
        %2782 = vmatpush1.msra.mxu0 0.0
        %2783 = vmatprep.subr.mxu0 0.0
        %2784 = vmatpush1.msra.mxu0 0.0
        %2785 = vmatprep.subr.mxu0 0.0
        %2786 = vmatpush1.msra.mxu0 0.0
        %2787 = vmatprep.subr.mxu0 0.0
        %2788 = vmatpush1.msra.mxu0 0.0
        %2789 = vmatprep.subr.mxu0 0.0
        %2790 = vmatpush1.msra.mxu0 0.0
        %2791 = vmatprep.subr.mxu0 0.0
        %2792 = vmatpush1.msra.mxu0 0.0
        %2793 = vmatprep.subr.mxu0 0.0
        %2794 = vmatpush1.msra.mxu0 0.0
        %2795 = vmatprep.subr.mxu0 0.0
        %2796 = vmatpush1.msra.mxu0 0.0
        %2797 = vmatprep.subr.mxu0 0.0
        %2798 = vmatpush1.msra.mxu0 0.0
        %2799 = vmatprep.subr.mxu0 0.0
        %2800 = vmatpush1.msra.mxu0 0.0
        %2801 = vmatprep.subr.mxu0 0.0
        %2802 = vmatpush1.msra.mxu0 0.0
        %2803 = vmatprep.subr.mxu0 0.0
        %2804 = vmatpush1.msra.mxu0 0.0
        %2805 = vmatprep.subr.mxu0 0.0
        %2806 = vmatpush1.msra.mxu0 0.0
        %2807 = vmatprep.subr.mxu0 0.0
        %2808 = vmatpush1.msra.mxu0 0.0
        %2809 = vmatprep.subr.mxu0 0.0
        %2810 = vmatpush1.msra.mxu0 0.0
        %2811 = vmatprep.subr.mxu0 0.0
        %2812 = vmatpush1.msra.mxu0 0.0
        %2813 = vmatprep.mubr.f32.mxu0 0.0
        %2814 = vmatmul.mubr.f32.gmra.mrb[0].mxu0 %v2274
        %v2815 = vpop.f32.mrb[0].mxu0
        %v2816 = vadd.f32 %v2236, %v2815
        %v2817 = vpop.f32.mrb[0].mxu0
        %v2818 = vadd.f32 %v2236, %v2817
        %2819 = vmatprep.mubr.f32.mxu0 0.0
        %2820 = vmatmul.mubr.f32.gmra.mrb[0].mxu0 %v2277
        %v2821 = vpop.f32.mrb[0].mxu0
        %v2822 = vadd.f32 %v2241, %v2821
        %v2823 = vpop.f32.mrb[0].mxu0
        %v2824 = vadd.f32 %v2241, %v2823
        %2825 = vmatprep.mubr.f32.mxu0 0.0
        %2826 = vmatmul.mubr.f32.gmra.mrb[0].mxu0 %v2280
        %v2827 = vpop.f32.mrb[0].mxu0
        %v2828 = vadd.f32 %v2246, %v2827
        %v2829 = vpop.f32.mrb[0].mxu0
        %v2830 = vadd.f32 %v2246, %v2829
        %2831 = vmatprep.mubr.f32.mxu0 0.0
        %2832 = vmatmul.mubr.f32.gmra.mrb[0].mxu0 %v2283
        %v2833 = vpop.f32.mrb[0].mxu0
        %v2834 = vadd.f32 %v2251, %v2833
        %v2835 = vpop.f32.mrb[0].mxu0
        %v2836 = vadd.f32 %v2251, %v2835
        %2837 = vmatprep.mubr.f32.mxu0 0.0
        %2838 = vmatmul.mubr.f32.gmra.mrb[0].mxu0 %v2286
        %v2839 = vpop.f32.mrb[0].mxu0
        %v2840 = vadd.f32 %v2256, %v2839
        %v2841 = vpop.f32.mrb[0].mxu0
        %v2842 = vadd.f32 %v2256, %v2841
        %2843 = vmatprep.mubr.f32.mxu0 0.0
        %2844 = vmatmul.mubr.f32.gmra.mrb[0].mxu0 %v2289
        %v2845 = vpop.f32.mrb[0].mxu0
        %v2846 = vadd.f32 %v2261, %v2845
        %v2847 = vpop.f32.mrb[0].mxu0
        %v2848 = vadd.f32 %v2261, %v2847
        %2849 = vmatprep.mubr.f32.mxu0 0.0
        %2850 = vmatmul.mubr.f32.gmra.mrb[0].mxu0 %v2292
        %v2851 = vpop.f32.mrb[0].mxu0
        %v2852 = vadd.f32 %v2266, %v2851
        %v2853 = vpop.f32.mrb[0].mxu0
        %v2854 = vadd.f32 %v2266, %v2853
        %2855 = vmatprep.mubr.f32.mxu0 0.0
        %2856 = vmatmul.mubr.f32.gmra.mrb[0].mxu0 %v2295
        %v2857 = vpop.f32.mrb[0].mxu0
        %v2858 = vadd.f32 %v2271, %v2857
        %v2859 = vpop.f32.mrb[0].mxu0
        %v2860 = vadd.f32 %v2271, %v2859
        %2861 = vdwg.mxu0
        %2862 = vmatprep.subr.mxu0 %v2108
        %2863 = vmatpush1.msra.mxu0 %v2107
        %2864 = vmatprep.subr.mxu0 %v2124
        %2865 = vmatpush1.msra.mxu0 %v2123
        %2866 = vmatprep.subr.mxu0 %v2140
        %2867 = vmatpush1.msra.mxu0 %v2139
        %2868 = vmatprep.subr.mxu0 %v2156
        %2869 = vmatpush1.msra.mxu0 %v2155
        %2870 = vmatprep.subr.mxu0 0.0
        %2871 = vmatpush1.msra.mxu0 0.0
        %2872 = vmatprep.subr.mxu0 0.0
        %2873 = vmatpush1.msra.mxu0 0.0
        %2874 = vmatprep.subr.mxu0 0.0
        %2875 = vmatpush1.msra.mxu0 0.0
        %2876 = vmatprep.subr.mxu0 0.0
        %2877 = vmatpush1.msra.mxu0 0.0
        %2878 = vmatprep.subr.mxu0 0.0
        %2879 = vmatpush1.msra.mxu0 0.0
        %2880 = vmatprep.subr.mxu0 0.0
        %2881 = vmatpush1.msra.mxu0 0.0
        %2882 = vmatprep.subr.mxu0 0.0
        %2883 = vmatpush1.msra.mxu0 0.0
        %2884 = vmatprep.subr.mxu0 0.0
        %2885 = vmatpush1.msra.mxu0 0.0
        %2886 = vmatprep.subr.mxu0 0.0
        %2887 = vmatpush1.msra.mxu0 0.0
        %2888 = vmatprep.subr.mxu0 0.0
        %2889 = vmatpush1.msra.mxu0 0.0
        %2890 = vmatprep.subr.mxu0 0.0
        %2891 = vmatpush1.msra.mxu0 0.0
        %2892 = vmatprep.subr.mxu0 0.0
        %2893 = vmatpush1.msra.mxu0 0.0
        %2894 = vmatprep.subr.mxu0 0.0
        %2895 = vmatpush1.msra.mxu0 0.0
        %2896 = vmatprep.subr.mxu0 0.0
        %2897 = vmatpush1.msra.mxu0 0.0
        %2898 = vmatprep.subr.mxu0 0.0
        %2899 = vmatpush1.msra.mxu0 0.0
        %2900 = vmatprep.subr.mxu0 0.0
        %2901 = vmatpush1.msra.mxu0 0.0
        %2902 = vmatprep.subr.mxu0 0.0
        %2903 = vmatpush1.msra.mxu0 0.0
        %2904 = vmatprep.subr.mxu0 0.0
        %2905 = vmatpush1.msra.mxu0 0.0
        %2906 = vmatprep.subr.mxu0 0.0
        %2907 = vmatpush1.msra.mxu0 0.0
        %2908 = vmatprep.subr.mxu0 0.0
        %2909 = vmatpush1.msra.mxu0 0.0
        %2910 = vmatprep.subr.mxu0 0.0
        %2911 = vmatpush1.msra.mxu0 0.0
        %2912 = vmatprep.subr.mxu0 0.0
        %2913 = vmatpush1.msra.mxu0 0.0
        %2914 = vmatprep.subr.mxu0 0.0
        %2915 = vmatpush1.msra.mxu0 0.0
        %2916 = vmatprep.subr.mxu0 0.0
        %2917 = vmatpush1.msra.mxu0 0.0
        %2918 = vmatprep.subr.mxu0 0.0
        %2919 = vmatpush1.msra.mxu0 0.0
        %2920 = vmatprep.subr.mxu0 0.0
        %2921 = vmatpush1.msra.mxu0 0.0
        %2922 = vmatprep.subr.mxu0 0.0
        %2923 = vmatpush1.msra.mxu0 0.0
        %2924 = vmatprep.subr.mxu0 0.0
        %2925 = vmatpush1.msra.mxu0 0.0
        %2926 = vmatprep.mubr.f32.mxu0 0.0
        %2927 = vmatmul.mubr.f32.gmra.mrb[0].mxu0 %v2274
        %v2928 = vpop.f32.mrb[0].mxu0
        %v2929 = vadd.f32 %v2236, %v2928
        %v2930 = vpop.f32.mrb[0].mxu0
        %v2931 = vadd.f32 %v2236, %v2930
        %2932 = vmatprep.mubr.f32.mxu0 0.0
        %2933 = vmatmul.mubr.f32.gmra.mrb[0].mxu0 %v2277
        %v2934 = vpop.f32.mrb[0].mxu0
        %v2935 = vadd.f32 %v2241, %v2934
        %v2936 = vpop.f32.mrb[0].mxu0
        %v2937 = vadd.f32 %v2241, %v2936
        %2938 = vmatprep.mubr.f32.mxu0 0.0
        %2939 = vmatmul.mubr.f32.gmra.mrb[0].mxu0 %v2280
        %v2940 = vpop.f32.mrb[0].mxu0
        %v2941 = vadd.f32 %v2246, %v2940
        %v2942 = vpop.f32.mrb[0].mxu0
        %v2943 = vadd.f32 %v2246, %v2942
        %2944 = vmatprep.mubr.f32.mxu0 0.0
        %2945 = vmatmul.mubr.f32.gmra.mrb[0].mxu0 %v2283
        %v2946 = vpop.f32.mrb[0].mxu0
        %v2947 = vadd.f32 %v2251, %v2946
        %v2948 = vpop.f32.mrb[0].mxu0
        %v2949 = vadd.f32 %v2251, %v2948
        %2950 = vmatprep.mubr.f32.mxu0 0.0
        %2951 = vmatmul.mubr.f32.gmra.mrb[0].mxu0 %v2286
        %v2952 = vpop.f32.mrb[0].mxu0
        %v2953 = vadd.f32 %v2256, %v2952
        %v2954 = vpop.f32.mrb[0].mxu0
        %v2955 = vadd.f32 %v2256, %v2954
        %2956 = vmatprep.mubr.f32.mxu0 0.0
        %2957 = vmatmul.mubr.f32.gmra.mrb[0].mxu0 %v2289
        %v2958 = vpop.f32.mrb[0].mxu0
        %v2959 = vadd.f32 %v2261, %v2958
        %v2960 = vpop.f32.mrb[0].mxu0
        %v2961 = vadd.f32 %v2261, %v2960
        %2962 = vmatprep.mubr.f32.mxu0 0.0
        %2963 = vmatmul.mubr.f32.gmra.mrb[0].mxu0 %v2292
        %v2964 = vpop.f32.mrb[0].mxu0
        %v2965 = vadd.f32 %v2266, %v2964
        %v2966 = vpop.f32.mrb[0].mxu0
        %v2967 = vadd.f32 %v2266, %v2966
        %2968 = vmatprep.mubr.f32.mxu0 0.0
        %2969 = vmatmul.mubr.f32.gmra.mrb[0].mxu0 %v2295
        %v2970 = vpop.f32.mrb[0].mxu0
        %v2971 = vadd.f32 %v2271, %v2970
        %v2972 = vpop.f32.mrb[0].mxu0
        %v2973 = vadd.f32 %v2271, %v2972
        %2974 = vdwg.mxu0
        %2975 = vmatprep.subr.mxu0 %v2110
        %2976 = vmatpush1.msra.mxu0 %v2109
        %2977 = vmatprep.subr.mxu0 %v2126
        %2978 = vmatpush1.msra.mxu0 %v2125
        %2979 = vmatprep.subr.mxu0 %v2142
        %2980 = vmatpush1.msra.mxu0 %v2141
        %2981 = vmatprep.subr.mxu0 %v2158
        %2982 = vmatpush1.msra.mxu0 %v2157
        %2983 = vmatprep.subr.mxu0 0.0
        %2984 = vmatpush1.msra.mxu0 0.0
        %2985 = vmatprep.subr.mxu0 0.0
        %2986 = vmatpush1.msra.mxu0 0.0
        %2987 = vmatprep.subr.mxu0 0.0
        %2988 = vmatpush1.msra.mxu0 0.0
        %2989 = vmatprep.subr.mxu0 0.0
        %2990 = vmatpush1.msra.mxu0 0.0
        %2991 = vmatprep.subr.mxu0 0.0
        %2992 = vmatpush1.msra.mxu0 0.0
        %2993 = vmatprep.subr.mxu0 0.0
        %2994 = vmatpush1.msra.mxu0 0.0
        %2995 = vmatprep.subr.mxu0 0.0
        %2996 = vmatpush1.msra.mxu0 0.0
        %2997 = vmatprep.subr.mxu0 0.0
        %2998 = vmatpush1.msra.mxu0 0.0
        %2999 = vmatprep.subr.mxu0 0.0
        %3000 = vmatpush1.msra.mxu0 0.0
        %3001 = vmatprep.subr.mxu0 0.0
        %3002 = vmatpush1.msra.mxu0 0.0
        %3003 = vmatprep.subr.mxu0 0.0
        %3004 = vmatpush1.msra.mxu0 0.0
        %3005 = vmatprep.subr.mxu0 0.0
        %3006 = vmatpush1.msra.mxu0 0.0
        %3007 = vmatprep.subr.mxu0 0.0
        %3008 = vmatpush1.msra.mxu0 0.0
        %3009 = vmatprep.subr.mxu0 0.0
        %3010 = vmatpush1.msra.mxu0 0.0
        %3011 = vmatprep.subr.mxu0 0.0
        %3012 = vmatpush1.msra.mxu0 0.0
        %3013 = vmatprep.subr.mxu0 0.0
        %3014 = vmatpush1.msra.mxu0 0.0
        %3015 = vmatprep.subr.mxu0 0.0
        %3016 = vmatpush1.msra.mxu0 0.0
        %3017 = vmatprep.subr.mxu0 0.0
        %3018 = vmatpush1.msra.mxu0 0.0
        %3019 = vmatprep.subr.mxu0 0.0
        %3020 = vmatpush1.msra.mxu0 0.0
        %3021 = vmatprep.subr.mxu0 0.0
        %3022 = vmatpush1.msra.mxu0 0.0
        %3023 = vmatprep.subr.mxu0 0.0
        %3024 = vmatpush1.msra.mxu0 0.0
        %3025 = vmatprep.subr.mxu0 0.0
        %3026 = vmatpush1.msra.mxu0 0.0
        %3027 = vmatprep.subr.mxu0 0.0
        %3028 = vmatpush1.msra.mxu0 0.0
        %3029 = vmatprep.subr.mxu0 0.0
        %3030 = vmatpush1.msra.mxu0 0.0
        %3031 = vmatprep.subr.mxu0 0.0
        %3032 = vmatpush1.msra.mxu0 0.0
        %3033 = vmatprep.subr.mxu0 0.0
        %3034 = vmatpush1.msra.mxu0 0.0
        %3035 = vmatprep.subr.mxu0 0.0
        %3036 = vmatpush1.msra.mxu0 0.0
        %3037 = vmatprep.subr.mxu0 0.0
        %3038 = vmatpush1.msra.mxu0 0.0
        %3039 = vmatprep.mubr.f32.mxu0 0.0
        %3040 = vmatmul.mubr.f32.gmra.mrb[0].mxu0 %v2274
        %v3041 = vpop.f32.mrb[0].mxu0
        %v3042 = vadd.f32 %v2236, %v3041
        %v3043 = vpop.f32.mrb[0].mxu0
        %v3044 = vadd.f32 %v2236, %v3043
        %3045 = vmatprep.mubr.f32.mxu0 0.0
        %3046 = vmatmul.mubr.f32.gmra.mrb[0].mxu0 %v2277
        %v3047 = vpop.f32.mrb[0].mxu0
        %v3048 = vadd.f32 %v2241, %v3047
        %v3049 = vpop.f32.mrb[0].mxu0
        %v3050 = vadd.f32 %v2241, %v3049
        %3051 = vmatprep.mubr.f32.mxu0 0.0
        %3052 = vmatmul.mubr.f32.gmra.mrb[0].mxu0 %v2280
        %v3053 = vpop.f32.mrb[0].mxu0
        %v3054 = vadd.f32 %v2246, %v3053
        %v3055 = vpop.f32.mrb[0].mxu0
        %v3056 = vadd.f32 %v2246, %v3055
        %3057 = vmatprep.mubr.f32.mxu0 0.0
        %3058 = vmatmul.mubr.f32.gmra.mrb[0].mxu0 %v2283
        %v3059 = vpop.f32.mrb[0].mxu0
        %v3060 = vadd.f32 %v2251, %v3059
        %v3061 = vpop.f32.mrb[0].mxu0
        %v3062 = vadd.f32 %v2251, %v3061
        %3063 = vmatprep.mubr.f32.mxu0 0.0
        %3064 = vmatmul.mubr.f32.gmra.mrb[0].mxu0 %v2286
        %v3065 = vpop.f32.mrb[0].mxu0
        %v3066 = vadd.f32 %v2256, %v3065
        %v3067 = vpop.f32.mrb[0].mxu0
        %v3068 = vadd.f32 %v2256, %v3067
        %3069 = vmatprep.mubr.f32.mxu0 0.0
        %3070 = vmatmul.mubr.f32.gmra.mrb[0].mxu0 %v2289
        %v3071 = vpop.f32.mrb[0].mxu0
        %v3072 = vadd.f32 %v2261, %v3071
        %v3073 = vpop.f32.mrb[0].mxu0
        %v3074 = vadd.f32 %v2261, %v3073
        %3075 = vmatprep.mubr.f32.mxu0 0.0
        %3076 = vmatmul.mubr.f32.gmra.mrb[0].mxu0 %v2292
        %v3077 = vpop.f32.mrb[0].mxu0
        %v3078 = vadd.f32 %v2266, %v3077
        %v3079 = vpop.f32.mrb[0].mxu0
        %v3080 = vadd.f32 %v2266, %v3079
        %3081 = vmatprep.mubr.f32.mxu0 0.0
        %3082 = vmatmul.mubr.f32.gmra.mrb[0].mxu0 %v2295
        %v3083 = vpop.f32.mrb[0].mxu0
        %v3084 = vadd.f32 %v2271, %v3083
        %v3085 = vpop.f32.mrb[0].mxu0
        %v3086 = vadd.f32 %v2271, %v3085
        %3087 = vdwg.mxu0
        %3088 = vmatprep.subr.mxu0 %v2112
        %3089 = vmatpush1.msra.mxu0 %v2111
        %3090 = vmatprep.subr.mxu0 %v2128
        %3091 = vmatpush1.msra.mxu0 %v2127
        %3092 = vmatprep.subr.mxu0 %v2144
        %3093 = vmatpush1.msra.mxu0 %v2143
        %3094 = vmatprep.subr.mxu0 %v2160
        %3095 = vmatpush1.msra.mxu0 %v2159
        %3096 = vmatprep.subr.mxu0 0.0
        %3097 = vmatpush1.msra.mxu0 0.0
        %3098 = vmatprep.subr.mxu0 0.0
        %3099 = vmatpush1.msra.mxu0 0.0
        %3100 = vmatprep.subr.mxu0 0.0
        %3101 = vmatpush1.msra.mxu0 0.0
        %3102 = vmatprep.subr.mxu0 0.0
        %3103 = vmatpush1.msra.mxu0 0.0
        %3104 = vmatprep.subr.mxu0 0.0
        %3105 = vmatpush1.msra.mxu0 0.0
        %3106 = vmatprep.subr.mxu0 0.0
        %3107 = vmatpush1.msra.mxu0 0.0
        %3108 = vmatprep.subr.mxu0 0.0
        %3109 = vmatpush1.msra.mxu0 0.0
        %3110 = vmatprep.subr.mxu0 0.0
        %3111 = vmatpush1.msra.mxu0 0.0
        %3112 = vmatprep.subr.mxu0 0.0
        %3113 = vmatpush1.msra.mxu0 0.0
        %3114 = vmatprep.subr.mxu0 0.0
        %3115 = vmatpush1.msra.mxu0 0.0
        %3116 = vmatprep.subr.mxu0 0.0
        %3117 = vmatpush1.msra.mxu0 0.0
        %3118 = vmatprep.subr.mxu0 0.0
        %3119 = vmatpush1.msra.mxu0 0.0
        %3120 = vmatprep.subr.mxu0 0.0
        %3121 = vmatpush1.msra.mxu0 0.0
        %3122 = vmatprep.subr.mxu0 0.0
        %3123 = vmatpush1.msra.mxu0 0.0
        %3124 = vmatprep.subr.mxu0 0.0
        %3125 = vmatpush1.msra.mxu0 0.0
        %3126 = vmatprep.subr.mxu0 0.0
        %3127 = vmatpush1.msra.mxu0 0.0
        %3128 = vmatprep.subr.mxu0 0.0
        %3129 = vmatpush1.msra.mxu0 0.0
        %3130 = vmatprep.subr.mxu0 0.0
        %3131 = vmatpush1.msra.mxu0 0.0
        %3132 = vmatprep.subr.mxu0 0.0
        %3133 = vmatpush1.msra.mxu0 0.0
        %3134 = vmatprep.subr.mxu0 0.0
        %3135 = vmatpush1.msra.mxu0 0.0
        %3136 = vmatprep.subr.mxu0 0.0
        %3137 = vmatpush1.msra.mxu0 0.0
        %3138 = vmatprep.subr.mxu0 0.0
        %3139 = vmatpush1.msra.mxu0 0.0
        %3140 = vmatprep.subr.mxu0 0.0
        %3141 = vmatpush1.msra.mxu0 0.0
        %3142 = vmatprep.subr.mxu0 0.0
        %3143 = vmatpush1.msra.mxu0 0.0
        %3144 = vmatprep.subr.mxu0 0.0
        %3145 = vmatpush1.msra.mxu0 0.0
        %3146 = vmatprep.subr.mxu0 0.0
        %3147 = vmatpush1.msra.mxu0 0.0
        %3148 = vmatprep.subr.mxu0 0.0
        %3149 = vmatpush1.msra.mxu0 0.0
        %3150 = vmatprep.subr.mxu0 0.0
        %3151 = vmatpush1.msra.mxu0 0.0
        %3152 = vmatprep.mubr.f32.mxu0 0.0
        %3153 = vmatmul.mubr.f32.gmra.mrb[0].mxu0 %v2274
        %v3154 = vpop.f32.mrb[0].mxu0
        %v3155 = vadd.f32 %v2236, %v3154
        %v3156 = vpop.f32.mrb[0].mxu0
        %v3157 = vadd.f32 %v2236, %v3156
        %3158 = vmatprep.mubr.f32.mxu0 0.0
        %3159 = vmatmul.mubr.f32.gmra.mrb[0].mxu0 %v2277
        %v3160 = vpop.f32.mrb[0].mxu0
        %v3161 = vadd.f32 %v2241, %v3160
        %v3162 = vpop.f32.mrb[0].mxu0
        %v3163 = vadd.f32 %v2241, %v3162
        %3164 = vmatprep.mubr.f32.mxu0 0.0
        %3165 = vmatmul.mubr.f32.gmra.mrb[0].mxu0 %v2280
        %v3166 = vpop.f32.mrb[0].mxu0
        %v3167 = vadd.f32 %v2246, %v3166
        %v3168 = vpop.f32.mrb[0].mxu0
        %v3169 = vadd.f32 %v2246, %v3168
        %3170 = vmatprep.mubr.f32.mxu0 0.0
        %3171 = vmatmul.mubr.f32.gmra.mrb[0].mxu0 %v2283
        %v3172 = vpop.f32.mrb[0].mxu0
        %v3173 = vadd.f32 %v2251, %v3172
        %v3174 = vpop.f32.mrb[0].mxu0
        %v3175 = vadd.f32 %v2251, %v3174
        %3176 = vmatprep.mubr.f32.mxu0 0.0
        %3177 = vmatmul.mubr.f32.gmra.mrb[0].mxu0 %v2286
        %v3178 = vpop.f32.mrb[0].mxu0
        %v3179 = vadd.f32 %v2256, %v3178
        %v3180 = vpop.f32.mrb[0].mxu0
        %v3181 = vadd.f32 %v2256, %v3180
        %3182 = vmatprep.mubr.f32.mxu0 0.0
        %3183 = vmatmul.mubr.f32.gmra.mrb[0].mxu0 %v2289
        %v3184 = vpop.f32.mrb[0].mxu0
        %v3185 = vadd.f32 %v2261, %v3184
        %v3186 = vpop.f32.mrb[0].mxu0
        %v3187 = vadd.f32 %v2261, %v3186
        %3188 = vmatprep.mubr.f32.mxu0 0.0
        %3189 = vmatmul.mubr.f32.gmra.mrb[0].mxu0 %v2292
        %v3190 = vpop.f32.mrb[0].mxu0
        %v3191 = vadd.f32 %v2266, %v3190
        %v3192 = vpop.f32.mrb[0].mxu0
        %v3193 = vadd.f32 %v2266, %v3192
        %3194 = vmatprep.mubr.f32.mxu0 0.0
        %3195 = vmatmul.mubr.f32.gmra.mrb[0].mxu0 %v2295
        %v3196 = vpop.f32.mrb[0].mxu0
        %v3197 = vadd.f32 %v2271, %v3196
        %v3198 = vpop.f32.mrb[0].mxu0
        %v3199 = vadd.f32 %v2271, %v3198
        %3200 = vdwg.mxu0
        %v3201 = vmax.f32 %v2364, 0.0
        %v3202 = vmax.f32 %v2366, 0.0
        %v3203 = vmax.f32 %v2477, 0.0
        %v3204 = vmax.f32 %v2479, 0.0
        %v3205 = vmax.f32 %v2590, 0.0
        %v3206 = vmax.f32 %v2592, 0.0
        %v3207 = vmax.f32 %v2703, 0.0
        %v3208 = vmax.f32 %v2705, 0.0
        %v3209 = vmax.f32 %v2816, 0.0
        %v3210 = vmax.f32 %v2818, 0.0
        %v3211 = vmax.f32 %v2929, 0.0
        %v3212 = vmax.f32 %v2931, 0.0
        %v3213 = vmax.f32 %v3042, 0.0
        %v3214 = vmax.f32 %v3044, 0.0
        %v3215 = vmax.f32 %v3155, 0.0
        %v3216 = vmax.f32 %v3157, 0.0
        %v3217 = vmax.f32 %v2370, 0.0
        %v3218 = vmax.f32 %v2372, 0.0
        %v3219 = vmax.f32 %v2483, 0.0
        %v3220 = vmax.f32 %v2485, 0.0
        %v3221 = vmax.f32 %v2596, 0.0
        %v3222 = vmax.f32 %v2598, 0.0
        %v3223 = vmax.f32 %v2709, 0.0
        %v3224 = vmax.f32 %v2711, 0.0
        %v3225 = vmax.f32 %v2822, 0.0
        %v3226 = vmax.f32 %v2824, 0.0
        %v3227 = vmax.f32 %v2935, 0.0
        %v3228 = vmax.f32 %v2937, 0.0
        %v3229 = vmax.f32 %v3048, 0.0
        %v3230 = vmax.f32 %v3050, 0.0
        %v3231 = vmax.f32 %v3161, 0.0
        %v3232 = vmax.f32 %v3163, 0.0
        %v3233 = vmax.f32 %v2376, 0.0
        %v3234 = vmax.f32 %v2378, 0.0
        %v3235 = vmax.f32 %v2489, 0.0
        %v3236 = vmax.f32 %v2491, 0.0
        %v3237 = vmax.f32 %v2602, 0.0
        %v3238 = vmax.f32 %v2604, 0.0
        %v3239 = vmax.f32 %v2715, 0.0
        %v3240 = vmax.f32 %v2717, 0.0
        %v3241 = vmax.f32 %v2828, 0.0
        %v3242 = vmax.f32 %v2830, 0.0
        %v3243 = vmax.f32 %v2941, 0.0
        %v3244 = vmax.f32 %v2943, 0.0
        %v3245 = vmax.f32 %v3054, 0.0
        %v3246 = vmax.f32 %v3056, 0.0
        %v3247 = vmax.f32 %v3167, 0.0
        %v3248 = vmax.f32 %v3169, 0.0
        %v3249 = vmax.f32 %v2382, 0.0
        %v3250 = vmax.f32 %v2384, 0.0
        %v3251 = vmax.f32 %v2495, 0.0
        %v3252 = vmax.f32 %v2497, 0.0
        %v3253 = vmax.f32 %v2608, 0.0
        %v3254 = vmax.f32 %v2610, 0.0
        %v3255 = vmax.f32 %v2721, 0.0
        %v3256 = vmax.f32 %v2723, 0.0
        %v3257 = vmax.f32 %v2834, 0.0
        %v3258 = vmax.f32 %v2836, 0.0
        %v3259 = vmax.f32 %v2947, 0.0
        %v3260 = vmax.f32 %v2949, 0.0
        %v3261 = vmax.f32 %v3060, 0.0
        %v3262 = vmax.f32 %v3062, 0.0
        %v3263 = vmax.f32 %v3173, 0.0
        %v3264 = vmax.f32 %v3175, 0.0
        %v3265 = vmax.f32 %v2388, 0.0
        %v3266 = vmax.f32 %v2390, 0.0
        %v3267 = vmax.f32 %v2501, 0.0
        %v3268 = vmax.f32 %v2503, 0.0
        %v3269 = vmax.f32 %v2614, 0.0
        %v3270 = vmax.f32 %v2616, 0.0
        %v3271 = vmax.f32 %v2727, 0.0
        %v3272 = vmax.f32 %v2729, 0.0
        %v3273 = vmax.f32 %v2840, 0.0
        %v3274 = vmax.f32 %v2842, 0.0
        %v3275 = vmax.f32 %v2953, 0.0
        %v3276 = vmax.f32 %v2955, 0.0
        %v3277 = vmax.f32 %v3066, 0.0
        %v3278 = vmax.f32 %v3068, 0.0
        %v3279 = vmax.f32 %v3179, 0.0
        %v3280 = vmax.f32 %v3181, 0.0
        %v3281 = vmax.f32 %v2394, 0.0
        %v3282 = vmax.f32 %v2396, 0.0
        %v3283 = vmax.f32 %v2507, 0.0
        %v3284 = vmax.f32 %v2509, 0.0
        %v3285 = vmax.f32 %v2620, 0.0
        %v3286 = vmax.f32 %v2622, 0.0
        %v3287 = vmax.f32 %v2733, 0.0
        %v3288 = vmax.f32 %v2735, 0.0
        %v3289 = vmax.f32 %v2846, 0.0
        %v3290 = vmax.f32 %v2848, 0.0
        %v3291 = vmax.f32 %v2959, 0.0
        %v3292 = vmax.f32 %v2961, 0.0
        %v3293 = vmax.f32 %v3072, 0.0
        %v3294 = vmax.f32 %v3074, 0.0
        %v3295 = vmax.f32 %v3185, 0.0
        %v3296 = vmax.f32 %v3187, 0.0
        %v3297 = vmax.f32 %v2400, 0.0
        %v3298 = vmax.f32 %v2402, 0.0
        %v3299 = vmax.f32 %v2513, 0.0
        %v3300 = vmax.f32 %v2515, 0.0
        %v3301 = vmax.f32 %v2626, 0.0
        %v3302 = vmax.f32 %v2628, 0.0
        %v3303 = vmax.f32 %v2739, 0.0
        %v3304 = vmax.f32 %v2741, 0.0
        %v3305 = vmax.f32 %v2852, 0.0
        %v3306 = vmax.f32 %v2854, 0.0
        %v3307 = vmax.f32 %v2965, 0.0
        %v3308 = vmax.f32 %v2967, 0.0
        %v3309 = vmax.f32 %v3078, 0.0
        %v3310 = vmax.f32 %v3080, 0.0
        %v3311 = vmax.f32 %v3191, 0.0
        %v3312 = vmax.f32 %v3193, 0.0
        %v3313 = vmax.f32 %v2406, 0.0
        %v3314 = vmax.f32 %v2408, 0.0
        %v3315 = vmax.f32 %v2519, 0.0
        %v3316 = vmax.f32 %v2521, 0.0
        %v3317 = vmax.f32 %v2632, 0.0
        %v3318 = vmax.f32 %v2634, 0.0
        %v3319 = vmax.f32 %v2745, 0.0
        %v3320 = vmax.f32 %v2747, 0.0
        %v3321 = vmax.f32 %v2858, 0.0
        %v3322 = vmax.f32 %v2860, 0.0
        %v3323 = vmax.f32 %v2971, 0.0
        %v3324 = vmax.f32 %v2973, 0.0
        %v3325 = vmax.f32 %v3084, 0.0
        %v3326 = vmax.f32 %v3086, 0.0
        %v3327 = vmax.f32 %v3197, 0.0
        %v3328 = vmax.f32 %v3199, 0.0
        %v3329 = vmax.f32 %v3201, %v3203
        %v3330 = vmax.f32 %v3202, %v3204
        %v3331 = vmax.f32 %v3217, %v3219
        %v3332 = vmax.f32 %v3218, %v3220
        %v3333 = vmax.f32 %v3233, %v3235
        %v3334 = vmax.f32 %v3234, %v3236
        %v3335 = vmax.f32 %v3249, %v3251
        %v3336 = vmax.f32 %v3250, %v3252
        %v3337 = vmax.f32 %v3265, %v3267
        %v3338 = vmax.f32 %v3266, %v3268
        %v3339 = vmax.f32 %v3281, %v3283
        %v3340 = vmax.f32 %v3282, %v3284
        %v3341 = vmax.f32 %v3297, %v3299
        %v3342 = vmax.f32 %v3298, %v3300
        %v3343 = vmax.f32 %v3313, %v3315
        %v3344 = vmax.f32 %v3314, %v3316
        %v3345 = vmax.f32 %v3329, %v3205
        %v3346 = vmax.f32 %v3330, %v3206
        %v3347 = vmax.f32 %v3331, %v3221
        %v3348 = vmax.f32 %v3332, %v3222
        %v3349 = vmax.f32 %v3333, %v3237
        %v3350 = vmax.f32 %v3334, %v3238
        %v3351 = vmax.f32 %v3335, %v3253
        %v3352 = vmax.f32 %v3336, %v3254
        %v3353 = vmax.f32 %v3337, %v3269
        %v3354 = vmax.f32 %v3338, %v3270
        %v3355 = vmax.f32 %v3339, %v3285
        %v3356 = vmax.f32 %v3340, %v3286
        %v3357 = vmax.f32 %v3341, %v3301
        %v3358 = vmax.f32 %v3342, %v3302
        %v3359 = vmax.f32 %v3343, %v3317
        %v3360 = vmax.f32 %v3344, %v3318
        %v3361 = vmax.f32 %v3345, %v3207
        %v3362 = vmax.f32 %v3346, %v3208
        %v3363 = vmax.f32 %v3347, %v3223
        %v3364 = vmax.f32 %v3348, %v3224
        %v3365 = vmax.f32 %v3349, %v3239
        %v3366 = vmax.f32 %v3350, %v3240
        %v3367 = vmax.f32 %v3351, %v3255
        %v3368 = vmax.f32 %v3352, %v3256
        %v3369 = vmax.f32 %v3353, %v3271
        %v3370 = vmax.f32 %v3354, %v3272
        %v3371 = vmax.f32 %v3355, %v3287
        %v3372 = vmax.f32 %v3356, %v3288
        %v3373 = vmax.f32 %v3357, %v3303
        %v3374 = vmax.f32 %v3358, %v3304
        %v3375 = vmax.f32 %v3359, %v3319
        %v3376 = vmax.f32 %v3360, %v3320
        %v3377 = vmax.f32 %v3361, %v3209
        %v3378 = vmax.f32 %v3362, %v3210
        %v3379 = vmax.f32 %v3363, %v3225
        %v3380 = vmax.f32 %v3364, %v3226
        %v3381 = vmax.f32 %v3365, %v3241
        %v3382 = vmax.f32 %v3366, %v3242
        %v3383 = vmax.f32 %v3367, %v3257
        %v3384 = vmax.f32 %v3368, %v3258
        %v3385 = vmax.f32 %v3369, %v3273
        %v3386 = vmax.f32 %v3370, %v3274
        %v3387 = vmax.f32 %v3371, %v3289
        %v3388 = vmax.f32 %v3372, %v3290
        %v3389 = vmax.f32 %v3373, %v3305
        %v3390 = vmax.f32 %v3374, %v3306
        %v3391 = vmax.f32 %v3375, %v3321
        %v3392 = vmax.f32 %v3376, %v3322
        %v3393 = vmax.f32 %v3377, %v3211
        %v3394 = vmax.f32 %v3378, %v3212
        %v3395 = vmax.f32 %v3379, %v3227
        %v3396 = vmax.f32 %v3380, %v3228
        %v3397 = vmax.f32 %v3381, %v3243
        %v3398 = vmax.f32 %v3382, %v3244
        %v3399 = vmax.f32 %v3383, %v3259
        %v3400 = vmax.f32 %v3384, %v3260
        %v3401 = vmax.f32 %v3385, %v3275
        %v3402 = vmax.f32 %v3386, %v3276
        %v3403 = vmax.f32 %v3387, %v3291
        %v3404 = vmax.f32 %v3388, %v3292
        %v3405 = vmax.f32 %v3389, %v3307
        %v3406 = vmax.f32 %v3390, %v3308
        %v3407 = vmax.f32 %v3391, %v3323
        %v3408 = vmax.f32 %v3392, %v3324
        %v3409 = vmax.f32 %v3393, %v3213
        %v3410 = vmax.f32 %v3394, %v3214
        %v3411 = vmax.f32 %v3395, %v3229
        %v3412 = vmax.f32 %v3396, %v3230
        %v3413 = vmax.f32 %v3397, %v3245
        %v3414 = vmax.f32 %v3398, %v3246
        %v3415 = vmax.f32 %v3399, %v3261
        %v3416 = vmax.f32 %v3400, %v3262
        %v3417 = vmax.f32 %v3401, %v3277
        %v3418 = vmax.f32 %v3402, %v3278
        %v3419 = vmax.f32 %v3403, %v3293
        %v3420 = vmax.f32 %v3404, %v3294
        %v3421 = vmax.f32 %v3405, %v3309
        %v3422 = vmax.f32 %v3406, %v3310
        %v3423 = vmax.f32 %v3407, %v3325
        %v3424 = vmax.f32 %v3408, %v3326
        %v3425 = vmax.f32 %v3409, %v3215
        %v3426 = vmax.f32 %v3410, %v3216
        %v3427 = vmax.f32 %v3411, %v3231
        %v3428 = vmax.f32 %v3412, %v3232
        %v3429 = vmax.f32 %v3413, %v3247
        %v3430 = vmax.f32 %v3414, %v3248
        %v3431 = vmax.f32 %v3415, %v3263
        %v3432 = vmax.f32 %v3416, %v3264
        %v3433 = vmax.f32 %v3417, %v3279
        %v3434 = vmax.f32 %v3418, %v3280
        %v3435 = vmax.f32 %v3419, %v3295
        %v3436 = vmax.f32 %v3420, %v3296
        %v3437 = vmax.f32 %v3421, %v3311
        %v3438 = vmax.f32 %v3422, %v3312
        %v3439 = vmax.f32 %v3423, %v3327
        %v3440 = vmax.f32 %v3424, %v3328
        %v3441 = vld [vmem:[%s7] sm:$0xff]
        %v3442 = vld [vmem:[%s7 + $0x8] sm:$0xff]
        %v3443 = vld [vmem:[%s7 + $0x10] sm:$0xff]
        %v3444 = vld [vmem:[%s7 + $0x18] sm:$0xff]
        %v3445 = vld [vmem:[%s7 + $0x20] sm:$0xff]
        %v3446 = vld [vmem:[%s7 + $0x28] sm:$0xff]
        %v3447 = vld [vmem:[%s7 + $0x30] sm:$0xff]
        %v3448 = vld [vmem:[%s7 + $0x38] sm:$0xff]
        %v3449 = vld [vmem:[%s7 + $0x40] sm:$0xff]
        %v3450 = vld [vmem:[%s7 + $0x48] sm:$0xff]
        %v3451 = vld [vmem:[%s7 + $0x50] sm:$0xff]
        %v3452 = vld [vmem:[%s7 + $0x58] sm:$0xff]
        %v3453 = vld [vmem:[%s7 + $0x60] sm:$0xff]
        %v3454 = vld [vmem:[%s7 + $0x68] sm:$0xff]
        %v3455 = vld [vmem:[%s7 + $0x70] sm:$0xff]
        %v3456 = vld [vmem:[%s7 + $0x78] sm:$0xff]
        %v3457 = vld [vmem:[%s8] sm:$0xff]
        %v3458 = vld [vmem:[%s8 + $0x8] sm:$0xff]
        %v3459 = vld [vmem:[%s8 + $0x10] sm:$0xff]
        %v3460 = vld [vmem:[%s8 + $0x18] sm:$0xff]
        %v3461 = vld [vmem:[%s8 + $0x20] sm:$0xff]
        %v3462 = vld [vmem:[%s8 + $0x28] sm:$0xff]
        %v3463 = vld [vmem:[%s8 + $0x30] sm:$0xff]
        %v3464 = vld [vmem:[%s8 + $0x38] sm:$0xff]
        %v3465 = vld [vmem:[%s8 + $0x40] sm:$0xff]
        %v3466 = vld [vmem:[%s8 + $0x48] sm:$0xff]
        %v3467 = vld [vmem:[%s8 + $0x50] sm:$0xff]
        %v3468 = vld [vmem:[%s8 + $0x58] sm:$0xff]
        %v3469 = vld [vmem:[%s8 + $0x60] sm:$0xff]
        %v3470 = vld [vmem:[%s8 + $0x68] sm:$0xff]
        %v3471 = vld [vmem:[%s8 + $0x70] sm:$0xff]
        %v3472 = vld [vmem:[%s8 + $0x78] sm:$0xff]
        %3474 = vset.pattern.permute.xlu0 0
        %3475 = vperm.xlu0 %3474, %v3457
        %v3476 = vpop.permute.xlu0 %3475
        %3479 = vset.pattern.permute.xlu0 0
        %3480 = vperm.xlu0 %3479, %v3458
        %v3481 = vpop.permute.xlu0 %3480
        %3484 = vset.pattern.permute.xlu0 0
        %3485 = vperm.xlu0 %3484, %v3459
        %v3486 = vpop.permute.xlu0 %3485
        %3489 = vset.pattern.permute.xlu0 0
        %3490 = vperm.xlu0 %3489, %v3460
        %v3491 = vpop.permute.xlu0 %3490
        %3494 = vset.pattern.permute.xlu0 0
        %3495 = vperm.xlu0 %3494, %v3461
        %v3496 = vpop.permute.xlu0 %3495
        %3499 = vset.pattern.permute.xlu0 0
        %3500 = vperm.xlu0 %3499, %v3462
        %v3501 = vpop.permute.xlu0 %3500
        %3504 = vset.pattern.permute.xlu0 0
        %3505 = vperm.xlu0 %3504, %v3463
        %v3506 = vpop.permute.xlu0 %3505
        %3509 = vset.pattern.permute.xlu0 0
        %3510 = vperm.xlu0 %3509, %v3464
        %v3511 = vpop.permute.xlu0 %3510
        %3514 = vset.pattern.permute.xlu0 0
        %3515 = vperm.xlu0 %3514, %v3465
        %v3516 = vpop.permute.xlu0 %3515
        %3519 = vset.pattern.permute.xlu0 0
        %3520 = vperm.xlu0 %3519, %v3466
        %v3521 = vpop.permute.xlu0 %3520
        %3524 = vset.pattern.permute.xlu0 0
        %3525 = vperm.xlu0 %3524, %v3467
        %v3526 = vpop.permute.xlu0 %3525
        %3529 = vset.pattern.permute.xlu0 0
        %3530 = vperm.xlu0 %3529, %v3468
        %v3531 = vpop.permute.xlu0 %3530
        %3534 = vset.pattern.permute.xlu0 0
        %3535 = vperm.xlu0 %3534, %v3469
        %v3536 = vpop.permute.xlu0 %3535
        %3539 = vset.pattern.permute.xlu0 0
        %3540 = vperm.xlu0 %3539, %v3470
        %v3541 = vpop.permute.xlu0 %3540
        %3544 = vset.pattern.permute.xlu0 0
        %3545 = vperm.xlu0 %3544, %v3471
        %v3546 = vpop.permute.xlu0 %3545
        %3549 = vset.pattern.permute.xlu0 0
        %3550 = vperm.xlu0 %3549, %v3472
        %v3551 = vpop.permute.xlu0 %3550
        %vm3553 = vcmask 523264
        %v3555 = vsel %vm3553, %v3441, 0
        %v3558 = vsel %vm3553, %v3442, 0
        %v3561 = vsel %vm3553, %v3443, 0
        %v3564 = vsel %vm3553, %v3444, 0
        %v3567 = vsel %vm3553, %v3445, 0
        %v3570 = vsel %vm3553, %v3446, 0
        %v3573 = vsel %vm3553, %v3447, 0
        %v3576 = vsel %vm3553, %v3448, 0
        %v3579 = vsel %vm3553, %v3449, 0
        %v3582 = vsel %vm3553, %v3450, 0
        %v3585 = vsel %vm3553, %v3451, 0
        %v3588 = vsel %vm3553, %v3452, 0
        %v3591 = vsel %vm3553, %v3453, 0
        %v3594 = vsel %vm3553, %v3454, 0
        %v3597 = vsel %vm3553, %v3455, 0
        %v3600 = vsel %vm3553, %v3456, 0
        %3602 = vmatprep.subr.mxu0 %v3202
        %3603 = vmatpush1.msra.mxu0 %v3201
        %3604 = vmatprep.subr.mxu0 %v3218
        %3605 = vmatpush1.msra.mxu0 %v3217
        %3606 = vmatprep.subr.mxu0 %v3234
        %3607 = vmatpush1.msra.mxu0 %v3233
        %3608 = vmatprep.subr.mxu0 %v3250
        %3609 = vmatpush1.msra.mxu0 %v3249
        %3610 = vmatprep.subr.mxu0 %v3266
        %3611 = vmatpush1.msra.mxu0 %v3265
        %3612 = vmatprep.subr.mxu0 %v3282
        %3613 = vmatpush1.msra.mxu0 %v3281
        %3614 = vmatprep.subr.mxu0 %v3298
        %3615 = vmatpush1.msra.mxu0 %v3297
        %3616 = vmatprep.subr.mxu0 %v3314
        %3617 = vmatpush1.msra.mxu0 %v3313
        %3618 = vmatprep.subr.mxu0 0.0
        %3619 = vmatpush1.msra.mxu0 0.0
        %3620 = vmatprep.subr.mxu0 0.0
        %3621 = vmatpush1.msra.mxu0 0.0
        %3622 = vmatprep.subr.mxu0 0.0
        %3623 = vmatpush1.msra.mxu0 0.0
        %3624 = vmatprep.subr.mxu0 0.0
        %3625 = vmatpush1.msra.mxu0 0.0
        %3626 = vmatprep.subr.mxu0 0.0
        %3627 = vmatpush1.msra.mxu0 0.0
        %3628 = vmatprep.subr.mxu0 0.0
        %3629 = vmatpush1.msra.mxu0 0.0
        %3630 = vmatprep.subr.mxu0 0.0
        %3631 = vmatpush1.msra.mxu0 0.0
        %3632 = vmatprep.subr.mxu0 0.0
        %3633 = vmatpush1.msra.mxu0 0.0
        %3634 = vmatprep.subr.mxu0 0.0
        %3635 = vmatpush1.msra.mxu0 0.0
        %3636 = vmatprep.subr.mxu0 0.0
        %3637 = vmatpush1.msra.mxu0 0.0
        %3638 = vmatprep.subr.mxu0 0.0
        %3639 = vmatpush1.msra.mxu0 0.0
        %3640 = vmatprep.subr.mxu0 0.0
        %3641 = vmatpush1.msra.mxu0 0.0
        %3642 = vmatprep.subr.mxu0 0.0
        %3643 = vmatpush1.msra.mxu0 0.0
        %3644 = vmatprep.subr.mxu0 0.0
        %3645 = vmatpush1.msra.mxu0 0.0
        %3646 = vmatprep.subr.mxu0 0.0
        %3647 = vmatpush1.msra.mxu0 0.0
        %3648 = vmatprep.subr.mxu0 0.0
        %3649 = vmatpush1.msra.mxu0 0.0
        %3650 = vmatprep.subr.mxu0 0.0
        %3651 = vmatpush1.msra.mxu0 0.0
        %3652 = vmatprep.subr.mxu0 0.0
        %3653 = vmatpush1.msra.mxu0 0.0
        %3654 = vmatprep.subr.mxu0 0.0
        %3655 = vmatpush1.msra.mxu0 0.0
        %3656 = vmatprep.subr.mxu0 0.0
        %3657 = vmatpush1.msra.mxu0 0.0
        %3658 = vmatprep.subr.mxu0 0.0
        %3659 = vmatpush1.msra.mxu0 0.0
        %3660 = vmatprep.subr.mxu0 0.0
        %3661 = vmatpush1.msra.mxu0 0.0
        %3662 = vmatprep.subr.mxu0 0.0
        %3663 = vmatpush1.msra.mxu0 0.0
        %3664 = vmatprep.subr.mxu0 0.0
        %3665 = vmatpush1.msra.mxu0 0.0
        %3666 = vmatprep.mubr.f32.mxu0 0.0
        %3667 = vmatmul.mubr.f32.gmra.mrb[0].mxu0 %v3555
        %v3668 = vpop.f32.mrb[0].mxu0
        %v3669 = vadd.f32 %v3476, %v3668
        %v3670 = vpop.f32.mrb[0].mxu0
        %v3671 = vadd.f32 %v3476, %v3670
        %3672 = vmatprep.mubr.f32.mxu0 0.0
        %3673 = vmatmul.mubr.f32.gmra.mrb[0].mxu0 %v3558
        %v3674 = vpop.f32.mrb[0].mxu0
        %v3675 = vadd.f32 %v3481, %v3674
        %v3676 = vpop.f32.mrb[0].mxu0
        %v3677 = vadd.f32 %v3481, %v3676
        %3678 = vmatprep.mubr.f32.mxu0 0.0
        %3679 = vmatmul.mubr.f32.gmra.mrb[0].mxu0 %v3561
        %v3680 = vpop.f32.mrb[0].mxu0
        %v3681 = vadd.f32 %v3486, %v3680
        %v3682 = vpop.f32.mrb[0].mxu0
        %v3683 = vadd.f32 %v3486, %v3682
        %3684 = vmatprep.mubr.f32.mxu0 0.0
        %3685 = vmatmul.mubr.f32.gmra.mrb[0].mxu0 %v3564
        %v3686 = vpop.f32.mrb[0].mxu0
        %v3687 = vadd.f32 %v3491, %v3686
        %v3688 = vpop.f32.mrb[0].mxu0
        %v3689 = vadd.f32 %v3491, %v3688
        %3690 = vmatprep.mubr.f32.mxu0 0.0
        %3691 = vmatmul.mubr.f32.gmra.mrb[0].mxu0 %v3567
        %v3692 = vpop.f32.mrb[0].mxu0
        %v3693 = vadd.f32 %v3496, %v3692
        %v3694 = vpop.f32.mrb[0].mxu0
        %v3695 = vadd.f32 %v3496, %v3694
        %3696 = vmatprep.mubr.f32.mxu0 0.0
        %3697 = vmatmul.mubr.f32.gmra.mrb[0].mxu0 %v3570
        %v3698 = vpop.f32.mrb[0].mxu0
        %v3699 = vadd.f32 %v3501, %v3698
        %v3700 = vpop.f32.mrb[0].mxu0
        %v3701 = vadd.f32 %v3501, %v3700
        %3702 = vmatprep.mubr.f32.mxu0 0.0
        %3703 = vmatmul.mubr.f32.gmra.mrb[0].mxu0 %v3573
        %v3704 = vpop.f32.mrb[0].mxu0
        %v3705 = vadd.f32 %v3506, %v3704
        %v3706 = vpop.f32.mrb[0].mxu0
        %v3707 = vadd.f32 %v3506, %v3706
        %3708 = vmatprep.mubr.f32.mxu0 0.0
        %3709 = vmatmul.mubr.f32.gmra.mrb[0].mxu0 %v3576
        %v3710 = vpop.f32.mrb[0].mxu0
        %v3711 = vadd.f32 %v3511, %v3710
        %v3712 = vpop.f32.mrb[0].mxu0
        %v3713 = vadd.f32 %v3511, %v3712
        %3714 = vmatprep.mubr.f32.mxu0 0.0
        %3715 = vmatmul.mubr.f32.gmra.mrb[0].mxu0 %v3579
        %v3716 = vpop.f32.mrb[0].mxu0
        %v3717 = vadd.f32 %v3516, %v3716
        %v3718 = vpop.f32.mrb[0].mxu0
        %v3719 = vadd.f32 %v3516, %v3718
        %3720 = vmatprep.mubr.f32.mxu0 0.0
        %3721 = vmatmul.mubr.f32.gmra.mrb[0].mxu0 %v3582
        %v3722 = vpop.f32.mrb[0].mxu0
        %v3723 = vadd.f32 %v3521, %v3722
        %v3724 = vpop.f32.mrb[0].mxu0
        %v3725 = vadd.f32 %v3521, %v3724
        %3726 = vmatprep.mubr.f32.mxu0 0.0
        %3727 = vmatmul.mubr.f32.gmra.mrb[0].mxu0 %v3585
        %v3728 = vpop.f32.mrb[0].mxu0
        %v3729 = vadd.f32 %v3526, %v3728
        %v3730 = vpop.f32.mrb[0].mxu0
        %v3731 = vadd.f32 %v3526, %v3730
        %3732 = vmatprep.mubr.f32.mxu0 0.0
        %3733 = vmatmul.mubr.f32.gmra.mrb[0].mxu0 %v3588
        %v3734 = vpop.f32.mrb[0].mxu0
        %v3735 = vadd.f32 %v3531, %v3734
        %v3736 = vpop.f32.mrb[0].mxu0
        %v3737 = vadd.f32 %v3531, %v3736
        %3738 = vmatprep.mubr.f32.mxu0 0.0
        %3739 = vmatmul.mubr.f32.gmra.mrb[0].mxu0 %v3591
        %v3740 = vpop.f32.mrb[0].mxu0
        %v3741 = vadd.f32 %v3536, %v3740
        %v3742 = vpop.f32.mrb[0].mxu0
        %v3743 = vadd.f32 %v3536, %v3742
        %3744 = vmatprep.mubr.f32.mxu0 0.0
        %3745 = vmatmul.mubr.f32.gmra.mrb[0].mxu0 %v3594
        %v3746 = vpop.f32.mrb[0].mxu0
        %v3747 = vadd.f32 %v3541, %v3746
        %v3748 = vpop.f32.mrb[0].mxu0
        %v3749 = vadd.f32 %v3541, %v3748
        %3750 = vmatprep.mubr.f32.mxu0 0.0
        %3751 = vmatmul.mubr.f32.gmra.mrb[0].mxu0 %v3597
        %v3752 = vpop.f32.mrb[0].mxu0
        %v3753 = vadd.f32 %v3546, %v3752
        %v3754 = vpop.f32.mrb[0].mxu0
        %v3755 = vadd.f32 %v3546, %v3754
        %3756 = vmatprep.mubr.f32.mxu0 0.0
        %3757 = vmatmul.mubr.f32.gmra.mrb[0].mxu0 %v3600
        %v3758 = vpop.f32.mrb[0].mxu0
        %v3759 = vadd.f32 %v3551, %v3758
        %v3760 = vpop.f32.mrb[0].mxu0
        %v3761 = vadd.f32 %v3551, %v3760
        %3762 = vdwg.mxu0
        %3763 = vmatprep.subr.mxu0 %v3204
        %3764 = vmatpush1.msra.mxu0 %v3203
        %3765 = vmatprep.subr.mxu0 %v3220
        %3766 = vmatpush1.msra.mxu0 %v3219
        %3767 = vmatprep.subr.mxu0 %v3236
        %3768 = vmatpush1.msra.mxu0 %v3235
        %3769 = vmatprep.subr.mxu0 %v3252
        %3770 = vmatpush1.msra.mxu0 %v3251
        %3771 = vmatprep.subr.mxu0 %v3268
        %3772 = vmatpush1.msra.mxu0 %v3267
        %3773 = vmatprep.subr.mxu0 %v3284
        %3774 = vmatpush1.msra.mxu0 %v3283
        %3775 = vmatprep.subr.mxu0 %v3300
        %3776 = vmatpush1.msra.mxu0 %v3299
        %3777 = vmatprep.subr.mxu0 %v3316
        %3778 = vmatpush1.msra.mxu0 %v3315
        %3779 = vmatprep.subr.mxu0 0.0
        %3780 = vmatpush1.msra.mxu0 0.0
        %3781 = vmatprep.subr.mxu0 0.0
        %3782 = vmatpush1.msra.mxu0 0.0
        %3783 = vmatprep.subr.mxu0 0.0
        %3784 = vmatpush1.msra.mxu0 0.0
        %3785 = vmatprep.subr.mxu0 0.0
        %3786 = vmatpush1.msra.mxu0 0.0
        %3787 = vmatprep.subr.mxu0 0.0
        %3788 = vmatpush1.msra.mxu0 0.0
        %3789 = vmatprep.subr.mxu0 0.0
        %3790 = vmatpush1.msra.mxu0 0.0
        %3791 = vmatprep.subr.mxu0 0.0
        %3792 = vmatpush1.msra.mxu0 0.0
        %3793 = vmatprep.subr.mxu0 0.0
        %3794 = vmatpush1.msra.mxu0 0.0
        %3795 = vmatprep.subr.mxu0 0.0
        %3796 = vmatpush1.msra.mxu0 0.0
        %3797 = vmatprep.subr.mxu0 0.0
        %3798 = vmatpush1.msra.mxu0 0.0
        %3799 = vmatprep.subr.mxu0 0.0
        %3800 = vmatpush1.msra.mxu0 0.0
        %3801 = vmatprep.subr.mxu0 0.0
        %3802 = vmatpush1.msra.mxu0 0.0
        %3803 = vmatprep.subr.mxu0 0.0
        %3804 = vmatpush1.msra.mxu0 0.0
        %3805 = vmatprep.subr.mxu0 0.0
        %3806 = vmatpush1.msra.mxu0 0.0
        %3807 = vmatprep.subr.mxu0 0.0
        %3808 = vmatpush1.msra.mxu0 0.0
        %3809 = vmatprep.subr.mxu0 0.0
        %3810 = vmatpush1.msra.mxu0 0.0
        %3811 = vmatprep.subr.mxu0 0.0
        %3812 = vmatpush1.msra.mxu0 0.0
        %3813 = vmatprep.subr.mxu0 0.0
        %3814 = vmatpush1.msra.mxu0 0.0
        %3815 = vmatprep.subr.mxu0 0.0
        %3816 = vmatpush1.msra.mxu0 0.0
        %3817 = vmatprep.subr.mxu0 0.0
        %3818 = vmatpush1.msra.mxu0 0.0
        %3819 = vmatprep.subr.mxu0 0.0
        %3820 = vmatpush1.msra.mxu0 0.0
        %3821 = vmatprep.subr.mxu0 0.0
        %3822 = vmatpush1.msra.mxu0 0.0
        %3823 = vmatprep.subr.mxu0 0.0
        %3824 = vmatpush1.msra.mxu0 0.0
        %3825 = vmatprep.subr.mxu0 0.0
        %3826 = vmatpush1.msra.mxu0 0.0
        %3827 = vmatprep.mubr.f32.mxu0 0.0
        %3828 = vmatmul.mubr.f32.gmra.mrb[0].mxu0 %v3555
        %v3829 = vpop.f32.mrb[0].mxu0
        %v3830 = vadd.f32 %v3476, %v3829
        %v3831 = vpop.f32.mrb[0].mxu0
        %v3832 = vadd.f32 %v3476, %v3831
        %3833 = vmatprep.mubr.f32.mxu0 0.0
        %3834 = vmatmul.mubr.f32.gmra.mrb[0].mxu0 %v3558
        %v3835 = vpop.f32.mrb[0].mxu0
        %v3836 = vadd.f32 %v3481, %v3835
        %v3837 = vpop.f32.mrb[0].mxu0
        %v3838 = vadd.f32 %v3481, %v3837
        %3839 = vmatprep.mubr.f32.mxu0 0.0
        %3840 = vmatmul.mubr.f32.gmra.mrb[0].mxu0 %v3561
        %v3841 = vpop.f32.mrb[0].mxu0
        %v3842 = vadd.f32 %v3486, %v3841
        %v3843 = vpop.f32.mrb[0].mxu0
        %v3844 = vadd.f32 %v3486, %v3843
        %3845 = vmatprep.mubr.f32.mxu0 0.0
        %3846 = vmatmul.mubr.f32.gmra.mrb[0].mxu0 %v3564
        %v3847 = vpop.f32.mrb[0].mxu0
        %v3848 = vadd.f32 %v3491, %v3847
        %v3849 = vpop.f32.mrb[0].mxu0
        %v3850 = vadd.f32 %v3491, %v3849
        %3851 = vmatprep.mubr.f32.mxu0 0.0
        %3852 = vmatmul.mubr.f32.gmra.mrb[0].mxu0 %v3567
        %v3853 = vpop.f32.mrb[0].mxu0
        %v3854 = vadd.f32 %v3496, %v3853
        %v3855 = vpop.f32.mrb[0].mxu0
        %v3856 = vadd.f32 %v3496, %v3855
        %3857 = vmatprep.mubr.f32.mxu0 0.0
        %3858 = vmatmul.mubr.f32.gmra.mrb[0].mxu0 %v3570
        %v3859 = vpop.f32.mrb[0].mxu0
        %v3860 = vadd.f32 %v3501, %v3859
        %v3861 = vpop.f32.mrb[0].mxu0
        %v3862 = vadd.f32 %v3501, %v3861
        %3863 = vmatprep.mubr.f32.mxu0 0.0
        %3864 = vmatmul.mubr.f32.gmra.mrb[0].mxu0 %v3573
        %v3865 = vpop.f32.mrb[0].mxu0
        %v3866 = vadd.f32 %v3506, %v3865
        %v3867 = vpop.f32.mrb[0].mxu0
        %v3868 = vadd.f32 %v3506, %v3867
        %3869 = vmatprep.mubr.f32.mxu0 0.0
        %3870 = vmatmul.mubr.f32.gmra.mrb[0].mxu0 %v3576
        %v3871 = vpop.f32.mrb[0].mxu0
        %v3872 = vadd.f32 %v3511, %v3871
        %v3873 = vpop.f32.mrb[0].mxu0
        %v3874 = vadd.f32 %v3511, %v3873
        %3875 = vmatprep.mubr.f32.mxu0 0.0
        %3876 = vmatmul.mubr.f32.gmra.mrb[0].mxu0 %v3579
        %v3877 = vpop.f32.mrb[0].mxu0
        %v3878 = vadd.f32 %v3516, %v3877
        %v3879 = vpop.f32.mrb[0].mxu0
        %v3880 = vadd.f32 %v3516, %v3879
        %3881 = vmatprep.mubr.f32.mxu0 0.0
        %3882 = vmatmul.mubr.f32.gmra.mrb[0].mxu0 %v3582
        %v3883 = vpop.f32.mrb[0].mxu0
        %v3884 = vadd.f32 %v3521, %v3883
        %v3885 = vpop.f32.mrb[0].mxu0
        %v3886 = vadd.f32 %v3521, %v3885
        %3887 = vmatprep.mubr.f32.mxu0 0.0
        %3888 = vmatmul.mubr.f32.gmra.mrb[0].mxu0 %v3585
        %v3889 = vpop.f32.mrb[0].mxu0
        %v3890 = vadd.f32 %v3526, %v3889
        %v3891 = vpop.f32.mrb[0].mxu0
        %v3892 = vadd.f32 %v3526, %v3891
        %3893 = vmatprep.mubr.f32.mxu0 0.0
        %3894 = vmatmul.mubr.f32.gmra.mrb[0].mxu0 %v3588
        %v3895 = vpop.f32.mrb[0].mxu0
        %v3896 = vadd.f32 %v3531, %v3895
        %v3897 = vpop.f32.mrb[0].mxu0
        %v3898 = vadd.f32 %v3531, %v3897
        %3899 = vmatprep.mubr.f32.mxu0 0.0
        %3900 = vmatmul.mubr.f32.gmra.mrb[0].mxu0 %v3591
        %v3901 = vpop.f32.mrb[0].mxu0
        %v3902 = vadd.f32 %v3536, %v3901
        %v3903 = vpop.f32.mrb[0].mxu0
        %v3904 = vadd.f32 %v3536, %v3903
        %3905 = vmatprep.mubr.f32.mxu0 0.0
        %3906 = vmatmul.mubr.f32.gmra.mrb[0].mxu0 %v3594
        %v3907 = vpop.f32.mrb[0].mxu0
        %v3908 = vadd.f32 %v3541, %v3907
        %v3909 = vpop.f32.mrb[0].mxu0
        %v3910 = vadd.f32 %v3541, %v3909
        %3911 = vmatprep.mubr.f32.mxu0 0.0
        %3912 = vmatmul.mubr.f32.gmra.mrb[0].mxu0 %v3597
        %v3913 = vpop.f32.mrb[0].mxu0
        %v3914 = vadd.f32 %v3546, %v3913
        %v3915 = vpop.f32.mrb[0].mxu0
        %v3916 = vadd.f32 %v3546, %v3915
        %3917 = vmatprep.mubr.f32.mxu0 0.0
        %3918 = vmatmul.mubr.f32.gmra.mrb[0].mxu0 %v3600
        %v3919 = vpop.f32.mrb[0].mxu0
        %v3920 = vadd.f32 %v3551, %v3919
        %v3921 = vpop.f32.mrb[0].mxu0
        %v3922 = vadd.f32 %v3551, %v3921
        %3923 = vdwg.mxu0
        %3924 = vmatprep.subr.mxu0 %v3206
        %3925 = vmatpush1.msra.mxu0 %v3205
        %3926 = vmatprep.subr.mxu0 %v3222
        %3927 = vmatpush1.msra.mxu0 %v3221
        %3928 = vmatprep.subr.mxu0 %v3238
        %3929 = vmatpush1.msra.mxu0 %v3237
        %3930 = vmatprep.subr.mxu0 %v3254
        %3931 = vmatpush1.msra.mxu0 %v3253
        %3932 = vmatprep.subr.mxu0 %v3270
        %3933 = vmatpush1.msra.mxu0 %v3269
        %3934 = vmatprep.subr.mxu0 %v3286
        %3935 = vmatpush1.msra.mxu0 %v3285
        %3936 = vmatprep.subr.mxu0 %v3302
        %3937 = vmatpush1.msra.mxu0 %v3301
        %3938 = vmatprep.subr.mxu0 %v3318
        %3939 = vmatpush1.msra.mxu0 %v3317
        %3940 = vmatprep.subr.mxu0 0.0
        %3941 = vmatpush1.msra.mxu0 0.0
        %3942 = vmatprep.subr.mxu0 0.0
        %3943 = vmatpush1.msra.mxu0 0.0
        %3944 = vmatprep.subr.mxu0 0.0
        %3945 = vmatpush1.msra.mxu0 0.0
        %3946 = vmatprep.subr.mxu0 0.0
        %3947 = vmatpush1.msra.mxu0 0.0
        %3948 = vmatprep.subr.mxu0 0.0
        %3949 = vmatpush1.msra.mxu0 0.0
        %3950 = vmatprep.subr.mxu0 0.0
        %3951 = vmatpush1.msra.mxu0 0.0
        %3952 = vmatprep.subr.mxu0 0.0
        %3953 = vmatpush1.msra.mxu0 0.0
        %3954 = vmatprep.subr.mxu0 0.0
        %3955 = vmatpush1.msra.mxu0 0.0
        %3956 = vmatprep.subr.mxu0 0.0
        %3957 = vmatpush1.msra.mxu0 0.0
        %3958 = vmatprep.subr.mxu0 0.0
        %3959 = vmatpush1.msra.mxu0 0.0
        %3960 = vmatprep.subr.mxu0 0.0
        %3961 = vmatpush1.msra.mxu0 0.0
        %3962 = vmatprep.subr.mxu0 0.0
        %3963 = vmatpush1.msra.mxu0 0.0
        %3964 = vmatprep.subr.mxu0 0.0
        %3965 = vmatpush1.msra.mxu0 0.0
        %3966 = vmatprep.subr.mxu0 0.0
        %3967 = vmatpush1.msra.mxu0 0.0
        %3968 = vmatprep.subr.mxu0 0.0
        %3969 = vmatpush1.msra.mxu0 0.0
        %3970 = vmatprep.subr.mxu0 0.0
        %3971 = vmatpush1.msra.mxu0 0.0
        %3972 = vmatprep.subr.mxu0 0.0
        %3973 = vmatpush1.msra.mxu0 0.0
        %3974 = vmatprep.subr.mxu0 0.0
        %3975 = vmatpush1.msra.mxu0 0.0
        %3976 = vmatprep.subr.mxu0 0.0
        %3977 = vmatpush1.msra.mxu0 0.0
        %3978 = vmatprep.subr.mxu0 0.0
        %3979 = vmatpush1.msra.mxu0 0.0
        %3980 = vmatprep.subr.mxu0 0.0
        %3981 = vmatpush1.msra.mxu0 0.0
        %3982 = vmatprep.subr.mxu0 0.0
        %3983 = vmatpush1.msra.mxu0 0.0
        %3984 = vmatprep.subr.mxu0 0.0
        %3985 = vmatpush1.msra.mxu0 0.0
        %3986 = vmatprep.subr.mxu0 0.0
        %3987 = vmatpush1.msra.mxu0 0.0
        %3988 = vmatprep.mubr.f32.mxu0 0.0
        %3989 = vmatmul.mubr.f32.gmra.mrb[0].mxu0 %v3555
        %v3990 = vpop.f32.mrb[0].mxu0
        %v3991 = vadd.f32 %v3476, %v3990
        %v3992 = vpop.f32.mrb[0].mxu0
        %v3993 = vadd.f32 %v3476, %v3992
        %3994 = vmatprep.mubr.f32.mxu0 0.0
        %3995 = vmatmul.mubr.f32.gmra.mrb[0].mxu0 %v3558
        %v3996 = vpop.f32.mrb[0].mxu0
        %v3997 = vadd.f32 %v3481, %v3996
        %v3998 = vpop.f32.mrb[0].mxu0
        %v3999 = vadd.f32 %v3481, %v3998
        %4000 = vmatprep.mubr.f32.mxu0 0.0
        %4001 = vmatmul.mubr.f32.gmra.mrb[0].mxu0 %v3561
        %v4002 = vpop.f32.mrb[0].mxu0
        %v4003 = vadd.f32 %v3486, %v4002
        %v4004 = vpop.f32.mrb[0].mxu0
        %v4005 = vadd.f32 %v3486, %v4004
        %4006 = vmatprep.mubr.f32.mxu0 0.0
        %4007 = vmatmul.mubr.f32.gmra.mrb[0].mxu0 %v3564
        %v4008 = vpop.f32.mrb[0].mxu0
        %v4009 = vadd.f32 %v3491, %v4008
        %v4010 = vpop.f32.mrb[0].mxu0
        %v4011 = vadd.f32 %v3491, %v4010
        %4012 = vmatprep.mubr.f32.mxu0 0.0
        %4013 = vmatmul.mubr.f32.gmra.mrb[0].mxu0 %v3567
        %v4014 = vpop.f32.mrb[0].mxu0
        %v4015 = vadd.f32 %v3496, %v4014
        %v4016 = vpop.f32.mrb[0].mxu0
        %v4017 = vadd.f32 %v3496, %v4016
        %4018 = vmatprep.mubr.f32.mxu0 0.0
        %4019 = vmatmul.mubr.f32.gmra.mrb[0].mxu0 %v3570
        %v4020 = vpop.f32.mrb[0].mxu0
        %v4021 = vadd.f32 %v3501, %v4020
        %v4022 = vpop.f32.mrb[0].mxu0
        %v4023 = vadd.f32 %v3501, %v4022
        %4024 = vmatprep.mubr.f32.mxu0 0.0
        %4025 = vmatmul.mubr.f32.gmra.mrb[0].mxu0 %v3573
        %v4026 = vpop.f32.mrb[0].mxu0
        %v4027 = vadd.f32 %v3506, %v4026
        %v4028 = vpop.f32.mrb[0].mxu0
        %v4029 = vadd.f32 %v3506, %v4028
        %4030 = vmatprep.mubr.f32.mxu0 0.0
        %4031 = vmatmul.mubr.f32.gmra.mrb[0].mxu0 %v3576
        %v4032 = vpop.f32.mrb[0].mxu0
        %v4033 = vadd.f32 %v3511, %v4032
        %v4034 = vpop.f32.mrb[0].mxu0
        %v4035 = vadd.f32 %v3511, %v4034
        %4036 = vmatprep.mubr.f32.mxu0 0.0
        %4037 = vmatmul.mubr.f32.gmra.mrb[0].mxu0 %v3579
        %v4038 = vpop.f32.mrb[0].mxu0
        %v4039 = vadd.f32 %v3516, %v4038
        %v4040 = vpop.f32.mrb[0].mxu0
        %v4041 = vadd.f32 %v3516, %v4040
        %4042 = vmatprep.mubr.f32.mxu0 0.0
        %4043 = vmatmul.mubr.f32.gmra.mrb[0].mxu0 %v3582
        %v4044 = vpop.f32.mrb[0].mxu0
        %v4045 = vadd.f32 %v3521, %v4044
        %v4046 = vpop.f32.mrb[0].mxu0
        %v4047 = vadd.f32 %v3521, %v4046
        %4048 = vmatprep.mubr.f32.mxu0 0.0
        %4049 = vmatmul.mubr.f32.gmra.mrb[0].mxu0 %v3585
        %v4050 = vpop.f32.mrb[0].mxu0
        %v4051 = vadd.f32 %v3526, %v4050
        %v4052 = vpop.f32.mrb[0].mxu0
        %v4053 = vadd.f32 %v3526, %v4052
        %4054 = vmatprep.mubr.f32.mxu0 0.0
        %4055 = vmatmul.mubr.f32.gmra.mrb[0].mxu0 %v3588
        %v4056 = vpop.f32.mrb[0].mxu0
        %v4057 = vadd.f32 %v3531, %v4056
        %v4058 = vpop.f32.mrb[0].mxu0
        %v4059 = vadd.f32 %v3531, %v4058
        %4060 = vmatprep.mubr.f32.mxu0 0.0
        %4061 = vmatmul.mubr.f32.gmra.mrb[0].mxu0 %v3591
        %v4062 = vpop.f32.mrb[0].mxu0
        %v4063 = vadd.f32 %v3536, %v4062
        %v4064 = vpop.f32.mrb[0].mxu0
        %v4065 = vadd.f32 %v3536, %v4064
        %4066 = vmatprep.mubr.f32.mxu0 0.0
        %4067 = vmatmul.mubr.f32.gmra.mrb[0].mxu0 %v3594
        %v4068 = vpop.f32.mrb[0].mxu0
        %v4069 = vadd.f32 %v3541, %v4068
        %v4070 = vpop.f32.mrb[0].mxu0
        %v4071 = vadd.f32 %v3541, %v4070
        %4072 = vmatprep.mubr.f32.mxu0 0.0
        %4073 = vmatmul.mubr.f32.gmra.mrb[0].mxu0 %v3597
        %v4074 = vpop.f32.mrb[0].mxu0
        %v4075 = vadd.f32 %v3546, %v4074
        %v4076 = vpop.f32.mrb[0].mxu0
        %v4077 = vadd.f32 %v3546, %v4076
        %4078 = vmatprep.mubr.f32.mxu0 0.0
        %4079 = vmatmul.mubr.f32.gmra.mrb[0].mxu0 %v3600
        %v4080 = vpop.f32.mrb[0].mxu0
        %v4081 = vadd.f32 %v3551, %v4080
        %v4082 = vpop.f32.mrb[0].mxu0
        %v4083 = vadd.f32 %v3551, %v4082
        %4084 = vdwg.mxu0
        %4085 = vmatprep.subr.mxu0 %v3208
        %4086 = vmatpush1.msra.mxu0 %v3207
        %4087 = vmatprep.subr.mxu0 %v3224
        %4088 = vmatpush1.msra.mxu0 %v3223
        %4089 = vmatprep.subr.mxu0 %v3240
        %4090 = vmatpush1.msra.mxu0 %v3239
        %4091 = vmatprep.subr.mxu0 %v3256
        %4092 = vmatpush1.msra.mxu0 %v3255
        %4093 = vmatprep.subr.mxu0 %v3272
        %4094 = vmatpush1.msra.mxu0 %v3271
        %4095 = vmatprep.subr.mxu0 %v3288
        %4096 = vmatpush1.msra.mxu0 %v3287
        %4097 = vmatprep.subr.mxu0 %v3304
        %4098 = vmatpush1.msra.mxu0 %v3303
        %4099 = vmatprep.subr.mxu0 %v3320
        %4100 = vmatpush1.msra.mxu0 %v3319
        %4101 = vmatprep.subr.mxu0 0.0
        %4102 = vmatpush1.msra.mxu0 0.0
        %4103 = vmatprep.subr.mxu0 0.0
        %4104 = vmatpush1.msra.mxu0 0.0
        %4105 = vmatprep.subr.mxu0 0.0
        %4106 = vmatpush1.msra.mxu0 0.0
        %4107 = vmatprep.subr.mxu0 0.0
        %4108 = vmatpush1.msra.mxu0 0.0
        %4109 = vmatprep.subr.mxu0 0.0
        %4110 = vmatpush1.msra.mxu0 0.0
        %4111 = vmatprep.subr.mxu0 0.0
        %4112 = vmatpush1.msra.mxu0 0.0
        %4113 = vmatprep.subr.mxu0 0.0
        %4114 = vmatpush1.msra.mxu0 0.0
        %4115 = vmatprep.subr.mxu0 0.0
        %4116 = vmatpush1.msra.mxu0 0.0
        %4117 = vmatprep.subr.mxu0 0.0
        %4118 = vmatpush1.msra.mxu0 0.0
        %4119 = vmatprep.subr.mxu0 0.0
        %4120 = vmatpush1.msra.mxu0 0.0
        %4121 = vmatprep.subr.mxu0 0.0
        %4122 = vmatpush1.msra.mxu0 0.0
        %4123 = vmatprep.subr.mxu0 0.0
        %4124 = vmatpush1.msra.mxu0 0.0
        %4125 = vmatprep.subr.mxu0 0.0
        %4126 = vmatpush1.msra.mxu0 0.0
        %4127 = vmatprep.subr.mxu0 0.0
        %4128 = vmatpush1.msra.mxu0 0.0
        %4129 = vmatprep.subr.mxu0 0.0
        %4130 = vmatpush1.msra.mxu0 0.0
        %4131 = vmatprep.subr.mxu0 0.0
        %4132 = vmatpush1.msra.mxu0 0.0
        %4133 = vmatprep.subr.mxu0 0.0
        %4134 = vmatpush1.msra.mxu0 0.0
        %4135 = vmatprep.subr.mxu0 0.0
        %4136 = vmatpush1.msra.mxu0 0.0
        %4137 = vmatprep.subr.mxu0 0.0
        %4138 = vmatpush1.msra.mxu0 0.0
        %4139 = vmatprep.subr.mxu0 0.0
        %4140 = vmatpush1.msra.mxu0 0.0
        %4141 = vmatprep.subr.mxu0 0.0
        %4142 = vmatpush1.msra.mxu0 0.0
        %4143 = vmatprep.subr.mxu0 0.0
        %4144 = vmatpush1.msra.mxu0 0.0
        %4145 = vmatprep.subr.mxu0 0.0
        %4146 = vmatpush1.msra.mxu0 0.0
        %4147 = vmatprep.subr.mxu0 0.0
        %4148 = vmatpush1.msra.mxu0 0.0
        %4149 = vmatprep.mubr.f32.mxu0 0.0
        %4150 = vmatmul.mubr.f32.gmra.mrb[0].mxu0 %v3555
        %v4151 = vpop.f32.mrb[0].mxu0
        %v4152 = vadd.f32 %v3476, %v4151
        %v4153 = vpop.f32.mrb[0].mxu0
        %v4154 = vadd.f32 %v3476, %v4153
        %4155 = vmatprep.mubr.f32.mxu0 0.0
        %4156 = vmatmul.mubr.f32.gmra.mrb[0].mxu0 %v3558
        %v4157 = vpop.f32.mrb[0].mxu0
        %v4158 = vadd.f32 %v3481, %v4157
        %v4159 = vpop.f32.mrb[0].mxu0
        %v4160 = vadd.f32 %v3481, %v4159
        %4161 = vmatprep.mubr.f32.mxu0 0.0
        %4162 = vmatmul.mubr.f32.gmra.mrb[0].mxu0 %v3561
        %v4163 = vpop.f32.mrb[0].mxu0
        %v4164 = vadd.f32 %v3486, %v4163
        %v4165 = vpop.f32.mrb[0].mxu0
        %v4166 = vadd.f32 %v3486, %v4165
        %4167 = vmatprep.mubr.f32.mxu0 0.0
        %4168 = vmatmul.mubr.f32.gmra.mrb[0].mxu0 %v3564
        %v4169 = vpop.f32.mrb[0].mxu0
        %v4170 = vadd.f32 %v3491, %v4169
        %v4171 = vpop.f32.mrb[0].mxu0
        %v4172 = vadd.f32 %v3491, %v4171
        %4173 = vmatprep.mubr.f32.mxu0 0.0
        %4174 = vmatmul.mubr.f32.gmra.mrb[0].mxu0 %v3567
        %v4175 = vpop.f32.mrb[0].mxu0
        %v4176 = vadd.f32 %v3496, %v4175
        %v4177 = vpop.f32.mrb[0].mxu0
        %v4178 = vadd.f32 %v3496, %v4177
        %4179 = vmatprep.mubr.f32.mxu0 0.0
        %4180 = vmatmul.mubr.f32.gmra.mrb[0].mxu0 %v3570
        %v4181 = vpop.f32.mrb[0].mxu0
        %v4182 = vadd.f32 %v3501, %v4181
        %v4183 = vpop.f32.mrb[0].mxu0
        %v4184 = vadd.f32 %v3501, %v4183
        %4185 = vmatprep.mubr.f32.mxu0 0.0
        %4186 = vmatmul.mubr.f32.gmra.mrb[0].mxu0 %v3573
        %v4187 = vpop.f32.mrb[0].mxu0
        %v4188 = vadd.f32 %v3506, %v4187
        %v4189 = vpop.f32.mrb[0].mxu0
        %v4190 = vadd.f32 %v3506, %v4189
        %4191 = vmatprep.mubr.f32.mxu0 0.0
        %4192 = vmatmul.mubr.f32.gmra.mrb[0].mxu0 %v3576
        %v4193 = vpop.f32.mrb[0].mxu0
        %v4194 = vadd.f32 %v3511, %v4193
        %v4195 = vpop.f32.mrb[0].mxu0
        %v4196 = vadd.f32 %v3511, %v4195
        %4197 = vmatprep.mubr.f32.mxu0 0.0
        %4198 = vmatmul.mubr.f32.gmra.mrb[0].mxu0 %v3579
        %v4199 = vpop.f32.mrb[0].mxu0
        %v4200 = vadd.f32 %v3516, %v4199
        %v4201 = vpop.f32.mrb[0].mxu0
        %v4202 = vadd.f32 %v3516, %v4201
        %4203 = vmatprep.mubr.f32.mxu0 0.0
        %4204 = vmatmul.mubr.f32.gmra.mrb[0].mxu0 %v3582
        %v4205 = vpop.f32.mrb[0].mxu0
        %v4206 = vadd.f32 %v3521, %v4205
        %v4207 = vpop.f32.mrb[0].mxu0
        %v4208 = vadd.f32 %v3521, %v4207
        %4209 = vmatprep.mubr.f32.mxu0 0.0
        %4210 = vmatmul.mubr.f32.gmra.mrb[0].mxu0 %v3585
        %v4211 = vpop.f32.mrb[0].mxu0
        %v4212 = vadd.f32 %v3526, %v4211
        %v4213 = vpop.f32.mrb[0].mxu0
        %v4214 = vadd.f32 %v3526, %v4213
        %4215 = vmatprep.mubr.f32.mxu0 0.0
        %4216 = vmatmul.mubr.f32.gmra.mrb[0].mxu0 %v3588
        %v4217 = vpop.f32.mrb[0].mxu0
        %v4218 = vadd.f32 %v3531, %v4217
        %v4219 = vpop.f32.mrb[0].mxu0
        %v4220 = vadd.f32 %v3531, %v4219
        %4221 = vmatprep.mubr.f32.mxu0 0.0
        %4222 = vmatmul.mubr.f32.gmra.mrb[0].mxu0 %v3591
        %v4223 = vpop.f32.mrb[0].mxu0
        %v4224 = vadd.f32 %v3536, %v4223
        %v4225 = vpop.f32.mrb[0].mxu0
        %v4226 = vadd.f32 %v3536, %v4225
        %4227 = vmatprep.mubr.f32.mxu0 0.0
        %4228 = vmatmul.mubr.f32.gmra.mrb[0].mxu0 %v3594
        %v4229 = vpop.f32.mrb[0].mxu0
        %v4230 = vadd.f32 %v3541, %v4229
        %v4231 = vpop.f32.mrb[0].mxu0
        %v4232 = vadd.f32 %v3541, %v4231
        %4233 = vmatprep.mubr.f32.mxu0 0.0
        %4234 = vmatmul.mubr.f32.gmra.mrb[0].mxu0 %v3597
        %v4235 = vpop.f32.mrb[0].mxu0
        %v4236 = vadd.f32 %v3546, %v4235
        %v4237 = vpop.f32.mrb[0].mxu0
        %v4238 = vadd.f32 %v3546, %v4237
        %4239 = vmatprep.mubr.f32.mxu0 0.0
        %4240 = vmatmul.mubr.f32.gmra.mrb[0].mxu0 %v3600
        %v4241 = vpop.f32.mrb[0].mxu0
        %v4242 = vadd.f32 %v3551, %v4241
        %v4243 = vpop.f32.mrb[0].mxu0
        %v4244 = vadd.f32 %v3551, %v4243
        %4245 = vdwg.mxu0
        %4246 = vmatprep.subr.mxu0 %v3210
        %4247 = vmatpush1.msra.mxu0 %v3209
        %4248 = vmatprep.subr.mxu0 %v3226
        %4249 = vmatpush1.msra.mxu0 %v3225
        %4250 = vmatprep.subr.mxu0 %v3242
        %4251 = vmatpush1.msra.mxu0 %v3241
        %4252 = vmatprep.subr.mxu0 %v3258
        %4253 = vmatpush1.msra.mxu0 %v3257
        %4254 = vmatprep.subr.mxu0 %v3274
        %4255 = vmatpush1.msra.mxu0 %v3273
        %4256 = vmatprep.subr.mxu0 %v3290
        %4257 = vmatpush1.msra.mxu0 %v3289
        %4258 = vmatprep.subr.mxu0 %v3306
        %4259 = vmatpush1.msra.mxu0 %v3305
        %4260 = vmatprep.subr.mxu0 %v3322
        %4261 = vmatpush1.msra.mxu0 %v3321
        %4262 = vmatprep.subr.mxu0 0.0
        %4263 = vmatpush1.msra.mxu0 0.0
        %4264 = vmatprep.subr.mxu0 0.0
        %4265 = vmatpush1.msra.mxu0 0.0
        %4266 = vmatprep.subr.mxu0 0.0
        %4267 = vmatpush1.msra.mxu0 0.0
        %4268 = vmatprep.subr.mxu0 0.0
        %4269 = vmatpush1.msra.mxu0 0.0
        %4270 = vmatprep.subr.mxu0 0.0
        %4271 = vmatpush1.msra.mxu0 0.0
        %4272 = vmatprep.subr.mxu0 0.0
        %4273 = vmatpush1.msra.mxu0 0.0
        %4274 = vmatprep.subr.mxu0 0.0
        %4275 = vmatpush1.msra.mxu0 0.0
        %4276 = vmatprep.subr.mxu0 0.0
        %4277 = vmatpush1.msra.mxu0 0.0
        %4278 = vmatprep.subr.mxu0 0.0
        %4279 = vmatpush1.msra.mxu0 0.0
        %4280 = vmatprep.subr.mxu0 0.0
        %4281 = vmatpush1.msra.mxu0 0.0
        %4282 = vmatprep.subr.mxu0 0.0
        %4283 = vmatpush1.msra.mxu0 0.0
        %4284 = vmatprep.subr.mxu0 0.0
        %4285 = vmatpush1.msra.mxu0 0.0
        %4286 = vmatprep.subr.mxu0 0.0
        %4287 = vmatpush1.msra.mxu0 0.0
        %4288 = vmatprep.subr.mxu0 0.0
        %4289 = vmatpush1.msra.mxu0 0.0
        %4290 = vmatprep.subr.mxu0 0.0
        %4291 = vmatpush1.msra.mxu0 0.0
        %4292 = vmatprep.subr.mxu0 0.0
        %4293 = vmatpush1.msra.mxu0 0.0
        %4294 = vmatprep.subr.mxu0 0.0
        %4295 = vmatpush1.msra.mxu0 0.0
        %4296 = vmatprep.subr.mxu0 0.0
        %4297 = vmatpush1.msra.mxu0 0.0
        %4298 = vmatprep.subr.mxu0 0.0
        %4299 = vmatpush1.msra.mxu0 0.0
        %4300 = vmatprep.subr.mxu0 0.0
        %4301 = vmatpush1.msra.mxu0 0.0
        %4302 = vmatprep.subr.mxu0 0.0
        %4303 = vmatpush1.msra.mxu0 0.0
        %4304 = vmatprep.subr.mxu0 0.0
        %4305 = vmatpush1.msra.mxu0 0.0
        %4306 = vmatprep.subr.mxu0 0.0
        %4307 = vmatpush1.msra.mxu0 0.0
        %4308 = vmatprep.subr.mxu0 0.0
        %4309 = vmatpush1.msra.mxu0 0.0
        %4310 = vmatprep.mubr.f32.mxu0 0.0
        %4311 = vmatmul.mubr.f32.gmra.mrb[0].mxu0 %v3555
        %v4312 = vpop.f32.mrb[0].mxu0
        %v4313 = vadd.f32 %v3476, %v4312
        %v4314 = vpop.f32.mrb[0].mxu0
        %v4315 = vadd.f32 %v3476, %v4314
        %4316 = vmatprep.mubr.f32.mxu0 0.0
        %4317 = vmatmul.mubr.f32.gmra.mrb[0].mxu0 %v3558
        %v4318 = vpop.f32.mrb[0].mxu0
        %v4319 = vadd.f32 %v3481, %v4318
        %v4320 = vpop.f32.mrb[0].mxu0
        %v4321 = vadd.f32 %v3481, %v4320
        %4322 = vmatprep.mubr.f32.mxu0 0.0
        %4323 = vmatmul.mubr.f32.gmra.mrb[0].mxu0 %v3561
        %v4324 = vpop.f32.mrb[0].mxu0
        %v4325 = vadd.f32 %v3486, %v4324
        %v4326 = vpop.f32.mrb[0].mxu0
        %v4327 = vadd.f32 %v3486, %v4326
        %4328 = vmatprep.mubr.f32.mxu0 0.0
        %4329 = vmatmul.mubr.f32.gmra.mrb[0].mxu0 %v3564
        %v4330 = vpop.f32.mrb[0].mxu0
        %v4331 = vadd.f32 %v3491, %v4330
        %v4332 = vpop.f32.mrb[0].mxu0
        %v4333 = vadd.f32 %v3491, %v4332
        %4334 = vmatprep.mubr.f32.mxu0 0.0
        %4335 = vmatmul.mubr.f32.gmra.mrb[0].mxu0 %v3567
        %v4336 = vpop.f32.mrb[0].mxu0
        %v4337 = vadd.f32 %v3496, %v4336
        %v4338 = vpop.f32.mrb[0].mxu0
        %v4339 = vadd.f32 %v3496, %v4338
        %4340 = vmatprep.mubr.f32.mxu0 0.0
        %4341 = vmatmul.mubr.f32.gmra.mrb[0].mxu0 %v3570
        %v4342 = vpop.f32.mrb[0].mxu0
        %v4343 = vadd.f32 %v3501, %v4342
        %v4344 = vpop.f32.mrb[0].mxu0
        %v4345 = vadd.f32 %v3501, %v4344
        %4346 = vmatprep.mubr.f32.mxu0 0.0
        %4347 = vmatmul.mubr.f32.gmra.mrb[0].mxu0 %v3573
        %v4348 = vpop.f32.mrb[0].mxu0
        %v4349 = vadd.f32 %v3506, %v4348
        %v4350 = vpop.f32.mrb[0].mxu0
        %v4351 = vadd.f32 %v3506, %v4350
        %4352 = vmatprep.mubr.f32.mxu0 0.0
        %4353 = vmatmul.mubr.f32.gmra.mrb[0].mxu0 %v3576
        %v4354 = vpop.f32.mrb[0].mxu0
        %v4355 = vadd.f32 %v3511, %v4354
        %v4356 = vpop.f32.mrb[0].mxu0
        %v4357 = vadd.f32 %v3511, %v4356
        %4358 = vmatprep.mubr.f32.mxu0 0.0
        %4359 = vmatmul.mubr.f32.gmra.mrb[0].mxu0 %v3579
        %v4360 = vpop.f32.mrb[0].mxu0
        %v4361 = vadd.f32 %v3516, %v4360
        %v4362 = vpop.f32.mrb[0].mxu0
        %v4363 = vadd.f32 %v3516, %v4362
        %4364 = vmatprep.mubr.f32.mxu0 0.0
        %4365 = vmatmul.mubr.f32.gmra.mrb[0].mxu0 %v3582
        %v4366 = vpop.f32.mrb[0].mxu0
        %v4367 = vadd.f32 %v3521, %v4366
        %v4368 = vpop.f32.mrb[0].mxu0
        %v4369 = vadd.f32 %v3521, %v4368
        %4370 = vmatprep.mubr.f32.mxu0 0.0
        %4371 = vmatmul.mubr.f32.gmra.mrb[0].mxu0 %v3585
        %v4372 = vpop.f32.mrb[0].mxu0
        %v4373 = vadd.f32 %v3526, %v4372
        %v4374 = vpop.f32.mrb[0].mxu0
        %v4375 = vadd.f32 %v3526, %v4374
        %4376 = vmatprep.mubr.f32.mxu0 0.0
        %4377 = vmatmul.mubr.f32.gmra.mrb[0].mxu0 %v3588
        %v4378 = vpop.f32.mrb[0].mxu0
        %v4379 = vadd.f32 %v3531, %v4378
        %v4380 = vpop.f32.mrb[0].mxu0
        %v4381 = vadd.f32 %v3531, %v4380
        %4382 = vmatprep.mubr.f32.mxu0 0.0
        %4383 = vmatmul.mubr.f32.gmra.mrb[0].mxu0 %v3591
        %v4384 = vpop.f32.mrb[0].mxu0
        %v4385 = vadd.f32 %v3536, %v4384
        %v4386 = vpop.f32.mrb[0].mxu0
        %v4387 = vadd.f32 %v3536, %v4386
        %4388 = vmatprep.mubr.f32.mxu0 0.0
        %4389 = vmatmul.mubr.f32.gmra.mrb[0].mxu0 %v3594
        %v4390 = vpop.f32.mrb[0].mxu0
        %v4391 = vadd.f32 %v3541, %v4390
        %v4392 = vpop.f32.mrb[0].mxu0
        %v4393 = vadd.f32 %v3541, %v4392
        %4394 = vmatprep.mubr.f32.mxu0 0.0
        %4395 = vmatmul.mubr.f32.gmra.mrb[0].mxu0 %v3597
        %v4396 = vpop.f32.mrb[0].mxu0
        %v4397 = vadd.f32 %v3546, %v4396
        %v4398 = vpop.f32.mrb[0].mxu0
        %v4399 = vadd.f32 %v3546, %v4398
        %4400 = vmatprep.mubr.f32.mxu0 0.0
        %4401 = vmatmul.mubr.f32.gmra.mrb[0].mxu0 %v3600
        %v4402 = vpop.f32.mrb[0].mxu0
        %v4403 = vadd.f32 %v3551, %v4402
        %v4404 = vpop.f32.mrb[0].mxu0
        %v4405 = vadd.f32 %v3551, %v4404
        %4406 = vdwg.mxu0
        %4407 = vmatprep.subr.mxu0 %v3212
        %4408 = vmatpush1.msra.mxu0 %v3211
        %4409 = vmatprep.subr.mxu0 %v3228
        %4410 = vmatpush1.msra.mxu0 %v3227
        %4411 = vmatprep.subr.mxu0 %v3244
        %4412 = vmatpush1.msra.mxu0 %v3243
        %4413 = vmatprep.subr.mxu0 %v3260
        %4414 = vmatpush1.msra.mxu0 %v3259
        %4415 = vmatprep.subr.mxu0 %v3276
        %4416 = vmatpush1.msra.mxu0 %v3275
        %4417 = vmatprep.subr.mxu0 %v3292
        %4418 = vmatpush1.msra.mxu0 %v3291
        %4419 = vmatprep.subr.mxu0 %v3308
        %4420 = vmatpush1.msra.mxu0 %v3307
        %4421 = vmatprep.subr.mxu0 %v3324
        %4422 = vmatpush1.msra.mxu0 %v3323
        %4423 = vmatprep.subr.mxu0 0.0
        %4424 = vmatpush1.msra.mxu0 0.0
        %4425 = vmatprep.subr.mxu0 0.0
        %4426 = vmatpush1.msra.mxu0 0.0
        %4427 = vmatprep.subr.mxu0 0.0
        %4428 = vmatpush1.msra.mxu0 0.0
        %4429 = vmatprep.subr.mxu0 0.0
        %4430 = vmatpush1.msra.mxu0 0.0
        %4431 = vmatprep.subr.mxu0 0.0
        %4432 = vmatpush1.msra.mxu0 0.0
        %4433 = vmatprep.subr.mxu0 0.0
        %4434 = vmatpush1.msra.mxu0 0.0
        %4435 = vmatprep.subr.mxu0 0.0
        %4436 = vmatpush1.msra.mxu0 0.0
        %4437 = vmatprep.subr.mxu0 0.0
        %4438 = vmatpush1.msra.mxu0 0.0
        %4439 = vmatprep.subr.mxu0 0.0
        %4440 = vmatpush1.msra.mxu0 0.0
        %4441 = vmatprep.subr.mxu0 0.0
        %4442 = vmatpush1.msra.mxu0 0.0
        %4443 = vmatprep.subr.mxu0 0.0
        %4444 = vmatpush1.msra.mxu0 0.0
        %4445 = vmatprep.subr.mxu0 0.0
        %4446 = vmatpush1.msra.mxu0 0.0
        %4447 = vmatprep.subr.mxu0 0.0
        %4448 = vmatpush1.msra.mxu0 0.0
        %4449 = vmatprep.subr.mxu0 0.0
        %4450 = vmatpush1.msra.mxu0 0.0
        %4451 = vmatprep.subr.mxu0 0.0
        %4452 = vmatpush1.msra.mxu0 0.0
        %4453 = vmatprep.subr.mxu0 0.0
        %4454 = vmatpush1.msra.mxu0 0.0
        %4455 = vmatprep.subr.mxu0 0.0
        %4456 = vmatpush1.msra.mxu0 0.0
        %4457 = vmatprep.subr.mxu0 0.0
        %4458 = vmatpush1.msra.mxu0 0.0
        %4459 = vmatprep.subr.mxu0 0.0
        %4460 = vmatpush1.msra.mxu0 0.0
        %4461 = vmatprep.subr.mxu0 0.0
        %4462 = vmatpush1.msra.mxu0 0.0
        %4463 = vmatprep.subr.mxu0 0.0
        %4464 = vmatpush1.msra.mxu0 0.0
        %4465 = vmatprep.subr.mxu0 0.0
        %4466 = vmatpush1.msra.mxu0 0.0
        %4467 = vmatprep.subr.mxu0 0.0
        %4468 = vmatpush1.msra.mxu0 0.0
        %4469 = vmatprep.subr.mxu0 0.0
        %4470 = vmatpush1.msra.mxu0 0.0
        %4471 = vmatprep.mubr.f32.mxu0 0.0
        %4472 = vmatmul.mubr.f32.gmra.mrb[0].mxu0 %v3555
        %v4473 = vpop.f32.mrb[0].mxu0
        %v4474 = vadd.f32 %v3476, %v4473
        %v4475 = vpop.f32.mrb[0].mxu0
        %v4476 = vadd.f32 %v3476, %v4475
        %4477 = vmatprep.mubr.f32.mxu0 0.0
        %4478 = vmatmul.mubr.f32.gmra.mrb[0].mxu0 %v3558
        %v4479 = vpop.f32.mrb[0].mxu0
        %v4480 = vadd.f32 %v3481, %v4479
        %v4481 = vpop.f32.mrb[0].mxu0
        %v4482 = vadd.f32 %v3481, %v4481
        %4483 = vmatprep.mubr.f32.mxu0 0.0
        %4484 = vmatmul.mubr.f32.gmra.mrb[0].mxu0 %v3561
        %v4485 = vpop.f32.mrb[0].mxu0
        %v4486 = vadd.f32 %v3486, %v4485
        %v4487 = vpop.f32.mrb[0].mxu0
        %v4488 = vadd.f32 %v3486, %v4487
        %4489 = vmatprep.mubr.f32.mxu0 0.0
        %4490 = vmatmul.mubr.f32.gmra.mrb[0].mxu0 %v3564
        %v4491 = vpop.f32.mrb[0].mxu0
        %v4492 = vadd.f32 %v3491, %v4491
        %v4493 = vpop.f32.mrb[0].mxu0
        %v4494 = vadd.f32 %v3491, %v4493
        %4495 = vmatprep.mubr.f32.mxu0 0.0
        %4496 = vmatmul.mubr.f32.gmra.mrb[0].mxu0 %v3567
        %v4497 = vpop.f32.mrb[0].mxu0
        %v4498 = vadd.f32 %v3496, %v4497
        %v4499 = vpop.f32.mrb[0].mxu0
        %v4500 = vadd.f32 %v3496, %v4499
        %4501 = vmatprep.mubr.f32.mxu0 0.0
        %4502 = vmatmul.mubr.f32.gmra.mrb[0].mxu0 %v3570
        %v4503 = vpop.f32.mrb[0].mxu0
        %v4504 = vadd.f32 %v3501, %v4503
        %v4505 = vpop.f32.mrb[0].mxu0
        %v4506 = vadd.f32 %v3501, %v4505
        %4507 = vmatprep.mubr.f32.mxu0 0.0
        %4508 = vmatmul.mubr.f32.gmra.mrb[0].mxu0 %v3573
        %v4509 = vpop.f32.mrb[0].mxu0
        %v4510 = vadd.f32 %v3506, %v4509
        %v4511 = vpop.f32.mrb[0].mxu0
        %v4512 = vadd.f32 %v3506, %v4511
        %4513 = vmatprep.mubr.f32.mxu0 0.0
        %4514 = vmatmul.mubr.f32.gmra.mrb[0].mxu0 %v3576
        %v4515 = vpop.f32.mrb[0].mxu0
        %v4516 = vadd.f32 %v3511, %v4515
        %v4517 = vpop.f32.mrb[0].mxu0
        %v4518 = vadd.f32 %v3511, %v4517
        %4519 = vmatprep.mubr.f32.mxu0 0.0
        %4520 = vmatmul.mubr.f32.gmra.mrb[0].mxu0 %v3579
        %v4521 = vpop.f32.mrb[0].mxu0
        %v4522 = vadd.f32 %v3516, %v4521
        %v4523 = vpop.f32.mrb[0].mxu0
        %v4524 = vadd.f32 %v3516, %v4523
        %4525 = vmatprep.mubr.f32.mxu0 0.0
        %4526 = vmatmul.mubr.f32.gmra.mrb[0].mxu0 %v3582
        %v4527 = vpop.f32.mrb[0].mxu0
        %v4528 = vadd.f32 %v3521, %v4527
        %v4529 = vpop.f32.mrb[0].mxu0
        %v4530 = vadd.f32 %v3521, %v4529
        %4531 = vmatprep.mubr.f32.mxu0 0.0
        %4532 = vmatmul.mubr.f32.gmra.mrb[0].mxu0 %v3585
        %v4533 = vpop.f32.mrb[0].mxu0
        %v4534 = vadd.f32 %v3526, %v4533
        %v4535 = vpop.f32.mrb[0].mxu0
        %v4536 = vadd.f32 %v3526, %v4535
        %4537 = vmatprep.mubr.f32.mxu0 0.0
        %4538 = vmatmul.mubr.f32.gmra.mrb[0].mxu0 %v3588
        %v4539 = vpop.f32.mrb[0].mxu0
        %v4540 = vadd.f32 %v3531, %v4539
        %v4541 = vpop.f32.mrb[0].mxu0
        %v4542 = vadd.f32 %v3531, %v4541
        %4543 = vmatprep.mubr.f32.mxu0 0.0
        %4544 = vmatmul.mubr.f32.gmra.mrb[0].mxu0 %v3591
        %v4545 = vpop.f32.mrb[0].mxu0
        %v4546 = vadd.f32 %v3536, %v4545
        %v4547 = vpop.f32.mrb[0].mxu0
        %v4548 = vadd.f32 %v3536, %v4547
        %4549 = vmatprep.mubr.f32.mxu0 0.0
        %4550 = vmatmul.mubr.f32.gmra.mrb[0].mxu0 %v3594
        %v4551 = vpop.f32.mrb[0].mxu0
        %v4552 = vadd.f32 %v3541, %v4551
        %v4553 = vpop.f32.mrb[0].mxu0
        %v4554 = vadd.f32 %v3541, %v4553
        %4555 = vmatprep.mubr.f32.mxu0 0.0
        %4556 = vmatmul.mubr.f32.gmra.mrb[0].mxu0 %v3597
        %v4557 = vpop.f32.mrb[0].mxu0
        %v4558 = vadd.f32 %v3546, %v4557
        %v4559 = vpop.f32.mrb[0].mxu0
        %v4560 = vadd.f32 %v3546, %v4559
        %4561 = vmatprep.mubr.f32.mxu0 0.0
        %4562 = vmatmul.mubr.f32.gmra.mrb[0].mxu0 %v3600
        %v4563 = vpop.f32.mrb[0].mxu0
        %v4564 = vadd.f32 %v3551, %v4563
        %v4565 = vpop.f32.mrb[0].mxu0
        %v4566 = vadd.f32 %v3551, %v4565
        %4567 = vdwg.mxu0
        %4568 = vmatprep.subr.mxu0 %v3214
        %4569 = vmatpush1.msra.mxu0 %v3213
        %4570 = vmatprep.subr.mxu0 %v3230
        %4571 = vmatpush1.msra.mxu0 %v3229
        %4572 = vmatprep.subr.mxu0 %v3246
        %4573 = vmatpush1.msra.mxu0 %v3245
        %4574 = vmatprep.subr.mxu0 %v3262
        %4575 = vmatpush1.msra.mxu0 %v3261
        %4576 = vmatprep.subr.mxu0 %v3278
        %4577 = vmatpush1.msra.mxu0 %v3277
        %4578 = vmatprep.subr.mxu0 %v3294
        %4579 = vmatpush1.msra.mxu0 %v3293
        %4580 = vmatprep.subr.mxu0 %v3310
        %4581 = vmatpush1.msra.mxu0 %v3309
        %4582 = vmatprep.subr.mxu0 %v3326
        %4583 = vmatpush1.msra.mxu0 %v3325
        %4584 = vmatprep.subr.mxu0 0.0
        %4585 = vmatpush1.msra.mxu0 0.0
        %4586 = vmatprep.subr.mxu0 0.0
        %4587 = vmatpush1.msra.mxu0 0.0
        %4588 = vmatprep.subr.mxu0 0.0
        %4589 = vmatpush1.msra.mxu0 0.0
        %4590 = vmatprep.subr.mxu0 0.0
        %4591 = vmatpush1.msra.mxu0 0.0
        %4592 = vmatprep.subr.mxu0 0.0
        %4593 = vmatpush1.msra.mxu0 0.0
        %4594 = vmatprep.subr.mxu0 0.0
        %4595 = vmatpush1.msra.mxu0 0.0
        %4596 = vmatprep.subr.mxu0 0.0
        %4597 = vmatpush1.msra.mxu0 0.0
        %4598 = vmatprep.subr.mxu0 0.0
        %4599 = vmatpush1.msra.mxu0 0.0
        %4600 = vmatprep.subr.mxu0 0.0
        %4601 = vmatpush1.msra.mxu0 0.0
        %4602 = vmatprep.subr.mxu0 0.0
        %4603 = vmatpush1.msra.mxu0 0.0
        %4604 = vmatprep.subr.mxu0 0.0
        %4605 = vmatpush1.msra.mxu0 0.0
        %4606 = vmatprep.subr.mxu0 0.0
        %4607 = vmatpush1.msra.mxu0 0.0
        %4608 = vmatprep.subr.mxu0 0.0
        %4609 = vmatpush1.msra.mxu0 0.0
        %4610 = vmatprep.subr.mxu0 0.0
        %4611 = vmatpush1.msra.mxu0 0.0
        %4612 = vmatprep.subr.mxu0 0.0
        %4613 = vmatpush1.msra.mxu0 0.0
        %4614 = vmatprep.subr.mxu0 0.0
        %4615 = vmatpush1.msra.mxu0 0.0
        %4616 = vmatprep.subr.mxu0 0.0
        %4617 = vmatpush1.msra.mxu0 0.0
        %4618 = vmatprep.subr.mxu0 0.0
        %4619 = vmatpush1.msra.mxu0 0.0
        %4620 = vmatprep.subr.mxu0 0.0
        %4621 = vmatpush1.msra.mxu0 0.0
        %4622 = vmatprep.subr.mxu0 0.0
        %4623 = vmatpush1.msra.mxu0 0.0
        %4624 = vmatprep.subr.mxu0 0.0
        %4625 = vmatpush1.msra.mxu0 0.0
        %4626 = vmatprep.subr.mxu0 0.0
        %4627 = vmatpush1.msra.mxu0 0.0
        %4628 = vmatprep.subr.mxu0 0.0
        %4629 = vmatpush1.msra.mxu0 0.0
        %4630 = vmatprep.subr.mxu0 0.0
        %4631 = vmatpush1.msra.mxu0 0.0
        %4632 = vmatprep.mubr.f32.mxu0 0.0
        %4633 = vmatmul.mubr.f32.gmra.mrb[0].mxu0 %v3555
        %v4634 = vpop.f32.mrb[0].mxu0
        %v4635 = vadd.f32 %v3476, %v4634
        %v4636 = vpop.f32.mrb[0].mxu0
        %v4637 = vadd.f32 %v3476, %v4636
        %4638 = vmatprep.mubr.f32.mxu0 0.0
        %4639 = vmatmul.mubr.f32.gmra.mrb[0].mxu0 %v3558
        %v4640 = vpop.f32.mrb[0].mxu0
        %v4641 = vadd.f32 %v3481, %v4640
        %v4642 = vpop.f32.mrb[0].mxu0
        %v4643 = vadd.f32 %v3481, %v4642
        %4644 = vmatprep.mubr.f32.mxu0 0.0
        %4645 = vmatmul.mubr.f32.gmra.mrb[0].mxu0 %v3561
        %v4646 = vpop.f32.mrb[0].mxu0
        %v4647 = vadd.f32 %v3486, %v4646
        %v4648 = vpop.f32.mrb[0].mxu0
        %v4649 = vadd.f32 %v3486, %v4648
        %4650 = vmatprep.mubr.f32.mxu0 0.0
        %4651 = vmatmul.mubr.f32.gmra.mrb[0].mxu0 %v3564
        %v4652 = vpop.f32.mrb[0].mxu0
        %v4653 = vadd.f32 %v3491, %v4652
        %v4654 = vpop.f32.mrb[0].mxu0
        %v4655 = vadd.f32 %v3491, %v4654
        %4656 = vmatprep.mubr.f32.mxu0 0.0
        %4657 = vmatmul.mubr.f32.gmra.mrb[0].mxu0 %v3567
        %v4658 = vpop.f32.mrb[0].mxu0
        %v4659 = vadd.f32 %v3496, %v4658
        %v4660 = vpop.f32.mrb[0].mxu0
        %v4661 = vadd.f32 %v3496, %v4660
        %4662 = vmatprep.mubr.f32.mxu0 0.0
        %4663 = vmatmul.mubr.f32.gmra.mrb[0].mxu0 %v3570
        %v4664 = vpop.f32.mrb[0].mxu0
        %v4665 = vadd.f32 %v3501, %v4664
        %v4666 = vpop.f32.mrb[0].mxu0
        %v4667 = vadd.f32 %v3501, %v4666
        %4668 = vmatprep.mubr.f32.mxu0 0.0
        %4669 = vmatmul.mubr.f32.gmra.mrb[0].mxu0 %v3573
        %v4670 = vpop.f32.mrb[0].mxu0
        %v4671 = vadd.f32 %v3506, %v4670
        %v4672 = vpop.f32.mrb[0].mxu0
        %v4673 = vadd.f32 %v3506, %v4672
        %4674 = vmatprep.mubr.f32.mxu0 0.0
        %4675 = vmatmul.mubr.f32.gmra.mrb[0].mxu0 %v3576
        %v4676 = vpop.f32.mrb[0].mxu0
        %v4677 = vadd.f32 %v3511, %v4676
        %v4678 = vpop.f32.mrb[0].mxu0
        %v4679 = vadd.f32 %v3511, %v4678
        %4680 = vmatprep.mubr.f32.mxu0 0.0
        %4681 = vmatmul.mubr.f32.gmra.mrb[0].mxu0 %v3579
        %v4682 = vpop.f32.mrb[0].mxu0
        %v4683 = vadd.f32 %v3516, %v4682
        %v4684 = vpop.f32.mrb[0].mxu0
        %v4685 = vadd.f32 %v3516, %v4684
        %4686 = vmatprep.mubr.f32.mxu0 0.0
        %4687 = vmatmul.mubr.f32.gmra.mrb[0].mxu0 %v3582
        %v4688 = vpop.f32.mrb[0].mxu0
        %v4689 = vadd.f32 %v3521, %v4688
        %v4690 = vpop.f32.mrb[0].mxu0
        %v4691 = vadd.f32 %v3521, %v4690
        %4692 = vmatprep.mubr.f32.mxu0 0.0
        %4693 = vmatmul.mubr.f32.gmra.mrb[0].mxu0 %v3585
        %v4694 = vpop.f32.mrb[0].mxu0
        %v4695 = vadd.f32 %v3526, %v4694
        %v4696 = vpop.f32.mrb[0].mxu0
        %v4697 = vadd.f32 %v3526, %v4696
        %4698 = vmatprep.mubr.f32.mxu0 0.0
        %4699 = vmatmul.mubr.f32.gmra.mrb[0].mxu0 %v3588
        %v4700 = vpop.f32.mrb[0].mxu0
        %v4701 = vadd.f32 %v3531, %v4700
        %v4702 = vpop.f32.mrb[0].mxu0
        %v4703 = vadd.f32 %v3531, %v4702
        %4704 = vmatprep.mubr.f32.mxu0 0.0
        %4705 = vmatmul.mubr.f32.gmra.mrb[0].mxu0 %v3591
        %v4706 = vpop.f32.mrb[0].mxu0
        %v4707 = vadd.f32 %v3536, %v4706
        %v4708 = vpop.f32.mrb[0].mxu0
        %v4709 = vadd.f32 %v3536, %v4708
        %4710 = vmatprep.mubr.f32.mxu0 0.0
        %4711 = vmatmul.mubr.f32.gmra.mrb[0].mxu0 %v3594
        %v4712 = vpop.f32.mrb[0].mxu0
        %v4713 = vadd.f32 %v3541, %v4712
        %v4714 = vpop.f32.mrb[0].mxu0
        %v4715 = vadd.f32 %v3541, %v4714
        %4716 = vmatprep.mubr.f32.mxu0 0.0
        %4717 = vmatmul.mubr.f32.gmra.mrb[0].mxu0 %v3597
        %v4718 = vpop.f32.mrb[0].mxu0
        %v4719 = vadd.f32 %v3546, %v4718
        %v4720 = vpop.f32.mrb[0].mxu0
        %v4721 = vadd.f32 %v3546, %v4720
        %4722 = vmatprep.mubr.f32.mxu0 0.0
        %4723 = vmatmul.mubr.f32.gmra.mrb[0].mxu0 %v3600
        %v4724 = vpop.f32.mrb[0].mxu0
        %v4725 = vadd.f32 %v3551, %v4724
        %v4726 = vpop.f32.mrb[0].mxu0
        %v4727 = vadd.f32 %v3551, %v4726
        %4728 = vdwg.mxu0
        %4729 = vmatprep.subr.mxu0 %v3216
        %4730 = vmatpush1.msra.mxu0 %v3215
        %4731 = vmatprep.subr.mxu0 %v3232
        %4732 = vmatpush1.msra.mxu0 %v3231
        %4733 = vmatprep.subr.mxu0 %v3248
        %4734 = vmatpush1.msra.mxu0 %v3247
        %4735 = vmatprep.subr.mxu0 %v3264
        %4736 = vmatpush1.msra.mxu0 %v3263
        %4737 = vmatprep.subr.mxu0 %v3280
        %4738 = vmatpush1.msra.mxu0 %v3279
        %4739 = vmatprep.subr.mxu0 %v3296
        %4740 = vmatpush1.msra.mxu0 %v3295
        %4741 = vmatprep.subr.mxu0 %v3312
        %4742 = vmatpush1.msra.mxu0 %v3311
        %4743 = vmatprep.subr.mxu0 %v3328
        %4744 = vmatpush1.msra.mxu0 %v3327
        %4745 = vmatprep.subr.mxu0 0.0
        %4746 = vmatpush1.msra.mxu0 0.0
        %4747 = vmatprep.subr.mxu0 0.0
        %4748 = vmatpush1.msra.mxu0 0.0
        %4749 = vmatprep.subr.mxu0 0.0
        %4750 = vmatpush1.msra.mxu0 0.0
        %4751 = vmatprep.subr.mxu0 0.0
        %4752 = vmatpush1.msra.mxu0 0.0
        %4753 = vmatprep.subr.mxu0 0.0
        %4754 = vmatpush1.msra.mxu0 0.0
        %4755 = vmatprep.subr.mxu0 0.0
        %4756 = vmatpush1.msra.mxu0 0.0
        %4757 = vmatprep.subr.mxu0 0.0
        %4758 = vmatpush1.msra.mxu0 0.0
        %4759 = vmatprep.subr.mxu0 0.0
        %4760 = vmatpush1.msra.mxu0 0.0
        %4761 = vmatprep.subr.mxu0 0.0
        %4762 = vmatpush1.msra.mxu0 0.0
        %4763 = vmatprep.subr.mxu0 0.0
        %4764 = vmatpush1.msra.mxu0 0.0
        %4765 = vmatprep.subr.mxu0 0.0
        %4766 = vmatpush1.msra.mxu0 0.0
        %4767 = vmatprep.subr.mxu0 0.0
        %4768 = vmatpush1.msra.mxu0 0.0
        %4769 = vmatprep.subr.mxu0 0.0
        %4770 = vmatpush1.msra.mxu0 0.0
        %4771 = vmatprep.subr.mxu0 0.0
        %4772 = vmatpush1.msra.mxu0 0.0
        %4773 = vmatprep.subr.mxu0 0.0
        %4774 = vmatpush1.msra.mxu0 0.0
        %4775 = vmatprep.subr.mxu0 0.0
        %4776 = vmatpush1.msra.mxu0 0.0
        %4777 = vmatprep.subr.mxu0 0.0
        %4778 = vmatpush1.msra.mxu0 0.0
        %4779 = vmatprep.subr.mxu0 0.0
        %4780 = vmatpush1.msra.mxu0 0.0
        %4781 = vmatprep.subr.mxu0 0.0
        %4782 = vmatpush1.msra.mxu0 0.0
        %4783 = vmatprep.subr.mxu0 0.0
        %4784 = vmatpush1.msra.mxu0 0.0
        %4785 = vmatprep.subr.mxu0 0.0
        %4786 = vmatpush1.msra.mxu0 0.0
        %4787 = vmatprep.subr.mxu0 0.0
        %4788 = vmatpush1.msra.mxu0 0.0
        %4789 = vmatprep.subr.mxu0 0.0
        %4790 = vmatpush1.msra.mxu0 0.0
        %4791 = vmatprep.subr.mxu0 0.0
        %4792 = vmatpush1.msra.mxu0 0.0
        %4793 = vmatprep.mubr.f32.mxu0 0.0
        %4794 = vmatmul.mubr.f32.gmra.mrb[0].mxu0 %v3555
        %v4795 = vpop.f32.mrb[0].mxu0
        %v4796 = vadd.f32 %v3476, %v4795
        %v4797 = vpop.f32.mrb[0].mxu0
        %v4798 = vadd.f32 %v3476, %v4797
        %4799 = vmatprep.mubr.f32.mxu0 0.0
        %4800 = vmatmul.mubr.f32.gmra.mrb[0].mxu0 %v3558
        %v4801 = vpop.f32.mrb[0].mxu0
        %v4802 = vadd.f32 %v3481, %v4801
        %v4803 = vpop.f32.mrb[0].mxu0
        %v4804 = vadd.f32 %v3481, %v4803
        %4805 = vmatprep.mubr.f32.mxu0 0.0
        %4806 = vmatmul.mubr.f32.gmra.mrb[0].mxu0 %v3561
        %v4807 = vpop.f32.mrb[0].mxu0
        %v4808 = vadd.f32 %v3486, %v4807
        %v4809 = vpop.f32.mrb[0].mxu0
        %v4810 = vadd.f32 %v3486, %v4809
        %4811 = vmatprep.mubr.f32.mxu0 0.0
        %4812 = vmatmul.mubr.f32.gmra.mrb[0].mxu0 %v3564
        %v4813 = vpop.f32.mrb[0].mxu0
        %v4814 = vadd.f32 %v3491, %v4813
        %v4815 = vpop.f32.mrb[0].mxu0
        %v4816 = vadd.f32 %v3491, %v4815
        %4817 = vmatprep.mubr.f32.mxu0 0.0
        %4818 = vmatmul.mubr.f32.gmra.mrb[0].mxu0 %v3567
        %v4819 = vpop.f32.mrb[0].mxu0
        %v4820 = vadd.f32 %v3496, %v4819
        %v4821 = vpop.f32.mrb[0].mxu0
        %v4822 = vadd.f32 %v3496, %v4821
        %4823 = vmatprep.mubr.f32.mxu0 0.0
        %4824 = vmatmul.mubr.f32.gmra.mrb[0].mxu0 %v3570
        %v4825 = vpop.f32.mrb[0].mxu0
        %v4826 = vadd.f32 %v3501, %v4825
        %v4827 = vpop.f32.mrb[0].mxu0
        %v4828 = vadd.f32 %v3501, %v4827
        %4829 = vmatprep.mubr.f32.mxu0 0.0
        %4830 = vmatmul.mubr.f32.gmra.mrb[0].mxu0 %v3573
        %v4831 = vpop.f32.mrb[0].mxu0
        %v4832 = vadd.f32 %v3506, %v4831
        %v4833 = vpop.f32.mrb[0].mxu0
        %v4834 = vadd.f32 %v3506, %v4833
        %4835 = vmatprep.mubr.f32.mxu0 0.0
        %4836 = vmatmul.mubr.f32.gmra.mrb[0].mxu0 %v3576
        %v4837 = vpop.f32.mrb[0].mxu0
        %v4838 = vadd.f32 %v3511, %v4837
        %v4839 = vpop.f32.mrb[0].mxu0
        %v4840 = vadd.f32 %v3511, %v4839
        %4841 = vmatprep.mubr.f32.mxu0 0.0
        %4842 = vmatmul.mubr.f32.gmra.mrb[0].mxu0 %v3579
        %v4843 = vpop.f32.mrb[0].mxu0
        %v4844 = vadd.f32 %v3516, %v4843
        %v4845 = vpop.f32.mrb[0].mxu0
        %v4846 = vadd.f32 %v3516, %v4845
        %4847 = vmatprep.mubr.f32.mxu0 0.0
        %4848 = vmatmul.mubr.f32.gmra.mrb[0].mxu0 %v3582
        %v4849 = vpop.f32.mrb[0].mxu0
        %v4850 = vadd.f32 %v3521, %v4849
        %v4851 = vpop.f32.mrb[0].mxu0
        %v4852 = vadd.f32 %v3521, %v4851
        %4853 = vmatprep.mubr.f32.mxu0 0.0
        %4854 = vmatmul.mubr.f32.gmra.mrb[0].mxu0 %v3585
        %v4855 = vpop.f32.mrb[0].mxu0
        %v4856 = vadd.f32 %v3526, %v4855
        %v4857 = vpop.f32.mrb[0].mxu0
        %v4858 = vadd.f32 %v3526, %v4857
        %4859 = vmatprep.mubr.f32.mxu0 0.0
        %4860 = vmatmul.mubr.f32.gmra.mrb[0].mxu0 %v3588
        %v4861 = vpop.f32.mrb[0].mxu0
        %v4862 = vadd.f32 %v3531, %v4861
        %v4863 = vpop.f32.mrb[0].mxu0
        %v4864 = vadd.f32 %v3531, %v4863
        %4865 = vmatprep.mubr.f32.mxu0 0.0
        %4866 = vmatmul.mubr.f32.gmra.mrb[0].mxu0 %v3591
        %v4867 = vpop.f32.mrb[0].mxu0
        %v4868 = vadd.f32 %v3536, %v4867
        %v4869 = vpop.f32.mrb[0].mxu0
        %v4870 = vadd.f32 %v3536, %v4869
        %4871 = vmatprep.mubr.f32.mxu0 0.0
        %4872 = vmatmul.mubr.f32.gmra.mrb[0].mxu0 %v3594
        %v4873 = vpop.f32.mrb[0].mxu0
        %v4874 = vadd.f32 %v3541, %v4873
        %v4875 = vpop.f32.mrb[0].mxu0
        %v4876 = vadd.f32 %v3541, %v4875
        %4877 = vmatprep.mubr.f32.mxu0 0.0
        %4878 = vmatmul.mubr.f32.gmra.mrb[0].mxu0 %v3597
        %v4879 = vpop.f32.mrb[0].mxu0
        %v4880 = vadd.f32 %v3546, %v4879
        %v4881 = vpop.f32.mrb[0].mxu0
        %v4882 = vadd.f32 %v3546, %v4881
        %4883 = vmatprep.mubr.f32.mxu0 0.0
        %4884 = vmatmul.mubr.f32.gmra.mrb[0].mxu0 %v3600
        %v4885 = vpop.f32.mrb[0].mxu0
        %v4886 = vadd.f32 %v3551, %v4885
        %v4887 = vpop.f32.mrb[0].mxu0
        %v4888 = vadd.f32 %v3551, %v4887
        %4889 = vdwg.mxu0
        %v4890 = vmax.f32 %v3669, 0.0
        %v4891 = vmax.f32 %v3671, 0.0
        %v4892 = vmax.f32 %v3830, 0.0
        %v4893 = vmax.f32 %v3832, 0.0
        %v4894 = vmax.f32 %v3991, 0.0
        %v4895 = vmax.f32 %v3993, 0.0
        %v4896 = vmax.f32 %v4152, 0.0
        %v4897 = vmax.f32 %v4154, 0.0
        %v4898 = vmax.f32 %v4313, 0.0
        %v4899 = vmax.f32 %v4315, 0.0
        %v4900 = vmax.f32 %v4474, 0.0
        %v4901 = vmax.f32 %v4476, 0.0
        %v4902 = vmax.f32 %v4635, 0.0
        %v4903 = vmax.f32 %v4637, 0.0
        %v4904 = vmax.f32 %v4796, 0.0
        %v4905 = vmax.f32 %v4798, 0.0
        %v4906 = vmax.f32 %v3675, 0.0
        %v4907 = vmax.f32 %v3677, 0.0
        %v4908 = vmax.f32 %v3836, 0.0
        %v4909 = vmax.f32 %v3838, 0.0
        %v4910 = vmax.f32 %v3997, 0.0
        %v4911 = vmax.f32 %v3999, 0.0
        %v4912 = vmax.f32 %v4158, 0.0
        %v4913 = vmax.f32 %v4160, 0.0
        %v4914 = vmax.f32 %v4319, 0.0
        %v4915 = vmax.f32 %v4321, 0.0
        %v4916 = vmax.f32 %v4480, 0.0
        %v4917 = vmax.f32 %v4482, 0.0
        %v4918 = vmax.f32 %v4641, 0.0
        %v4919 = vmax.f32 %v4643, 0.0
        %v4920 = vmax.f32 %v4802, 0.0
        %v4921 = vmax.f32 %v4804, 0.0
        %v4922 = vmax.f32 %v3681, 0.0
        %v4923 = vmax.f32 %v3683, 0.0
        %v4924 = vmax.f32 %v3842, 0.0
        %v4925 = vmax.f32 %v3844, 0.0
        %v4926 = vmax.f32 %v4003, 0.0
        %v4927 = vmax.f32 %v4005, 0.0
        %v4928 = vmax.f32 %v4164, 0.0
        %v4929 = vmax.f32 %v4166, 0.0
        %v4930 = vmax.f32 %v4325, 0.0
        %v4931 = vmax.f32 %v4327, 0.0
        %v4932 = vmax.f32 %v4486, 0.0
        %v4933 = vmax.f32 %v4488, 0.0
        %v4934 = vmax.f32 %v4647, 0.0
        %v4935 = vmax.f32 %v4649, 0.0
        %v4936 = vmax.f32 %v4808, 0.0
        %v4937 = vmax.f32 %v4810, 0.0
        %v4938 = vmax.f32 %v3687, 0.0
        %v4939 = vmax.f32 %v3689, 0.0
        %v4940 = vmax.f32 %v3848, 0.0
        %v4941 = vmax.f32 %v3850, 0.0
        %v4942 = vmax.f32 %v4009, 0.0
        %v4943 = vmax.f32 %v4011, 0.0
        %v4944 = vmax.f32 %v4170, 0.0
        %v4945 = vmax.f32 %v4172, 0.0
        %v4946 = vmax.f32 %v4331, 0.0
        %v4947 = vmax.f32 %v4333, 0.0
        %v4948 = vmax.f32 %v4492, 0.0
        %v4949 = vmax.f32 %v4494, 0.0
        %v4950 = vmax.f32 %v4653, 0.0
        %v4951 = vmax.f32 %v4655, 0.0
        %v4952 = vmax.f32 %v4814, 0.0
        %v4953 = vmax.f32 %v4816, 0.0
        %v4954 = vmax.f32 %v3693, 0.0
        %v4955 = vmax.f32 %v3695, 0.0
        %v4956 = vmax.f32 %v3854, 0.0
        %v4957 = vmax.f32 %v3856, 0.0
        %v4958 = vmax.f32 %v4015, 0.0
        %v4959 = vmax.f32 %v4017, 0.0
        %v4960 = vmax.f32 %v4176, 0.0
        %v4961 = vmax.f32 %v4178, 0.0
        %v4962 = vmax.f32 %v4337, 0.0
        %v4963 = vmax.f32 %v4339, 0.0
        %v4964 = vmax.f32 %v4498, 0.0
        %v4965 = vmax.f32 %v4500, 0.0
        %v4966 = vmax.f32 %v4659, 0.0
        %v4967 = vmax.f32 %v4661, 0.0
        %v4968 = vmax.f32 %v4820, 0.0
        %v4969 = vmax.f32 %v4822, 0.0
        %v4970 = vmax.f32 %v3699, 0.0
        %v4971 = vmax.f32 %v3701, 0.0
        %v4972 = vmax.f32 %v3860, 0.0
        %v4973 = vmax.f32 %v3862, 0.0
        %v4974 = vmax.f32 %v4021, 0.0
        %v4975 = vmax.f32 %v4023, 0.0
        %v4976 = vmax.f32 %v4182, 0.0
        %v4977 = vmax.f32 %v4184, 0.0
        %v4978 = vmax.f32 %v4343, 0.0
        %v4979 = vmax.f32 %v4345, 0.0
        %v4980 = vmax.f32 %v4504, 0.0
        %v4981 = vmax.f32 %v4506, 0.0
        %v4982 = vmax.f32 %v4665, 0.0
        %v4983 = vmax.f32 %v4667, 0.0
        %v4984 = vmax.f32 %v4826, 0.0
        %v4985 = vmax.f32 %v4828, 0.0
        %v4986 = vmax.f32 %v3705, 0.0
        %v4987 = vmax.f32 %v3707, 0.0
        %v4988 = vmax.f32 %v3866, 0.0
        %v4989 = vmax.f32 %v3868, 0.0
        %v4990 = vmax.f32 %v4027, 0.0
        %v4991 = vmax.f32 %v4029, 0.0
        %v4992 = vmax.f32 %v4188, 0.0
        %v4993 = vmax.f32 %v4190, 0.0
        %v4994 = vmax.f32 %v4349, 0.0
        %v4995 = vmax.f32 %v4351, 0.0
        %v4996 = vmax.f32 %v4510, 0.0
        %v4997 = vmax.f32 %v4512, 0.0
        %v4998 = vmax.f32 %v4671, 0.0
        %v4999 = vmax.f32 %v4673, 0.0
        %v5000 = vmax.f32 %v4832, 0.0
        %v5001 = vmax.f32 %v4834, 0.0
        %v5002 = vmax.f32 %v3711, 0.0
        %v5003 = vmax.f32 %v3713, 0.0
        %v5004 = vmax.f32 %v3872, 0.0
        %v5005 = vmax.f32 %v3874, 0.0
        %v5006 = vmax.f32 %v4033, 0.0
        %v5007 = vmax.f32 %v4035, 0.0
        %v5008 = vmax.f32 %v4194, 0.0
        %v5009 = vmax.f32 %v4196, 0.0
        %v5010 = vmax.f32 %v4355, 0.0
        %v5011 = vmax.f32 %v4357, 0.0
        %v5012 = vmax.f32 %v4516, 0.0
        %v5013 = vmax.f32 %v4518, 0.0
        %v5014 = vmax.f32 %v4677, 0.0
        %v5015 = vmax.f32 %v4679, 0.0
        %v5016 = vmax.f32 %v4838, 0.0
        %v5017 = vmax.f32 %v4840, 0.0
        %v5018 = vmax.f32 %v3717, 0.0
        %v5019 = vmax.f32 %v3719, 0.0
        %v5020 = vmax.f32 %v3878, 0.0
        %v5021 = vmax.f32 %v3880, 0.0
        %v5022 = vmax.f32 %v4039, 0.0
        %v5023 = vmax.f32 %v4041, 0.0
        %v5024 = vmax.f32 %v4200, 0.0
        %v5025 = vmax.f32 %v4202, 0.0
        %v5026 = vmax.f32 %v4361, 0.0
        %v5027 = vmax.f32 %v4363, 0.0
        %v5028 = vmax.f32 %v4522, 0.0
        %v5029 = vmax.f32 %v4524, 0.0
        %v5030 = vmax.f32 %v4683, 0.0
        %v5031 = vmax.f32 %v4685, 0.0
        %v5032 = vmax.f32 %v4844, 0.0
        %v5033 = vmax.f32 %v4846, 0.0
        %v5034 = vmax.f32 %v3723, 0.0
        %v5035 = vmax.f32 %v3725, 0.0
        %v5036 = vmax.f32 %v3884, 0.0
        %v5037 = vmax.f32 %v3886, 0.0
        %v5038 = vmax.f32 %v4045, 0.0
        %v5039 = vmax.f32 %v4047, 0.0
        %v5040 = vmax.f32 %v4206, 0.0
        %v5041 = vmax.f32 %v4208, 0.0
        %v5042 = vmax.f32 %v4367, 0.0
        %v5043 = vmax.f32 %v4369, 0.0
        %v5044 = vmax.f32 %v4528, 0.0
        %v5045 = vmax.f32 %v4530, 0.0
        %v5046 = vmax.f32 %v4689, 0.0
        %v5047 = vmax.f32 %v4691, 0.0
        %v5048 = vmax.f32 %v4850, 0.0
        %v5049 = vmax.f32 %v4852, 0.0
        %v5050 = vmax.f32 %v3729, 0.0
        %v5051 = vmax.f32 %v3731, 0.0
        %v5052 = vmax.f32 %v3890, 0.0
        %v5053 = vmax.f32 %v3892, 0.0
        %v5054 = vmax.f32 %v4051, 0.0
        %v5055 = vmax.f32 %v4053, 0.0
        %v5056 = vmax.f32 %v4212, 0.0
        %v5057 = vmax.f32 %v4214, 0.0
        %v5058 = vmax.f32 %v4373, 0.0
        %v5059 = vmax.f32 %v4375, 0.0
        %v5060 = vmax.f32 %v4534, 0.0
        %v5061 = vmax.f32 %v4536, 0.0
        %v5062 = vmax.f32 %v4695, 0.0
        %v5063 = vmax.f32 %v4697, 0.0
        %v5064 = vmax.f32 %v4856, 0.0
        %v5065 = vmax.f32 %v4858, 0.0
        %v5066 = vmax.f32 %v3735, 0.0
        %v5067 = vmax.f32 %v3737, 0.0
        %v5068 = vmax.f32 %v3896, 0.0
        %v5069 = vmax.f32 %v3898, 0.0
        %v5070 = vmax.f32 %v4057, 0.0
        %v5071 = vmax.f32 %v4059, 0.0
        %v5072 = vmax.f32 %v4218, 0.0
        %v5073 = vmax.f32 %v4220, 0.0
        %v5074 = vmax.f32 %v4379, 0.0
        %v5075 = vmax.f32 %v4381, 0.0
        %v5076 = vmax.f32 %v4540, 0.0
        %v5077 = vmax.f32 %v4542, 0.0
        %v5078 = vmax.f32 %v4701, 0.0
        %v5079 = vmax.f32 %v4703, 0.0
        %v5080 = vmax.f32 %v4862, 0.0
        %v5081 = vmax.f32 %v4864, 0.0
        %v5082 = vmax.f32 %v3741, 0.0
        %v5083 = vmax.f32 %v3743, 0.0
        %v5084 = vmax.f32 %v3902, 0.0
        %v5085 = vmax.f32 %v3904, 0.0
        %v5086 = vmax.f32 %v4063, 0.0
        %v5087 = vmax.f32 %v4065, 0.0
        %v5088 = vmax.f32 %v4224, 0.0
        %v5089 = vmax.f32 %v4226, 0.0
        %v5090 = vmax.f32 %v4385, 0.0
        %v5091 = vmax.f32 %v4387, 0.0
        %v5092 = vmax.f32 %v4546, 0.0
        %v5093 = vmax.f32 %v4548, 0.0
        %v5094 = vmax.f32 %v4707, 0.0
        %v5095 = vmax.f32 %v4709, 0.0
        %v5096 = vmax.f32 %v4868, 0.0
        %v5097 = vmax.f32 %v4870, 0.0
        %v5098 = vmax.f32 %v3747, 0.0
        %v5099 = vmax.f32 %v3749, 0.0
        %v5100 = vmax.f32 %v3908, 0.0
        %v5101 = vmax.f32 %v3910, 0.0
        %v5102 = vmax.f32 %v4069, 0.0
        %v5103 = vmax.f32 %v4071, 0.0
        %v5104 = vmax.f32 %v4230, 0.0
        %v5105 = vmax.f32 %v4232, 0.0
        %v5106 = vmax.f32 %v4391, 0.0
        %v5107 = vmax.f32 %v4393, 0.0
        %v5108 = vmax.f32 %v4552, 0.0
        %v5109 = vmax.f32 %v4554, 0.0
        %v5110 = vmax.f32 %v4713, 0.0
        %v5111 = vmax.f32 %v4715, 0.0
        %v5112 = vmax.f32 %v4874, 0.0
        %v5113 = vmax.f32 %v4876, 0.0
        %v5114 = vmax.f32 %v3753, 0.0
        %v5115 = vmax.f32 %v3755, 0.0
        %v5116 = vmax.f32 %v3914, 0.0
        %v5117 = vmax.f32 %v3916, 0.0
        %v5118 = vmax.f32 %v4075, 0.0
        %v5119 = vmax.f32 %v4077, 0.0
        %v5120 = vmax.f32 %v4236, 0.0
        %v5121 = vmax.f32 %v4238, 0.0
        %v5122 = vmax.f32 %v4397, 0.0
        %v5123 = vmax.f32 %v4399, 0.0
        %v5124 = vmax.f32 %v4558, 0.0
        %v5125 = vmax.f32 %v4560, 0.0
        %v5126 = vmax.f32 %v4719, 0.0
        %v5127 = vmax.f32 %v4721, 0.0
        %v5128 = vmax.f32 %v4880, 0.0
        %v5129 = vmax.f32 %v4882, 0.0
        %v5130 = vmax.f32 %v3759, 0.0
        %v5131 = vmax.f32 %v3761, 0.0
        %v5132 = vmax.f32 %v3920, 0.0
        %v5133 = vmax.f32 %v3922, 0.0
        %v5134 = vmax.f32 %v4081, 0.0
        %v5135 = vmax.f32 %v4083, 0.0
        %v5136 = vmax.f32 %v4242, 0.0
        %v5137 = vmax.f32 %v4244, 0.0
        %v5138 = vmax.f32 %v4403, 0.0
        %v5139 = vmax.f32 %v4405, 0.0
        %v5140 = vmax.f32 %v4564, 0.0
        %v5141 = vmax.f32 %v4566, 0.0
        %v5142 = vmax.f32 %v4725, 0.0
        %v5143 = vmax.f32 %v4727, 0.0
        %v5144 = vmax.f32 %v4886, 0.0
        %v5145 = vmax.f32 %v4888, 0.0
        %v5146 = vmax.f32 %v4890, %v4892
        %v5147 = vmax.f32 %v4891, %v4893
        %v5148 = vmax.f32 %v4906, %v4908
        %v5149 = vmax.f32 %v4907, %v4909
        %v5150 = vmax.f32 %v4922, %v4924
        %v5151 = vmax.f32 %v4923, %v4925
        %v5152 = vmax.f32 %v4938, %v4940
        %v5153 = vmax.f32 %v4939, %v4941
        %v5154 = vmax.f32 %v4954, %v4956
        %v5155 = vmax.f32 %v4955, %v4957
        %v5156 = vmax.f32 %v4970, %v4972
        %v5157 = vmax.f32 %v4971, %v4973
        %v5158 = vmax.f32 %v4986, %v4988
        %v5159 = vmax.f32 %v4987, %v4989
        %v5160 = vmax.f32 %v5002, %v5004
        %v5161 = vmax.f32 %v5003, %v5005
        %v5162 = vmax.f32 %v5018, %v5020
        %v5163 = vmax.f32 %v5019, %v5021
        %v5164 = vmax.f32 %v5034, %v5036
        %v5165 = vmax.f32 %v5035, %v5037
        %v5166 = vmax.f32 %v5050, %v5052
        %v5167 = vmax.f32 %v5051, %v5053
        %v5168 = vmax.f32 %v5066, %v5068
        %v5169 = vmax.f32 %v5067, %v5069
        %v5170 = vmax.f32 %v5082, %v5084
        %v5171 = vmax.f32 %v5083, %v5085
        %v5172 = vmax.f32 %v5098, %v5100
        %v5173 = vmax.f32 %v5099, %v5101
        %v5174 = vmax.f32 %v5114, %v5116
        %v5175 = vmax.f32 %v5115, %v5117
        %v5176 = vmax.f32 %v5130, %v5132
        %v5177 = vmax.f32 %v5131, %v5133
        %v5178 = vmax.f32 %v5146, %v4894
        %v5179 = vmax.f32 %v5147, %v4895
        %v5180 = vmax.f32 %v5148, %v4910
        %v5181 = vmax.f32 %v5149, %v4911
        %v5182 = vmax.f32 %v5150, %v4926
        %v5183 = vmax.f32 %v5151, %v4927
        %v5184 = vmax.f32 %v5152, %v4942
        %v5185 = vmax.f32 %v5153, %v4943
        %v5186 = vmax.f32 %v5154, %v4958
        %v5187 = vmax.f32 %v5155, %v4959
        %v5188 = vmax.f32 %v5156, %v4974
        %v5189 = vmax.f32 %v5157, %v4975
        %v5190 = vmax.f32 %v5158, %v4990
        %v5191 = vmax.f32 %v5159, %v4991
        %v5192 = vmax.f32 %v5160, %v5006
        %v5193 = vmax.f32 %v5161, %v5007
        %v5194 = vmax.f32 %v5162, %v5022
        %v5195 = vmax.f32 %v5163, %v5023
        %v5196 = vmax.f32 %v5164, %v5038
        %v5197 = vmax.f32 %v5165, %v5039
        %v5198 = vmax.f32 %v5166, %v5054
        %v5199 = vmax.f32 %v5167, %v5055
        %v5200 = vmax.f32 %v5168, %v5070
        %v5201 = vmax.f32 %v5169, %v5071
        %v5202 = vmax.f32 %v5170, %v5086
        %v5203 = vmax.f32 %v5171, %v5087
        %v5204 = vmax.f32 %v5172, %v5102
        %v5205 = vmax.f32 %v5173, %v5103
        %v5206 = vmax.f32 %v5174, %v5118
        %v5207 = vmax.f32 %v5175, %v5119
        %v5208 = vmax.f32 %v5176, %v5134
        %v5209 = vmax.f32 %v5177, %v5135
        %v5210 = vmax.f32 %v5178, %v4896
        %v5211 = vmax.f32 %v5179, %v4897
        %v5212 = vmax.f32 %v5180, %v4912
        %v5213 = vmax.f32 %v5181, %v4913
        %v5214 = vmax.f32 %v5182, %v4928
        %v5215 = vmax.f32 %v5183, %v4929
        %v5216 = vmax.f32 %v5184, %v4944
        %v5217 = vmax.f32 %v5185, %v4945
        %v5218 = vmax.f32 %v5186, %v4960
        %v5219 = vmax.f32 %v5187, %v4961
        %v5220 = vmax.f32 %v5188, %v4976
        %v5221 = vmax.f32 %v5189, %v4977
        %v5222 = vmax.f32 %v5190, %v4992
        %v5223 = vmax.f32 %v5191, %v4993
        %v5224 = vmax.f32 %v5192, %v5008
        %v5225 = vmax.f32 %v5193, %v5009
        %v5226 = vmax.f32 %v5194, %v5024
        %v5227 = vmax.f32 %v5195, %v5025
        %v5228 = vmax.f32 %v5196, %v5040
        %v5229 = vmax.f32 %v5197, %v5041
        %v5230 = vmax.f32 %v5198, %v5056
        %v5231 = vmax.f32 %v5199, %v5057
        %v5232 = vmax.f32 %v5200, %v5072
        %v5233 = vmax.f32 %v5201, %v5073
        %v5234 = vmax.f32 %v5202, %v5088
        %v5235 = vmax.f32 %v5203, %v5089
        %v5236 = vmax.f32 %v5204, %v5104
        %v5237 = vmax.f32 %v5205, %v5105
        %v5238 = vmax.f32 %v5206, %v5120
        %v5239 = vmax.f32 %v5207, %v5121
        %v5240 = vmax.f32 %v5208, %v5136
        %v5241 = vmax.f32 %v5209, %v5137
        %v5242 = vmax.f32 %v5210, %v4898
        %v5243 = vmax.f32 %v5211, %v4899
        %v5244 = vmax.f32 %v5212, %v4914
        %v5245 = vmax.f32 %v5213, %v4915
        %v5246 = vmax.f32 %v5214, %v4930
        %v5247 = vmax.f32 %v5215, %v4931
        %v5248 = vmax.f32 %v5216, %v4946
        %v5249 = vmax.f32 %v5217, %v4947
        %v5250 = vmax.f32 %v5218, %v4962
        %v5251 = vmax.f32 %v5219, %v4963
        %v5252 = vmax.f32 %v5220, %v4978
        %v5253 = vmax.f32 %v5221, %v4979
        %v5254 = vmax.f32 %v5222, %v4994
        %v5255 = vmax.f32 %v5223, %v4995
        %v5256 = vmax.f32 %v5224, %v5010
        %v5257 = vmax.f32 %v5225, %v5011
        %v5258 = vmax.f32 %v5226, %v5026
        %v5259 = vmax.f32 %v5227, %v5027
        %v5260 = vmax.f32 %v5228, %v5042
        %v5261 = vmax.f32 %v5229, %v5043
        %v5262 = vmax.f32 %v5230, %v5058
        %v5263 = vmax.f32 %v5231, %v5059
        %v5264 = vmax.f32 %v5232, %v5074
        %v5265 = vmax.f32 %v5233, %v5075
        %v5266 = vmax.f32 %v5234, %v5090
        %v5267 = vmax.f32 %v5235, %v5091
        %v5268 = vmax.f32 %v5236, %v5106
        %v5269 = vmax.f32 %v5237, %v5107
        %v5270 = vmax.f32 %v5238, %v5122
        %v5271 = vmax.f32 %v5239, %v5123
        %v5272 = vmax.f32 %v5240, %v5138
        %v5273 = vmax.f32 %v5241, %v5139
        %v5274 = vmax.f32 %v5242, %v4900
        %v5275 = vmax.f32 %v5243, %v4901
        %v5276 = vmax.f32 %v5244, %v4916
        %v5277 = vmax.f32 %v5245, %v4917
        %v5278 = vmax.f32 %v5246, %v4932
        %v5279 = vmax.f32 %v5247, %v4933
        %v5280 = vmax.f32 %v5248, %v4948
        %v5281 = vmax.f32 %v5249, %v4949
        %v5282 = vmax.f32 %v5250, %v4964
        %v5283 = vmax.f32 %v5251, %v4965
        %v5284 = vmax.f32 %v5252, %v4980
        %v5285 = vmax.f32 %v5253, %v4981
        %v5286 = vmax.f32 %v5254, %v4996
        %v5287 = vmax.f32 %v5255, %v4997
        %v5288 = vmax.f32 %v5256, %v5012
        %v5289 = vmax.f32 %v5257, %v5013
        %v5290 = vmax.f32 %v5258, %v5028
        %v5291 = vmax.f32 %v5259, %v5029
        %v5292 = vmax.f32 %v5260, %v5044
        %v5293 = vmax.f32 %v5261, %v5045
        %v5294 = vmax.f32 %v5262, %v5060
        %v5295 = vmax.f32 %v5263, %v5061
        %v5296 = vmax.f32 %v5264, %v5076
        %v5297 = vmax.f32 %v5265, %v5077
        %v5298 = vmax.f32 %v5266, %v5092
        %v5299 = vmax.f32 %v5267, %v5093
        %v5300 = vmax.f32 %v5268, %v5108
        %v5301 = vmax.f32 %v5269, %v5109
        %v5302 = vmax.f32 %v5270, %v5124
        %v5303 = vmax.f32 %v5271, %v5125
        %v5304 = vmax.f32 %v5272, %v5140
        %v5305 = vmax.f32 %v5273, %v5141
        %v5306 = vmax.f32 %v5274, %v4902
        %v5307 = vmax.f32 %v5275, %v4903
        %v5308 = vmax.f32 %v5276, %v4918
        %v5309 = vmax.f32 %v5277, %v4919
        %v5310 = vmax.f32 %v5278, %v4934
        %v5311 = vmax.f32 %v5279, %v4935
        %v5312 = vmax.f32 %v5280, %v4950
        %v5313 = vmax.f32 %v5281, %v4951
        %v5314 = vmax.f32 %v5282, %v4966
        %v5315 = vmax.f32 %v5283, %v4967
        %v5316 = vmax.f32 %v5284, %v4982
        %v5317 = vmax.f32 %v5285, %v4983
        %v5318 = vmax.f32 %v5286, %v4998
        %v5319 = vmax.f32 %v5287, %v4999
        %v5320 = vmax.f32 %v5288, %v5014
        %v5321 = vmax.f32 %v5289, %v5015
        %v5322 = vmax.f32 %v5290, %v5030
        %v5323 = vmax.f32 %v5291, %v5031
        %v5324 = vmax.f32 %v5292, %v5046
        %v5325 = vmax.f32 %v5293, %v5047
        %v5326 = vmax.f32 %v5294, %v5062
        %v5327 = vmax.f32 %v5295, %v5063
        %v5328 = vmax.f32 %v5296, %v5078
        %v5329 = vmax.f32 %v5297, %v5079
        %v5330 = vmax.f32 %v5298, %v5094
        %v5331 = vmax.f32 %v5299, %v5095
        %v5332 = vmax.f32 %v5300, %v5110
        %v5333 = vmax.f32 %v5301, %v5111
        %v5334 = vmax.f32 %v5302, %v5126
        %v5335 = vmax.f32 %v5303, %v5127
        %v5336 = vmax.f32 %v5304, %v5142
        %v5337 = vmax.f32 %v5305, %v5143
        %v5338 = vmax.f32 %v5306, %v4904
        %v5339 = vmax.f32 %v5307, %v4905
        %v5340 = vmax.f32 %v5308, %v4920
        %v5341 = vmax.f32 %v5309, %v4921
        %v5342 = vmax.f32 %v5310, %v4936
        %v5343 = vmax.f32 %v5311, %v4937
        %v5344 = vmax.f32 %v5312, %v4952
        %v5345 = vmax.f32 %v5313, %v4953
        %v5346 = vmax.f32 %v5314, %v4968
        %v5347 = vmax.f32 %v5315, %v4969
        %v5348 = vmax.f32 %v5316, %v4984
        %v5349 = vmax.f32 %v5317, %v4985
        %v5350 = vmax.f32 %v5318, %v5000
        %v5351 = vmax.f32 %v5319, %v5001
        %v5352 = vmax.f32 %v5320, %v5016
        %v5353 = vmax.f32 %v5321, %v5017
        %v5354 = vmax.f32 %v5322, %v5032
        %v5355 = vmax.f32 %v5323, %v5033
        %v5356 = vmax.f32 %v5324, %v5048
        %v5357 = vmax.f32 %v5325, %v5049
        %v5358 = vmax.f32 %v5326, %v5064
        %v5359 = vmax.f32 %v5327, %v5065
        %v5360 = vmax.f32 %v5328, %v5080
        %v5361 = vmax.f32 %v5329, %v5081
        %v5362 = vmax.f32 %v5330, %v5096
        %v5363 = vmax.f32 %v5331, %v5097
        %v5364 = vmax.f32 %v5332, %v5112
        %v5365 = vmax.f32 %v5333, %v5113
        %v5366 = vmax.f32 %v5334, %v5128
        %v5367 = vmax.f32 %v5335, %v5129
        %v5368 = vmax.f32 %v5336, %v5144
        %v5369 = vmax.f32 %v5337, %v5145
        %v5370 = vld [vmem:[%s9] sm:$0xff]
        %v5371 = vld [vmem:[%s9 + $0x8] sm:$0xff]
        %v5372 = vld [vmem:[%s9 + $0x10] sm:$0xff]
        %v5373 = vld [vmem:[%s9 + $0x18] sm:$0xff]
        %v5374 = vld [vmem:[%s9 + $0x20] sm:$0xff]
        %v5375 = vld [vmem:[%s9 + $0x28] sm:$0xff]
        %v5376 = vld [vmem:[%s9 + $0x30] sm:$0xff]
        %v5377 = vld [vmem:[%s9 + $0x38] sm:$0xff]
        %v5378 = vld [vmem:[%s9 + $0x40] sm:$0xff]
        %v5379 = vld [vmem:[%s9 + $0x48] sm:$0xff]
        %v5380 = vld [vmem:[%s9 + $0x50] sm:$0xff]
        %v5381 = vld [vmem:[%s9 + $0x58] sm:$0xff]
        %v5382 = vld [vmem:[%s9 + $0x60] sm:$0xff]
        %v5383 = vld [vmem:[%s9 + $0x68] sm:$0xff]
        %v5384 = vld [vmem:[%s9 + $0x70] sm:$0xff]
        %v5385 = vld [vmem:[%s9 + $0x78] sm:$0xff]
        %v5386 = vld [vmem:[%s9 + $0x80] sm:$0xff]
        %v5387 = vld [vmem:[%s9 + $0x88] sm:$0xff]
        %v5388 = vld [vmem:[%s9 + $0x90] sm:$0xff]
        %v5389 = vld [vmem:[%s9 + $0x98] sm:$0xff]
        %v5390 = vld [vmem:[%s9 + $0xa0] sm:$0xff]
        %v5391 = vld [vmem:[%s9 + $0xa8] sm:$0xff]
        %v5392 = vld [vmem:[%s9 + $0xb0] sm:$0xff]
        %v5393 = vld [vmem:[%s9 + $0xb8] sm:$0xff]
        %v5394 = vld [vmem:[%s9 + $0xc0] sm:$0xff]
        %v5395 = vld [vmem:[%s9 + $0xc8] sm:$0xff]
        %v5396 = vld [vmem:[%s9 + $0xd0] sm:$0xff]
        %v5397 = vld [vmem:[%s9 + $0xd8] sm:$0xff]
        %v5398 = vld [vmem:[%s9 + $0xe0] sm:$0xff]
        %v5399 = vld [vmem:[%s9 + $0xe8] sm:$0xff]
        %v5400 = vld [vmem:[%s9 + $0xf0] sm:$0xff]
        %v5401 = vld [vmem:[%s9 + $0xf8] sm:$0xff]
        %v5402 = vld [vmem:[%s10] sm:$0xff]
        %v5403 = vld [vmem:[%s10 + $0x8] sm:$0xff]
        %v5404 = vld [vmem:[%s10 + $0x10] sm:$0xff]
        %v5405 = vld [vmem:[%s10 + $0x18] sm:$0xff]
        %v5406 = vld [vmem:[%s10 + $0x20] sm:$0xff]
        %v5407 = vld [vmem:[%s10 + $0x28] sm:$0xff]
        %v5408 = vld [vmem:[%s10 + $0x30] sm:$0xff]
        %v5409 = vld [vmem:[%s10 + $0x38] sm:$0xff]
        %v5410 = vld [vmem:[%s10 + $0x40] sm:$0xff]
        %v5411 = vld [vmem:[%s10 + $0x48] sm:$0xff]
        %v5412 = vld [vmem:[%s10 + $0x50] sm:$0xff]
        %v5413 = vld [vmem:[%s10 + $0x58] sm:$0xff]
        %v5414 = vld [vmem:[%s10 + $0x60] sm:$0xff]
        %v5415 = vld [vmem:[%s10 + $0x68] sm:$0xff]
        %v5416 = vld [vmem:[%s10 + $0x70] sm:$0xff]
        %v5417 = vld [vmem:[%s10 + $0x78] sm:$0xff]
        %5419 = vset.pattern.permute.xlu0 0
        %5420 = vperm.xlu0 %5419, %v5402
        %v5421 = vpop.permute.xlu0 %5420
        %5424 = vset.pattern.permute.xlu0 0
        %5425 = vperm.xlu0 %5424, %v5403
        %v5426 = vpop.permute.xlu0 %5425
        %5429 = vset.pattern.permute.xlu0 0
        %5430 = vperm.xlu0 %5429, %v5404
        %v5431 = vpop.permute.xlu0 %5430
        %5434 = vset.pattern.permute.xlu0 0
        %5435 = vperm.xlu0 %5434, %v5405
        %v5436 = vpop.permute.xlu0 %5435
        %5439 = vset.pattern.permute.xlu0 0
        %5440 = vperm.xlu0 %5439, %v5406
        %v5441 = vpop.permute.xlu0 %5440
        %5444 = vset.pattern.permute.xlu0 0
        %5445 = vperm.xlu0 %5444, %v5407
        %v5446 = vpop.permute.xlu0 %5445
        %5449 = vset.pattern.permute.xlu0 0
        %5450 = vperm.xlu0 %5449, %v5408
        %v5451 = vpop.permute.xlu0 %5450
        %5454 = vset.pattern.permute.xlu0 0
        %5455 = vperm.xlu0 %5454, %v5409
        %v5456 = vpop.permute.xlu0 %5455
        %5459 = vset.pattern.permute.xlu0 0
        %5460 = vperm.xlu0 %5459, %v5410
        %v5461 = vpop.permute.xlu0 %5460
        %5464 = vset.pattern.permute.xlu0 0
        %5465 = vperm.xlu0 %5464, %v5411
        %v5466 = vpop.permute.xlu0 %5465
        %5469 = vset.pattern.permute.xlu0 0
        %5470 = vperm.xlu0 %5469, %v5412
        %v5471 = vpop.permute.xlu0 %5470
        %5474 = vset.pattern.permute.xlu0 0
        %5475 = vperm.xlu0 %5474, %v5413
        %v5476 = vpop.permute.xlu0 %5475
        %5479 = vset.pattern.permute.xlu0 0
        %5480 = vperm.xlu0 %5479, %v5414
        %v5481 = vpop.permute.xlu0 %5480
        %5484 = vset.pattern.permute.xlu0 0
        %5485 = vperm.xlu0 %5484, %v5415
        %v5486 = vpop.permute.xlu0 %5485
        %5489 = vset.pattern.permute.xlu0 0
        %5490 = vperm.xlu0 %5489, %v5416
        %v5491 = vpop.permute.xlu0 %5490
        %5494 = vset.pattern.permute.xlu0 0
        %5495 = vperm.xlu0 %5494, %v5417
        %v5496 = vpop.permute.xlu0 %5495
        %5498 = vmatprep.subr.mxu0 %v1337
        %5499 = vmatpush1.msra.mxu0 %v1336
        %5500 = vmatprep.subr.mxu0 %v1339
        %5501 = vmatpush1.msra.mxu0 %v1338
        %5502 = vmatprep.subr.mxu0 %v1341
        %5503 = vmatpush1.msra.mxu0 %v1340
        %5504 = vmatprep.subr.mxu0 %v1343
        %5505 = vmatpush1.msra.mxu0 %v1342
        %5506 = vmatprep.subr.mxu0 %v2210
        %5507 = vmatpush1.msra.mxu0 %v2209
        %5508 = vmatprep.subr.mxu0 %v2212
        %5509 = vmatpush1.msra.mxu0 %v2211
        %5510 = vmatprep.subr.mxu0 %v2214
        %5511 = vmatpush1.msra.mxu0 %v2213
        %5512 = vmatprep.subr.mxu0 %v2216
        %5513 = vmatpush1.msra.mxu0 %v2215
        %5514 = vmatprep.subr.mxu0 %v3426
        %5515 = vmatpush1.msra.mxu0 %v3425
        %5516 = vmatprep.subr.mxu0 %v3428
        %5517 = vmatpush1.msra.mxu0 %v3427
        %5518 = vmatprep.subr.mxu0 %v3430
        %5519 = vmatpush1.msra.mxu0 %v3429
        %5520 = vmatprep.subr.mxu0 %v3432
        %5521 = vmatpush1.msra.mxu0 %v3431
        %5522 = vmatprep.subr.mxu0 %v3434
        %5523 = vmatpush1.msra.mxu0 %v3433
        %5524 = vmatprep.subr.mxu0 %v3436
        %5525 = vmatpush1.msra.mxu0 %v3435
        %5526 = vmatprep.subr.mxu0 %v3438
        %5527 = vmatpush1.msra.mxu0 %v3437
        %5528 = vmatprep.subr.mxu0 %v3440
        %5529 = vmatpush1.msra.mxu0 %v3439
        %5530 = vmatprep.subr.mxu0 %v5339
        %5531 = vmatpush1.msra.mxu0 %v5338
        %5532 = vmatprep.subr.mxu0 %v5341
        %5533 = vmatpush1.msra.mxu0 %v5340
        %5534 = vmatprep.subr.mxu0 %v5343
        %5535 = vmatpush1.msra.mxu0 %v5342
        %5536 = vmatprep.subr.mxu0 %v5345
        %5537 = vmatpush1.msra.mxu0 %v5344
        %5538 = vmatprep.subr.mxu0 %v5347
        %5539 = vmatpush1.msra.mxu0 %v5346
        %5540 = vmatprep.subr.mxu0 %v5349
        %5541 = vmatpush1.msra.mxu0 %v5348
        %5542 = vmatprep.subr.mxu0 %v5351
        %5543 = vmatpush1.msra.mxu0 %v5350
        %5544 = vmatprep.subr.mxu0 %v5353
        %5545 = vmatpush1.msra.mxu0 %v5352
        %5546 = vmatprep.subr.mxu0 %v5355
        %5547 = vmatpush1.msra.mxu0 %v5354
        %5548 = vmatprep.subr.mxu0 %v5357
        %5549 = vmatpush1.msra.mxu0 %v5356
        %5550 = vmatprep.subr.mxu0 %v5359
        %5551 = vmatpush1.msra.mxu0 %v5358
        %5552 = vmatprep.subr.mxu0 %v5361
        %5553 = vmatpush1.msra.mxu0 %v5360
        %5554 = vmatprep.subr.mxu0 %v5363
        %5555 = vmatpush1.msra.mxu0 %v5362
        %5556 = vmatprep.subr.mxu0 %v5365
        %5557 = vmatpush1.msra.mxu0 %v5364
        %5558 = vmatprep.subr.mxu0 %v5367
        %5559 = vmatpush1.msra.mxu0 %v5366
        %5560 = vmatprep.subr.mxu0 %v5369
        %5561 = vmatpush1.msra.mxu0 %v5368
        %5562 = vmatprep.mubr.f32.mxu0 %v5371
        %5563 = vmatmul.mubr.f32.gmra.mrb[0].mxu0 %v5370
        %v5564 = vpop.f32.mrb[0].mxu0
        %v5565 = vadd.f32 %v5421, %v5564
        %v5566 = vpop.f32.mrb[0].mxu0
        %v5567 = vadd.f32 %v5421, %v5566
        %5568 = vmatprep.mubr.f32.mxu0 %v5373
        %5569 = vmatmul.mubr.f32.gmra.mrb[0].mxu0 %v5372
        %v5570 = vpop.f32.mrb[0].mxu0
        %v5571 = vadd.f32 %v5426, %v5570
        %v5572 = vpop.f32.mrb[0].mxu0
        %v5573 = vadd.f32 %v5426, %v5572
        %5574 = vmatprep.mubr.f32.mxu0 %v5375
        %5575 = vmatmul.mubr.f32.gmra.mrb[0].mxu0 %v5374
        %v5576 = vpop.f32.mrb[0].mxu0
        %v5577 = vadd.f32 %v5431, %v5576
        %v5578 = vpop.f32.mrb[0].mxu0
        %v5579 = vadd.f32 %v5431, %v5578
        %5580 = vmatprep.mubr.f32.mxu0 %v5377
        %5581 = vmatmul.mubr.f32.gmra.mrb[0].mxu0 %v5376
        %v5582 = vpop.f32.mrb[0].mxu0
        %v5583 = vadd.f32 %v5436, %v5582
        %v5584 = vpop.f32.mrb[0].mxu0
        %v5585 = vadd.f32 %v5436, %v5584
        %5586 = vmatprep.mubr.f32.mxu0 %v5379
        %5587 = vmatmul.mubr.f32.gmra.mrb[0].mxu0 %v5378
        %v5588 = vpop.f32.mrb[0].mxu0
        %v5589 = vadd.f32 %v5441, %v5588
        %v5590 = vpop.f32.mrb[0].mxu0
        %v5591 = vadd.f32 %v5441, %v5590
        %5592 = vmatprep.mubr.f32.mxu0 %v5381
        %5593 = vmatmul.mubr.f32.gmra.mrb[0].mxu0 %v5380
        %v5594 = vpop.f32.mrb[0].mxu0
        %v5595 = vadd.f32 %v5446, %v5594
        %v5596 = vpop.f32.mrb[0].mxu0
        %v5597 = vadd.f32 %v5446, %v5596
        %5598 = vmatprep.mubr.f32.mxu0 %v5383
        %5599 = vmatmul.mubr.f32.gmra.mrb[0].mxu0 %v5382
        %v5600 = vpop.f32.mrb[0].mxu0
        %v5601 = vadd.f32 %v5451, %v5600
        %v5602 = vpop.f32.mrb[0].mxu0
        %v5603 = vadd.f32 %v5451, %v5602
        %5604 = vmatprep.mubr.f32.mxu0 %v5385
        %5605 = vmatmul.mubr.f32.gmra.mrb[0].mxu0 %v5384
        %v5606 = vpop.f32.mrb[0].mxu0
        %v5607 = vadd.f32 %v5456, %v5606
        %v5608 = vpop.f32.mrb[0].mxu0
        %v5609 = vadd.f32 %v5456, %v5608
        %5610 = vmatprep.mubr.f32.mxu0 %v5387
        %5611 = vmatmul.mubr.f32.gmra.mrb[0].mxu0 %v5386
        %v5612 = vpop.f32.mrb[0].mxu0
        %v5613 = vadd.f32 %v5461, %v5612
        %v5614 = vpop.f32.mrb[0].mxu0
        %v5615 = vadd.f32 %v5461, %v5614
        %5616 = vmatprep.mubr.f32.mxu0 %v5389
        %5617 = vmatmul.mubr.f32.gmra.mrb[0].mxu0 %v5388
        %v5618 = vpop.f32.mrb[0].mxu0
        %v5619 = vadd.f32 %v5466, %v5618
        %v5620 = vpop.f32.mrb[0].mxu0
        %v5621 = vadd.f32 %v5466, %v5620
        %5622 = vmatprep.mubr.f32.mxu0 %v5391
        %5623 = vmatmul.mubr.f32.gmra.mrb[0].mxu0 %v5390
        %v5624 = vpop.f32.mrb[0].mxu0
        %v5625 = vadd.f32 %v5471, %v5624
        %v5626 = vpop.f32.mrb[0].mxu0
        %v5627 = vadd.f32 %v5471, %v5626
        %5628 = vmatprep.mubr.f32.mxu0 %v5393
        %5629 = vmatmul.mubr.f32.gmra.mrb[0].mxu0 %v5392
        %v5630 = vpop.f32.mrb[0].mxu0
        %v5631 = vadd.f32 %v5476, %v5630
        %v5632 = vpop.f32.mrb[0].mxu0
        %v5633 = vadd.f32 %v5476, %v5632
        %5634 = vmatprep.mubr.f32.mxu0 %v5395
        %5635 = vmatmul.mubr.f32.gmra.mrb[0].mxu0 %v5394
        %v5636 = vpop.f32.mrb[0].mxu0
        %v5637 = vadd.f32 %v5481, %v5636
        %v5638 = vpop.f32.mrb[0].mxu0
        %v5639 = vadd.f32 %v5481, %v5638
        %5640 = vmatprep.mubr.f32.mxu0 %v5397
        %5641 = vmatmul.mubr.f32.gmra.mrb[0].mxu0 %v5396
        %v5642 = vpop.f32.mrb[0].mxu0
        %v5643 = vadd.f32 %v5486, %v5642
        %v5644 = vpop.f32.mrb[0].mxu0
        %v5645 = vadd.f32 %v5486, %v5644
        %5646 = vmatprep.mubr.f32.mxu0 %v5399
        %5647 = vmatmul.mubr.f32.gmra.mrb[0].mxu0 %v5398
        %v5648 = vpop.f32.mrb[0].mxu0
        %v5649 = vadd.f32 %v5491, %v5648
        %v5650 = vpop.f32.mrb[0].mxu0
        %v5651 = vadd.f32 %v5491, %v5650
        %5652 = vmatprep.mubr.f32.mxu0 %v5401
        %5653 = vmatmul.mubr.f32.gmra.mrb[0].mxu0 %v5400
        %v5654 = vpop.f32.mrb[0].mxu0
        %v5655 = vadd.f32 %v5496, %v5654
        %v5656 = vpop.f32.mrb[0].mxu0
        %v5657 = vadd.f32 %v5496, %v5656
        %5658 = vdwg.mxu0
        %v5659 = vmax.f32 %v5565, 0.0
        %v5660 = vmax.f32 %v5567, 0.0
        %v5661 = vmax.f32 %v5571, 0.0
        %v5662 = vmax.f32 %v5573, 0.0
        %v5663 = vmax.f32 %v5577, 0.0
        %v5664 = vmax.f32 %v5579, 0.0
        %v5665 = vmax.f32 %v5583, 0.0
        %v5666 = vmax.f32 %v5585, 0.0
        %v5667 = vmax.f32 %v5589, 0.0
        %v5668 = vmax.f32 %v5591, 0.0
        %v5669 = vmax.f32 %v5595, 0.0
        %v5670 = vmax.f32 %v5597, 0.0
        %v5671 = vmax.f32 %v5601, 0.0
        %v5672 = vmax.f32 %v5603, 0.0
        %v5673 = vmax.f32 %v5607, 0.0
        %v5674 = vmax.f32 %v5609, 0.0
        %v5675 = vmax.f32 %v5613, 0.0
        %v5676 = vmax.f32 %v5615, 0.0
        %v5677 = vmax.f32 %v5619, 0.0
        %v5678 = vmax.f32 %v5621, 0.0
        %v5679 = vmax.f32 %v5625, 0.0
        %v5680 = vmax.f32 %v5627, 0.0
        %v5681 = vmax.f32 %v5631, 0.0
        %v5682 = vmax.f32 %v5633, 0.0
        %v5683 = vmax.f32 %v5637, 0.0
        %v5684 = vmax.f32 %v5639, 0.0
        %v5685 = vmax.f32 %v5643, 0.0
        %v5686 = vmax.f32 %v5645, 0.0
        %v5687 = vmax.f32 %v5649, 0.0
        %v5688 = vmax.f32 %v5651, 0.0
        %v5689 = vmax.f32 %v5655, 0.0
        %v5690 = vmax.f32 %v5657, 0.0
        %5691 = vst [vmem:[%s403] sm:$0xff] %v5659
        %5692 = vst [vmem:[%s403 + $0x8] sm:$0xff] %v5660
        %5693 = vst [vmem:[%s403 + $0x10] sm:$0xff] %v5661
        %5694 = vst [vmem:[%s403 + $0x18] sm:$0xff] %v5662
        %5695 = vst [vmem:[%s403 + $0x20] sm:$0xff] %v5663
        %5696 = vst [vmem:[%s403 + $0x28] sm:$0xff] %v5664
        %5697 = vst [vmem:[%s403 + $0x30] sm:$0xff] %v5665
        %5698 = vst [vmem:[%s403 + $0x38] sm:$0xff] %v5666
        %5699 = vst [vmem:[%s403 + $0x40] sm:$0xff] %v5667
        %5700 = vst [vmem:[%s403 + $0x48] sm:$0xff] %v5668
        %5701 = vst [vmem:[%s403 + $0x50] sm:$0xff] %v5669
        %5702 = vst [vmem:[%s403 + $0x58] sm:$0xff] %v5670
        %5703 = vst [vmem:[%s403 + $0x60] sm:$0xff] %v5671
        %5704 = vst [vmem:[%s403 + $0x68] sm:$0xff] %v5672
        %5705 = vst [vmem:[%s403 + $0x70] sm:$0xff] %v5673
        %5706 = vst [vmem:[%s403 + $0x78] sm:$0xff] %v5674
        %5707 = vst [vmem:[%s403 + $0x80] sm:$0xff] %v5675
        %5708 = vst [vmem:[%s403 + $0x88] sm:$0xff] %v5676
        %5709 = vst [vmem:[%s403 + $0x90] sm:$0xff] %v5677
        %5710 = vst [vmem:[%s403 + $0x98] sm:$0xff] %v5678
        %5711 = vst [vmem:[%s403 + $0xa0] sm:$0xff] %v5679
        %5712 = vst [vmem:[%s403 + $0xa8] sm:$0xff] %v5680
        %5713 = vst [vmem:[%s403 + $0xb0] sm:$0xff] %v5681
        %5714 = vst [vmem:[%s403 + $0xb8] sm:$0xff] %v5682
        %5715 = vst [vmem:[%s403 + $0xc0] sm:$0xff] %v5683
        %5716 = vst [vmem:[%s403 + $0xc8] sm:$0xff] %v5684
        %5717 = vst [vmem:[%s403 + $0xd0] sm:$0xff] %v5685
        %5718 = vst [vmem:[%s403 + $0xd8] sm:$0xff] %v5686
        %5719 = vst [vmem:[%s403 + $0xe0] sm:$0xff] %v5687
        %5720 = vst [vmem:[%s403 + $0xe8] sm:$0xff] %v5688
        %5721 = vst [vmem:[%s403 + $0xf0] sm:$0xff] %v5689
        %5722 = vst [vmem:[%s403 + $0xf8] sm:$0xff] %v5690
        %s5723 = sand.u32 %s285, 1
        %s5724 = scalar_lea.sflag [#allocation3], %s5723
        %s5725 = sand.u32 %s285, 1
        %s5726 = smul.addr %s5725, 256
        %s5727 = scalar_lea.vmem [#allocation2], %s5726
        // Predicated region
        $region65: #{tpu_custom_call.1} parent=63 // pred_check
          %p5728 = pneg %p295
        $region66: #{tpu_custom_call.1} parent=63 // pred_check_branch
          %5730 = sbr.rel (%p5728) target = $region68
        $region67: #{tpu_custom_call.1} parent=63 // pred_region
          %s5731 = smul.u32 2, %s30
          %s5733 = ssub.s32 4096, 4096
          %5734 = vsyncadd %s5724, %s5733
          %s5735 = smul.addr %s29, 32
          %s5736 = sadd.s32 %s5731, %s5735
          %s5737 = smul.addr %s5736, 128
          %s5738 = scalar_lea.hbm %s11, %s5737
          %s5739 = sshll.u32 %s5727, 4
          %s5740 = int_to_ptr.vmem [resolvable:$true] %s5739
          %5745 = dma.vmem_to_hbm [thread:$0]  %s5740, 4096, %s5738, %s5724, 256, 256, 16
        $region68: #{tpu_custom_call.1} parent=63 // pred_fallthru
          _
      $region64: #{tpu_custom_call.1} parent=5 // pred_fallthru
        _
      %p5746 = scmp.le.s32.totalorder 2, %s20
      // Predicated region
      $region69: #{tpu_custom_call.1} parent=5 // pred_check
        %p5747 = pneg %p5746
      $region70: #{tpu_custom_call.1} parent=5 // pred_check_branch
        %5749 = sbr.rel (%p5747) target = $region72
      $region71: #{tpu_custom_call.1} parent=5 // pred_region
        %s5750 = ssub.s32 %s20, 2
        // Predicated region
        $region73: #{tpu_custom_call.1} parent=71 // pred_check
          %p5751 = pneg %p301
        $region74: #{tpu_custom_call.1} parent=71 // pred_check_branch
          %5753 = sbr.rel (%p5751) target = $region76
        $region75: #{tpu_custom_call.1} parent=71 // pred_region
          %s5754 = sand.u32 %s286, 1
          %s5755 = scalar_lea.sflag [#allocation3], %s5754
          %s5756 = sand.u32 %s286, 1
          %s5757 = smul.addr %s5756, 256
          %s5758 = scalar_lea.vmem [#allocation2], %s5757
          %5759 = dma.done %s5755, 4096
        $region76: #{tpu_custom_call.1} parent=71 // pred_fallthru
          _
      $region72: #{tpu_custom_call.1} parent=5 // pred_fallthru
        _
    $region6: #{tpu_custom_call.1} parent=1 // loop_footer
      %s24 = sadd.s32 1, %s20
    $region7: #{tpu_custom_call.1} parent=1 // loop_footer_branch
      %19 = sbr.rel target = $region3
    $region8: #{tpu_custom_call.1} parent=1 // loop_exit
      _
    %5760 = vsyncpa [#allocation3], 1
    %s5761 = scalar_lea.sflag [#allocation3], 1
    %5762 = vsyncpa %s5761, 1

</llo_original>
